<compile_context>
chip_gen: v7x
topology: tpu7x:2x2x1
jax: 0.10.0
libtpu: 0.0.40
codegen_flags: <defaults>
</compile_context>

<pallas_src>
import functools

import jax
import jax.numpy as jnp
from jax.experimental import pallas as pl
from jax.experimental.pallas import tpu as pltpu

VMEM_LIMIT = 32 * 1024 * 1024  # explicit scoped-VMEM budget (safe on v5e/v6e/v7x)


# ----------------------------------------------------------------------------
# Pallas kernels
# ----------------------------------------------------------------------------
def convt_bn_relu_kernel(a_ref, w_ref, g_ref, beta_ref, o_ref, *, n_parity, eps):
    """Single-step fused matmul -> BatchNorm(batch stats) -> ReLU.

    a_ref    : (M, K)      bf16  whole-layer LHS (im2col / 3x3 parity window)
    w_ref    : (K, P*Co)   bf16  P = n_parity output-parity blocks
    g_ref    : (1, Co)     f32   BN gamma
    beta_ref : (1, Co)     f32   BN beta
    o_ref    : (M, P*Co)   bf16

    BN statistics are per channel co across all M rows AND all P parity column
    blocks (= every output pixel of the layer), matching training-mode
    nn.BatchNorm2d with biased variance. The ConvTranspose bias is deliberately
    absent: a per-channel constant cancels exactly under batch-stat BN.
    """
    p_count = n_parity
    co = g_ref.shape[1]
    m = a_ref.shape[0]

    # MXU matmul over the full K (bf16 inputs, f32 accumulation).
    y = jnp.dot(a_ref[...], w_ref[...], preferred_element_type=jnp.float32)

    inv_n = 1.0 / (m * p_count)

    # Per-channel mean (combine the P parity column blocks).
    s = jnp.sum(y, axis=0, keepdims=True)                          # (1, P*Co)
    if p_count > 1:
        s = sum(s[:, p * co:(p + 1) * co] for p in range(p_count))  # (1, Co)
    mean = s * inv_n

    # Centered (two-pass) biased variance — robust vs. E[y^2] - mean^2.
    mean_f = jnp.concatenate([mean] * p_count, axis=1) if p_count > 1 else mean
    d = y - mean_f
    v = jnp.sum(d * d, axis=0, keepdims=True)                      # (1, P*Co)
    if p_count > 1:
        v = sum(v[:, p * co:(p + 1) * co] for p in range(p_count))  # (1, Co)
    var = v * inv_n

    scale = g_ref[...] * jax.lax.rsqrt(var + eps)                  # (1, Co)
    shift = beta_ref[...] - mean * scale
    if p_count > 1:
        scale = jnp.concatenate([scale] * p_count, axis=1)         # (1, P*Co)
        shift = jnp.concatenate([shift] * p_count, axis=1)

    o_ref[...] = jnp.maximum(y * scale + shift, 0.0).astype(o_ref.dtype)


def convt_tanh_kernel(w_ref, a_ref, b_ref, o_ref):
    """Final layer as a transposed GEMM for a lane-dense, channel-major output.

    w_ref : (4*Co, 9*Ci) bf16   parity-packed weight, transposed
    a_ref : (9*Ci, tm)   bf16   column tile of the transposed 3x3-window LHS
    b_ref : (4*Co, 1)    f32    ConvTranspose bias (tiled over parities)
    o_ref : (4*Co, tm)   f32
    """
    y = jnp.dot(w_ref[...], a_ref[...], preferred_element_type=jnp.float32)
    o_ref[...] = jnp.tanh(y + b_ref[...])


# ----------------------------------------------------------------------------
# Pallas wrappers (one fused call per layer)
# ----------------------------------------------------------------------------
def fused_convt_bn_relu(a, w_mat, gamma, beta, *, n_parity, eps=1e-5):
    m, k = a.shape
    pco = w_mat.shape[1]
    co = pco // n_parity
    kernel = functools.partial(convt_bn_relu_kernel, n_parity=n_parity, eps=eps)
    return pl.pallas_call(
        kernel,
        out_shape=jax.ShapeDtypeStruct((m, pco), jnp.bfloat16),
        grid=(1,),                                       # whole layer resident
        in_specs=[
            pl.BlockSpec((m, k), lambda i: (0, 0)),      # LHS
            pl.BlockSpec((k, pco), lambda i: (0, 0)),    # weight
            pl.BlockSpec((1, co), lambda i: (0, 0)),     # gamma
            pl.BlockSpec((1, co), lambda i: (0, 0)),     # beta
        ],
        out_specs=pl.BlockSpec((m, pco), lambda i: (0, 0)),
        compiler_params=pltpu.CompilerParams(
            dimension_semantics=("arbitrary",),
            vmem_limit_bytes=VMEM_LIMIT),
    )(a, w_mat,
      gamma.reshape(1, co).astype(jnp.float32),
      beta.reshape(1, co).astype(jnp.float32))


def fused_convt_tanh(w_mat_t, a_t, bias_col, *, n_blocks=2):
    pco, k = w_mat_t.shape
    _, m = a_t.shape
    tm = m // n_blocks                                   # 2 parallel column blocks
    return pl.pallas_call(
        convt_tanh_kernel,
        out_shape=jax.ShapeDtypeStruct((pco, m), jnp.float32),
        grid=(n_blocks,),
        in_specs=[
            pl.BlockSpec((pco, k), lambda i: (0, 0)),    # weight (resident)
            pl.BlockSpec((k, tm), lambda i: (0, i)),     # LHS column tile
            pl.BlockSpec((pco, 1), lambda i: (0, 0)),    # bias column
        ],
        out_specs=pl.BlockSpec((pco, tm), lambda i: (0, i)),
        compiler_params=pltpu.CompilerParams(
            dimension_semantics=("parallel",),
            vmem_limit_bytes=VMEM_LIMIT),
    )(w_mat_t, a_t, bias_col)


# ----------------------------------------------------------------------------
# One-time parameter preparation (hoisted out of the jitted forward)
# ----------------------------------------------------------------------------
def prep_weight_s1(w):
    """Layer-1 weight (Ci, Co, 4, 4) -> (16*Ci, Co).

    Layer 1 has a 1x1 spatial input (stride 1, pad 0): output pixel (kh, kw)
    is z @ W[:, :, kh, kw]; the matching block-diagonal LHS is built in
    _layer1_lhs. Row index = (kh*4 + kw)*Ci + ci.
    """
    ci, co, k, _ = w.shape
    return w.transpose(2, 3, 0, 1).reshape(k * k * ci, co).astype(jnp.bfloat16)


def prep_weight_s2(w):
    """Stride-2 weight (Ci, Co, 4, 4) -> (9*Ci, 4*Co) parity sub-kernel matrix.

    Output parity p = 2a + b reads sub-kernel taps (dh, dw) of the 3x3 input
    window with kh = 3 + a - 2*dh (valid iff dh in {a, a+1}), same for width;
    the remaining taps are structural zeros of the dilated input.
    """
    ci, co, _, _ = w.shape
    wsub = jnp.zeros((9 * ci, 4 * co), jnp.float32)
    for a in (0, 1):
        for b in (0, 1):
            p = 2 * a + b
            for dh in (a, a + 1):
                for dw in (b, b + 1):
                    kh = 3 + a - 2 * dh
                    kw = 3 + b - 2 * dw
                    r0 = (dh * 3 + dw) * ci
                    wsub = wsub.at[r0:r0 + ci, p * co:(p + 1) * co].set(w[:, :, kh, kw])
    return wsub.astype(jnp.bfloat16)


def prepare_params(params):
    """Raw PyTorch-layout params -> Pallas-ready matrices (done once)."""
    w1, _b1, g1, be1 = params[0]          # ConvT bias cancels under BatchNorm
    prepped = [(prep_weight_s1(w1), g1, be1)]
    for i in (1, 2, 3):
        w, _b, g, be = params[i]
        prepped.append((prep_weight_s2(w), g, be))
    w5, b5 = params[4]
    co = w5.shape[1]
    w5t = prep_weight_s2(w5).T            # (4*Co, 9*Ci), transposed GEMM form
    b5col = jnp.tile(b5, 4).reshape(4 * co, 1).astype(jnp.float32)
    prepped.append((w5t, b5col))
    return prepped


# ----------------------------------------------------------------------------
# XLA glue: parity-window LHS construction and parity un-interleaving
# ----------------------------------------------------------------------------
def _layer1_lhs(z_nchw):
    """(N, Cz, 1, 1) -> block-diagonal (N*16, 16*Cz) bf16 LHS for layer 1."""
    n, cz = z_nchw.shape[0], z_nchw.shape[1]
    z2 = z_nchw.reshape(n, cz)
    eye = jnp.eye(16, dtype=z2.dtype)
    lhs = (z2[:, None, None, :] * eye[None, :, :, None]).reshape(n * 16, 16 * cz)
    return lhs.astype(jnp.bfloat16)


def _stride2_lhs(x_nhwc):
    """(N, H, W, Ci) -> (N*H*W, 9*Ci) bf16: pad by 1 and gather the 3x3 taps."""
    n, h, w, ci = x_nhwc.shape
    xp = jnp.pad(x_nhwc, ((0, 0), (1, 1), (1, 1), (0, 0)))
    taps = [xp[:, dh:dh + h, dw:dw + w, :] for dh in range(3) for dw in range(3)]
    return jnp.concatenate(taps, axis=-1).reshape(n * h * w, 9 * ci).astype(jnp.bfloat16)


def _stride2_lhs_t(x_nhwc):
    """(N, H, W, Ci) -> transposed LHS (9*Ci, N*H*W) bf16 for the final layer."""
    n, h, w, ci = x_nhwc.shape
    xcf = x_nhwc.transpose(3, 0, 1, 2)                       # (Ci, N, H, W)
    xp = jnp.pad(xcf, ((0, 0), (0, 0), (1, 1), (1, 1)))
    taps = [xp[:, :, dh:dh + h, dw:dw + w] for dh in range(3) for dw in range(3)]
    return jnp.stack(taps, axis=0).reshape(9 * ci, n * h * w).astype(jnp.bfloat16)


def _parity_cols_to_nhwc(y, n, h, w, co):
    """(N*H*W, 4*Co) parity-major columns -> NHWC (N, 2H, 2W, Co)."""
    t = y.reshape(n, h, w, 2, 2, co).transpose(0, 1, 3, 2, 4, 5)
    return t.reshape(n, 2 * h, 2 * w, co)


# ----------------------------------------------------------------------------
# Generator: parameters + forward
# ----------------------------------------------------------------------------
def init_params(key, z_ch, out_ch, fd):
    chans = [z_ch, fd * 16, fd * 8, fd * 4, fd * 2, out_ch]
    k = 4
    keys = jax.random.split(key, 5 * 3)
    params = []
    for i in range(5):
        kw, kb, kg = keys[3 * i], keys[3 * i + 1], keys[3 * i + 2]
        w = 0.2 * jax.random.normal(kw, (chans[i], chans[i + 1], k, k), jnp.float32)
        b = 0.02 * jax.random.normal(kb, (chans[i + 1],), jnp.float32)
        if i < 4:
            gamma = 0.2 * jax.random.normal(kg, (chans[i + 1],), jnp.float32)
            beta = jnp.zeros((chans[i + 1],), jnp.float32)
            params.append((w, b, gamma, beta))   # conv bias kept for parity w/ PyTorch,
        else:                                    # but it cancels under training-mode BN
            params.append((w, b))
    return params


@jax.jit
def generator_forward(prepped, z):
    """Matches Generator.forward: self.conv(x.clone()) on NCHW input."""
    n = z.shape[0]

    # Layer 1: ConvT(Cz -> 16fd, k4, s1, p0) + BN + ReLU  -> 4x4.
    w1, g1, be1 = prepped[0]
    co = w1.shape[1]
    y = fused_convt_bn_relu(_layer1_lhs(z), w1, g1, be1, n_parity=1)
    h = y.reshape(n, 4, 4, co)                               # NHWC, bf16

    # Layers 2-4: stride-2 ConvT + BN + ReLU  (4x4 -> 8x8 -> 16x16 -> 32x32).
    for i in (1, 2, 3):
        w, g, be = prepped[i]
        co = w.shape[1] // 4
        hh, ww = h.shape[1], h.shape[2]
        y = fused_convt_bn_relu(_stride2_lhs(h), w, g, be, n_parity=4)
        h = _parity_cols_to_nhwc(y, n, hh, ww, co)

    # Layer 5: stride-2 ConvT + Tanh (32x32 -> 64x64), transposed GEMM so the
    # Pallas output (4*Co, N*H*W) is lane-dense and already channel-major.
    w5t, b5 = prepped[4]
    co = w5t.shape[0] // 4
    hh, ww = h.shape[1], h.shape[2]
    t = fused_convt_tanh(w5t, _stride2_lhs_t(h), b5)
    out = t.reshape(2, 2, co, n, hh, ww).transpose(3, 2, 4, 0, 5, 1)
    return out.reshape(n, co, 2 * hh, 2 * ww)                # NCHW


if __name__ == "__main__":
    key = jax.random.PRNGKey(0)
    pkey, xkey = jax.random.split(key)

    z_ch, out_ch, fd = 8, 3, 4   # input_shape=8, output_shape=3, features_d=4
    params = init_params(pkey, z_ch, out_ch, fd)
    prepped = prepare_params(params)                         # one-time weight prep
    x = jax.random.normal(xkey, (2, z_ch, 1, 1), jnp.float32)  # DCGAN noise (N, Cz, 1, 1)

    y = generator_forward(prepped, x)
    y = jax.block_until_ready(y)
    assert y.shape == (2, out_ch, 64, 64), y.shape
    assert bool(jnp.all(jnp.isfinite(y)))
    assert bool(jnp.all(jnp.abs(y) <= 1.0 + 1e-6))  # tanh range
    print("KERNEL_OK")
</pallas_src>

<mosaic_0001>
module attributes {stable_mosaic.version = 11 : i64} {
  func.func @convt_bn_relu_kernel(%arg0: i32, %arg1: memref<32x128xbf16, #tpu.memory_space<vmem>>, %arg2: memref<128x64xbf16, #tpu.memory_space<vmem>>, %arg3: memref<1x64xf32, #tpu.memory_space<vmem>>, %arg4: memref<1x64xf32, #tpu.memory_space<vmem>>, %arg5: memref<32x64xbf16, #tpu.memory_space<vmem>>) attributes {dimension_semantics = [#tpu.dimension_semantics<arbitrary>], iteration_bounds = array<i64: 1>, scalar_prefetch = 0 : i64, scratch_operands = 0 : i64, tpu.core_type = #tpu.core_type<tc>, window_params = [{pipeline_mode = #tpu.pipeline_mode<synchronous>, transform_indices = @transform_0, window_bounds = array<i64: 32, 128>}, {pipeline_mode = #tpu.pipeline_mode<synchronous>, transform_indices = @transform_1, window_bounds = array<i64: 128, 64>}, {pipeline_mode = #tpu.pipeline_mode<synchronous>, transform_indices = @transform_2, window_bounds = array<i64: 1, 64>}, {pipeline_mode = #tpu.pipeline_mode<synchronous>, transform_indices = @transform_3, window_bounds = array<i64: 1, 64>}, {pipeline_mode = #tpu.pipeline_mode<synchronous>, transform_indices = @transform_4, window_bounds = array<i64: 32, 64>}]} {
    %c0 = arith.constant 0 : index
    %c0_0 = arith.constant 0 : index
    %0 = vector.load %arg1[%c0, %c0_0] : memref<32x128xbf16, #tpu.memory_space<vmem>>, vector<32x128xbf16>
    %c0_1 = arith.constant 0 : index
    %c0_2 = arith.constant 0 : index
    %1 = vector.load %arg2[%c0_1, %c0_2] : memref<128x64xbf16, #tpu.memory_space<vmem>>, vector<128x64xbf16>
    %cst = arith.constant dense<0.000000e+00> : vector<32x64xf32>
    %2 = tpu.matmul %0, %1, %cst {dimension_numbers = #tpu.dot_dimension_numbers<[1], [0], [0], [1], [0, 0, 1, 1], [], []>} : vector<32x128xbf16>, vector<128x64xbf16>, vector<32x64xf32> -> vector<32x64xf32>
    %cst_3 = arith.constant dense<0.000000e+00> : vector<64xf32>
    %3 = vector.multi_reduction <add>, %2, %cst_3 [0] : vector<32x64xf32> to vector<64xf32>
    %4 = vector.shape_cast %3 : vector<64xf32> to vector<1x64xf32>
    %cst_4 = arith.constant 3.125000e-02 : f32
    %5 = vector.broadcast %cst_4 : f32 to vector<1x64xf32>
    %6 = arith.mulf %4, %5 : vector<1x64xf32>
    %7 = vector.broadcast %6 : vector<1x64xf32> to vector<32x64xf32>
    %8 = arith.subf %2, %7 : vector<32x64xf32>
    %9 = arith.mulf %8, %8 : vector<32x64xf32>
    %cst_5 = arith.constant dense<0.000000e+00> : vector<64xf32>
    %10 = vector.multi_reduction <add>, %9, %cst_5 [0] : vector<32x64xf32> to vector<64xf32>
    %11 = vector.shape_cast %10 : vector<64xf32> to vector<1x64xf32>
    %cst_6 = arith.constant 3.125000e-02 : f32
    %12 = vector.broadcast %cst_6 : f32 to vector<1x64xf32>
    %13 = arith.mulf %11, %12 : vector<1x64xf32>
    %c0_7 = arith.constant 0 : index
    %c0_8 = arith.constant 0 : index
    %14 = vector.load %arg3[%c0_7, %c0_8] : memref<1x64xf32, #tpu.memory_space<vmem>>, vector<1x64xf32>
    %cst_9 = arith.constant 9.99999974E-6 : f32
    %15 = vector.broadcast %cst_9 : f32 to vector<1x64xf32>
    %16 = arith.addf %13, %15 : vector<1x64xf32>
    %17 = math.rsqrt %16 : vector<1x64xf32>
    %18 = arith.mulf %14, %17 : vector<1x64xf32>
    %c0_10 = arith.constant 0 : index
    %c0_11 = arith.constant 0 : index
    %19 = vector.load %arg4[%c0_10, %c0_11] : memref<1x64xf32, #tpu.memory_space<vmem>>, vector<1x64xf32>
    %20 = arith.mulf %6, %18 : vector<1x64xf32>
    %21 = arith.subf %19, %20 : vector<1x64xf32>
    %22 = vector.broadcast %18 : vector<1x64xf32> to vector<32x64xf32>
    %23 = arith.mulf %2, %22 : vector<32x64xf32>
    %24 = vector.broadcast %21 : vector<1x64xf32> to vector<32x64xf32>
    %25 = arith.addf %23, %24 : vector<32x64xf32>
    %cst_12 = arith.constant 0.000000e+00 : f32
    %26 = vector.broadcast %cst_12 : f32 to vector<32x64xf32>
    %27 = arith.maximumf %25, %26 : vector<32x64xf32>
    %28 = arith.truncf %27 : vector<32x64xf32> to vector<32x64xbf16>
    %c0_13 = arith.constant 0 : index
    %c0_14 = arith.constant 0 : index
    %29 = vector.load %arg5[%c0_13, %c0_14] : memref<32x64xbf16, #tpu.memory_space<vmem>>, vector<32x64xbf16>
    tpu.vector_store %arg5[%c0_13, %c0_14], %28 {strides = array<i32>} : memref<32x64xbf16, #tpu.memory_space<vmem>>, vector<32x64xbf16>,
    return
  }
  func.func @transform_0(%arg0: i32) -> (i32, i32) {
    %c0_i32 = arith.constant 0 : i32
    %c0_i32_0 = arith.constant 0 : i32
    %c0_i32_1 = arith.constant 0 : i32
    return %c0_i32, %c0_i32_0 : i32, i32
  }
  func.func @transform_1(%arg0: i32) -> (i32, i32) {
    %c0_i32 = arith.constant 0 : i32
    %c0_i32_0 = arith.constant 0 : i32
    %c0_i32_1 = arith.constant 0 : i32
    return %c0_i32, %c0_i32_0 : i32, i32
  }
  func.func @transform_2(%arg0: i32) -> (i32, i32) {
    %c0_i32 = arith.constant 0 : i32
    %c0_i32_0 = arith.constant 0 : i32
    %c0_i32_1 = arith.constant 0 : i32
    return %c0_i32, %c0_i32_0 : i32, i32
  }
  func.func @transform_3(%arg0: i32) -> (i32, i32) {
    %c0_i32 = arith.constant 0 : i32
    %c0_i32_0 = arith.constant 0 : i32
    %c0_i32_1 = arith.constant 0 : i32
    return %c0_i32, %c0_i32_0 : i32, i32
  }
  func.func @transform_4(%arg0: i32) -> (i32, i32) {
    %c0_i32 = arith.constant 0 : i32
    %c0_i32_0 = arith.constant 0 : i32
    %c0_i32_1 = arith.constant 0 : i32
    return %c0_i32, %c0_i32_0 : i32, i32
  }
}

module attributes {stable_mosaic.version = 11 : i64} {
  func.func @convt_bn_relu_kernel(%arg0: i32, %arg1: memref<32x576xbf16, #tpu.memory_space<vmem>>, %arg2: memref<576x128xbf16, #tpu.memory_space<vmem>>, %arg3: memref<1x32xf32, #tpu.memory_space<vmem>>, %arg4: memref<1x32xf32, #tpu.memory_space<vmem>>, %arg5: memref<32x128xbf16, #tpu.memory_space<vmem>>) attributes {dimension_semantics = [#tpu.dimension_semantics<arbitrary>], iteration_bounds = array<i64: 1>, scalar_prefetch = 0 : i64, scratch_operands = 0 : i64, tpu.core_type = #tpu.core_type<tc>, window_params = [{pipeline_mode = #tpu.pipeline_mode<synchronous>, transform_indices = @transform_0, window_bounds = array<i64: 32, 576>}, {pipeline_mode = #tpu.pipeline_mode<synchronous>, transform_indices = @transform_1, window_bounds = array<i64: 576, 128>}, {pipeline_mode = #tpu.pipeline_mode<synchronous>, transform_indices = @transform_2, window_bounds = array<i64: 1, 32>}, {pipeline_mode = #tpu.pipeline_mode<synchronous>, transform_indices = @transform_3, window_bounds = array<i64: 1, 32>}, {pipeline_mode = #tpu.pipeline_mode<synchronous>, transform_indices = @transform_4, window_bounds = array<i64: 32, 128>}]} {
    %c0 = arith.constant 0 : index
    %c0_0 = arith.constant 0 : index
    %0 = vector.load %arg1[%c0, %c0_0] : memref<32x576xbf16, #tpu.memory_space<vmem>>, vector<32x576xbf16>
    %c0_1 = arith.constant 0 : index
    %c0_2 = arith.constant 0 : index
    %1 = vector.load %arg2[%c0_1, %c0_2] : memref<576x128xbf16, #tpu.memory_space<vmem>>, vector<576x128xbf16>
    %cst = arith.constant dense<0.000000e+00> : vector<32x128xf32>
    %2 = tpu.matmul %0, %1, %cst {dimension_numbers = #tpu.dot_dimension_numbers<[1], [0], [0], [1], [0, 0, 1, 1], [], []>} : vector<32x576xbf16>, vector<576x128xbf16>, vector<32x128xf32> -> vector<32x128xf32>
    %cst_3 = arith.constant dense<0.000000e+00> : vector<128xf32>
    %3 = vector.multi_reduction <add>, %2, %cst_3 [0] : vector<32x128xf32> to vector<128xf32>
    %4 = vector.shape_cast %3 : vector<128xf32> to vector<1x128xf32>
    %5 = vector.extract_strided_slice %4 {offsets = [0, 0], sizes = [1, 32], strides = [1, 1]} : vector<1x128xf32> to vector<1x32xf32>
    %cst_4 = arith.constant 0.000000e+00 : f32
    %6 = vector.broadcast %cst_4 : f32 to vector<1x32xf32>
    %7 = arith.addf %6, %5 : vector<1x32xf32>
    %8 = vector.extract_strided_slice %4 {offsets = [0, 32], sizes = [1, 32], strides = [1, 1]} : vector<1x128xf32> to vector<1x32xf32>
    %9 = arith.addf %7, %8 : vector<1x32xf32>
    %10 = vector.extract_strided_slice %4 {offsets = [0, 64], sizes = [1, 32], strides = [1, 1]} : vector<1x128xf32> to vector<1x32xf32>
    %11 = arith.addf %9, %10 : vector<1x32xf32>
    %12 = vector.extract_strided_slice %4 {offsets = [0, 96], sizes = [1, 32], strides = [1, 1]} : vector<1x128xf32> to vector<1x32xf32>
    %13 = arith.addf %11, %12 : vector<1x32xf32>
    %cst_5 = arith.constant 7.812500e-03 : f32
    %14 = vector.broadcast %cst_5 : f32 to vector<1x32xf32>
    %15 = arith.mulf %13, %14 : vector<1x32xf32>
    %16 = tpu.concatenate %15, %15, %15, %15 in 1 : vector<1x32xf32>, vector<1x32xf32>, vector<1x32xf32>, vector<1x32xf32> -> vector<1x128xf32>
    %17 = vector.broadcast %16 : vector<1x128xf32> to vector<32x128xf32>
    %18 = arith.subf %2, %17 : vector<32x128xf32>
    %19 = arith.mulf %18, %18 : vector<32x128xf32>
    %cst_6 = arith.constant dense<0.000000e+00> : vector<128xf32>
    %20 = vector.multi_reduction <add>, %19, %cst_6 [0] : vector<32x128xf32> to vector<128xf32>
    %21 = vector.shape_cast %20 : vector<128xf32> to vector<1x128xf32>
    %22 = vector.extract_strided_slice %21 {offsets = [0, 0], sizes = [1, 32], strides = [1, 1]} : vector<1x128xf32> to vector<1x32xf32>
    %cst_7 = arith.constant 0.000000e+00 : f32
    %23 = vector.broadcast %cst_7 : f32 to vector<1x32xf32>
    %24 = arith.addf %23, %22 : vector<1x32xf32>
    %25 = vector.extract_strided_slice %21 {offsets = [0, 32], sizes = [1, 32], strides = [1, 1]} : vector<1x128xf32> to vector<1x32xf32>
    %26 = arith.addf %24, %25 : vector<1x32xf32>
    %27 = vector.extract_strided_slice %21 {offsets = [0, 64], sizes = [1, 32], strides = [1, 1]} : vector<1x128xf32> to vector<1x32xf32>
    %28 = arith.addf %26, %27 : vector<1x32xf32>
    %29 = vector.extract_strided_slice %21 {offsets = [0, 96], sizes = [1, 32], strides = [1, 1]} : vector<1x128xf32> to vector<1x32xf32>
    %30 = arith.addf %28, %29 : vector<1x32xf32>
    %cst_8 = arith.constant 7.812500e-03 : f32
    %31 = vector.broadcast %cst_8 : f32 to vector<1x32xf32>
    %32 = arith.mulf %30, %31 : vector<1x32xf32>
    %c0_9 = arith.constant 0 : index
    %c0_10 = arith.constant 0 : index
    %33 = vector.load %arg3[%c0_9, %c0_10] : memref<1x32xf32, #tpu.memory_space<vmem>>, vector<1x32xf32>
    %cst_11 = arith.constant 9.99999974E-6 : f32
    %34 = vector.broadcast %cst_11 : f32 to vector<1x32xf32>
    %35 = arith.addf %32, %34 : vector<1x32xf32>
    %36 = math.rsqrt %35 : vector<1x32xf32>
    %37 = arith.mulf %33, %36 : vector<1x32xf32>
    %c0_12 = arith.constant 0 : index
    %c0_13 = arith.constant 0 : index
    %38 = vector.load %arg4[%c0_12, %c0_13] : memref<1x32xf32, #tpu.memory_space<vmem>>, vector<1x32xf32>
    %39 = arith.mulf %15, %37 : vector<1x32xf32>
    %40 = arith.subf %38, %39 : vector<1x32xf32>
    %41 = tpu.concatenate %37, %37, %37, %37 in 1 : vector<1x32xf32>, vector<1x32xf32>, vector<1x32xf32>, vector<1x32xf32> -> vector<1x128xf32>
    %42 = tpu.concatenate %40, %40, %40, %40 in 1 : vector<1x32xf32>, vector<1x32xf32>, vector<1x32xf32>, vector<1x32xf32> -> vector<1x128xf32>
    %43 = vector.broadcast %41 : vector<1x128xf32> to vector<32x128xf32>
    %44 = arith.mulf %2, %43 : vector<32x128xf32>
    %45 = vector.broadcast %42 : vector<1x128xf32> to vector<32x128xf32>
    %46 = arith.addf %44, %45 : vector<32x128xf32>
    %cst_14 = arith.constant 0.000000e+00 : f32
    %47 = vector.broadcast %cst_14 : f32 to vector<32x128xf32>
    %48 = arith.maximumf %46, %47 : vector<32x128xf32>
    %49 = arith.truncf %48 : vector<32x128xf32> to vector<32x128xbf16>
    %c0_15 = arith.constant 0 : index
    %c0_16 = arith.constant 0 : index
    %50 = vector.load %arg5[%c0_15, %c0_16] : memref<32x128xbf16, #tpu.memory_space<vmem>>, vector<32x128xbf16>
    tpu.vector_store %arg5[%c0_15, %c0_16], %49 {strides = array<i32>} : memref<32x128xbf16, #tpu.memory_space<vmem>>, vector<32x128xbf16>,
    return
  }
  func.func @transform_0(%arg0: i32) -> (i32, i32) {
    %c0_i32 = arith.constant 0 : i32
    %c0_i32_0 = arith.constant 0 : i32
    %c0_i32_1 = arith.constant 0 : i32
    return %c0_i32, %c0_i32_0 : i32, i32
  }
  func.func @transform_1(%arg0: i32) -> (i32, i32) {
    %c0_i32 = arith.constant 0 : i32
    %c0_i32_0 = arith.constant 0 : i32
    %c0_i32_1 = arith.constant 0 : i32
    return %c0_i32, %c0_i32_0 : i32, i32
  }
  func.func @transform_2(%arg0: i32) -> (i32, i32) {
    %c0_i32 = arith.constant 0 : i32
    %c0_i32_0 = arith.constant 0 : i32
    %c0_i32_1 = arith.constant 0 : i32
    return %c0_i32, %c0_i32_0 : i32, i32
  }
  func.func @transform_3(%arg0: i32) -> (i32, i32) {
    %c0_i32 = arith.constant 0 : i32
    %c0_i32_0 = arith.constant 0 : i32
    %c0_i32_1 = arith.constant 0 : i32
    return %c0_i32, %c0_i32_0 : i32, i32
  }
  func.func @transform_4(%arg0: i32) -> (i32, i32) {
    %c0_i32 = arith.constant 0 : i32
    %c0_i32_0 = arith.constant 0 : i32
    %c0_i32_1 = arith.constant 0 : i32
    return %c0_i32, %c0_i32_0 : i32, i32
  }
}

module attributes {stable_mosaic.version = 11 : i64} {
  func.func @convt_bn_relu_kernel(%arg0: i32, %arg1: memref<128x288xbf16, #tpu.memory_space<vmem>>, %arg2: memref<288x64xbf16, #tpu.memory_space<vmem>>, %arg3: memref<1x16xf32, #tpu.memory_space<vmem>>, %arg4: memref<1x16xf32, #tpu.memory_space<vmem>>, %arg5: memref<128x64xbf16, #tpu.memory_space<vmem>>) attributes {dimension_semantics = [#tpu.dimension_semantics<arbitrary>], iteration_bounds = array<i64: 1>, scalar_prefetch = 0 : i64, scratch_operands = 0 : i64, tpu.core_type = #tpu.core_type<tc>, window_params = [{pipeline_mode = #tpu.pipeline_mode<synchronous>, transform_indices = @transform_0, window_bounds = array<i64: 128, 288>}, {pipeline_mode = #tpu.pipeline_mode<synchronous>, transform_indices = @transform_1, window_bounds = array<i64: 288, 64>}, {pipeline_mode = #tpu.pipeline_mode<synchronous>, transform_indices = @transform_2, window_bounds = array<i64: 1, 16>}, {pipeline_mode = #tpu.pipeline_mode<synchronous>, transform_indices = @transform_3, window_bounds = array<i64: 1, 16>}, {pipeline_mode = #tpu.pipeline_mode<synchronous>, transform_indices = @transform_4, window_bounds = array<i64: 128, 64>}]} {
    %c0 = arith.constant 0 : index
    %c0_0 = arith.constant 0 : index
    %0 = vector.load %arg1[%c0, %c0_0] : memref<128x288xbf16, #tpu.memory_space<vmem>>, vector<128x288xbf16>
    %c0_1 = arith.constant 0 : index
    %c0_2 = arith.constant 0 : index
    %1 = vector.load %arg2[%c0_1, %c0_2] : memref<288x64xbf16, #tpu.memory_space<vmem>>, vector<288x64xbf16>
    %cst = arith.constant dense<0.000000e+00> : vector<128x64xf32>
    %2 = tpu.matmul %0, %1, %cst {dimension_numbers = #tpu.dot_dimension_numbers<[1], [0], [0], [1], [0, 0, 1, 1], [], []>} : vector<128x288xbf16>, vector<288x64xbf16>, vector<128x64xf32> -> vector<128x64xf32>
    %cst_3 = arith.constant dense<0.000000e+00> : vector<64xf32>
    %3 = vector.multi_reduction <add>, %2, %cst_3 [0] : vector<128x64xf32> to vector<64xf32>
    %4 = vector.shape_cast %3 : vector<64xf32> to vector<1x64xf32>
    %5 = vector.extract_strided_slice %4 {offsets = [0, 0], sizes = [1, 16], strides = [1, 1]} : vector<1x64xf32> to vector<1x16xf32>
    %cst_4 = arith.constant 0.000000e+00 : f32
    %6 = vector.broadcast %cst_4 : f32 to vector<1x16xf32>
    %7 = arith.addf %6, %5 : vector<1x16xf32>
    %8 = vector.extract_strided_slice %4 {offsets = [0, 16], sizes = [1, 16], strides = [1, 1]} : vector<1x64xf32> to vector<1x16xf32>
    %9 = arith.addf %7, %8 : vector<1x16xf32>
    %10 = vector.extract_strided_slice %4 {offsets = [0, 32], sizes = [1, 16], strides = [1, 1]} : vector<1x64xf32> to vector<1x16xf32>
    %11 = arith.addf %9, %10 : vector<1x16xf32>
    %12 = vector.extract_strided_slice %4 {offsets = [0, 48], sizes = [1, 16], strides = [1, 1]} : vector<1x64xf32> to vector<1x16xf32>
    %13 = arith.addf %11, %12 : vector<1x16xf32>
    %cst_5 = arith.constant 0.001953125 : f32
    %14 = vector.broadcast %cst_5 : f32 to vector<1x16xf32>
    %15 = arith.mulf %13, %14 : vector<1x16xf32>
    %16 = tpu.concatenate %15, %15, %15, %15 in 1 : vector<1x16xf32>, vector<1x16xf32>, vector<1x16xf32>, vector<1x16xf32> -> vector<1x64xf32>
    %17 = vector.broadcast %16 : vector<1x64xf32> to vector<128x64xf32>
    %18 = arith.subf %2, %17 : vector<128x64xf32>
    %19 = arith.mulf %18, %18 : vector<128x64xf32>
    %cst_6 = arith.constant dense<0.000000e+00> : vector<64xf32>
    %20 = vector.multi_reduction <add>, %19, %cst_6 [0] : vector<128x64xf32> to vector<64xf32>
    %21 = vector.shape_cast %20 : vector<64xf32> to vector<1x64xf32>
    %22 = vector.extract_strided_slice %21 {offsets = [0, 0], sizes = [1, 16], strides = [1, 1]} : vector<1x64xf32> to vector<1x16xf32>
    %cst_7 = arith.constant 0.000000e+00 : f32
    %23 = vector.broadcast %cst_7 : f32 to vector<1x16xf32>
    %24 = arith.addf %23, %22 : vector<1x16xf32>
    %25 = vector.extract_strided_slice %21 {offsets = [0, 16], sizes = [1, 16], strides = [1, 1]} : vector<1x64xf32> to vector<1x16xf32>
    %26 = arith.addf %24, %25 : vector<1x16xf32>
    %27 = vector.extract_strided_slice %21 {offsets = [0, 32], sizes = [1, 16], strides = [1, 1]} : vector<1x64xf32> to vector<1x16xf32>
    %28 = arith.addf %26, %27 : vector<1x16xf32>
    %29 = vector.extract_strided_slice %21 {offsets = [0, 48], sizes = [1, 16], strides = [1, 1]} : vector<1x64xf32> to vector<1x16xf32>
    %30 = arith.addf %28, %29 : vector<1x16xf32>
    %cst_8 = arith.constant 0.001953125 : f32
    %31 = vector.broadcast %cst_8 : f32 to vector<1x16xf32>
    %32 = arith.mulf %30, %31 : vector<1x16xf32>
    %c0_9 = arith.constant 0 : index
    %c0_10 = arith.constant 0 : index
    %33 = vector.load %arg3[%c0_9, %c0_10] : memref<1x16xf32, #tpu.memory_space<vmem>>, vector<1x16xf32>
    %cst_11 = arith.constant 9.99999974E-6 : f32
    %34 = vector.broadcast %cst_11 : f32 to vector<1x16xf32>
    %35 = arith.addf %32, %34 : vector<1x16xf32>
    %36 = math.rsqrt %35 : vector<1x16xf32>
    %37 = arith.mulf %33, %36 : vector<1x16xf32>
    %c0_12 = arith.constant 0 : index
    %c0_13 = arith.constant 0 : index
    %38 = vector.load %arg4[%c0_12, %c0_13] : memref<1x16xf32, #tpu.memory_space<vmem>>, vector<1x16xf32>
    %39 = arith.mulf %15, %37 : vector<1x16xf32>
    %40 = arith.subf %38, %39 : vector<1x16xf32>
    %41 = tpu.concatenate %37, %37, %37, %37 in 1 : vector<1x16xf32>, vector<1x16xf32>, vector<1x16xf32>, vector<1x16xf32> -> vector<1x64xf32>
    %42 = tpu.concatenate %40, %40, %40, %40 in 1 : vector<1x16xf32>, vector<1x16xf32>, vector<1x16xf32>, vector<1x16xf32> -> vector<1x64xf32>
    %43 = vector.broadcast %41 : vector<1x64xf32> to vector<128x64xf32>
    %44 = arith.mulf %2, %43 : vector<128x64xf32>
    %45 = vector.broadcast %42 : vector<1x64xf32> to vector<128x64xf32>
    %46 = arith.addf %44, %45 : vector<128x64xf32>
    %cst_14 = arith.constant 0.000000e+00 : f32
    %47 = vector.broadcast %cst_14 : f32 to vector<128x64xf32>
    %48 = arith.maximumf %46, %47 : vector<128x64xf32>
    %49 = arith.truncf %48 : vector<128x64xf32> to vector<128x64xbf16>
    %c0_15 = arith.constant 0 : index
    %c0_16 = arith.constant 0 : index
    %50 = vector.load %arg5[%c0_15, %c0_16] : memref<128x64xbf16, #tpu.memory_space<vmem>>, vector<128x64xbf16>
    tpu.vector_store %arg5[%c0_15, %c0_16], %49 {strides = array<i32>} : memref<128x64xbf16, #tpu.memory_space<vmem>>, vector<128x64xbf16>,
    return
  }
  func.func @transform_0(%arg0: i32) -> (i32, i32) {
    %c0_i32 = arith.constant 0 : i32
    %c0_i32_0 = arith.constant 0 : i32
    %c0_i32_1 = arith.constant 0 : i32
    return %c0_i32, %c0_i32_0 : i32, i32
  }
  func.func @transform_1(%arg0: i32) -> (i32, i32) {
    %c0_i32 = arith.constant 0 : i32
    %c0_i32_0 = arith.constant 0 : i32
    %c0_i32_1 = arith.constant 0 : i32
    return %c0_i32, %c0_i32_0 : i32, i32
  }
  func.func @transform_2(%arg0: i32) -> (i32, i32) {
    %c0_i32 = arith.constant 0 : i32
    %c0_i32_0 = arith.constant 0 : i32
    %c0_i32_1 = arith.constant 0 : i32
    return %c0_i32, %c0_i32_0 : i32, i32
  }
  func.func @transform_3(%arg0: i32) -> (i32, i32) {
    %c0_i32 = arith.constant 0 : i32
    %c0_i32_0 = arith.constant 0 : i32
    %c0_i32_1 = arith.constant 0 : i32
    return %c0_i32, %c0_i32_0 : i32, i32
  }
  func.func @transform_4(%arg0: i32) -> (i32, i32) {
    %c0_i32 = arith.constant 0 : i32
    %c0_i32_0 = arith.constant 0 : i32
    %c0_i32_1 = arith.constant 0 : i32
    return %c0_i32, %c0_i32_0 : i32, i32
  }
}

module attributes {stable_mosaic.version = 11 : i64} {
  func.func @convt_bn_relu_kernel(%arg0: i32, %arg1: memref<512x144xbf16, #tpu.memory_space<vmem>>, %arg2: memref<144x32xbf16, #tpu.memory_space<vmem>>, %arg3: memref<1x8xf32, #tpu.memory_space<vmem>>, %arg4: memref<1x8xf32, #tpu.memory_space<vmem>>, %arg5: memref<512x32xbf16, #tpu.memory_space<vmem>>) attributes {dimension_semantics = [#tpu.dimension_semantics<arbitrary>], iteration_bounds = array<i64: 1>, scalar_prefetch = 0 : i64, scratch_operands = 0 : i64, tpu.core_type = #tpu.core_type<tc>, window_params = [{pipeline_mode = #tpu.pipeline_mode<synchronous>, transform_indices = @transform_0, window_bounds = array<i64: 512, 144>}, {pipeline_mode = #tpu.pipeline_mode<synchronous>, transform_indices = @transform_1, window_bounds = array<i64: 144, 32>}, {pipeline_mode = #tpu.pipeline_mode<synchronous>, transform_indices = @transform_2, window_bounds = array<i64: 1, 8>}, {pipeline_mode = #tpu.pipeline_mode<synchronous>, transform_indices = @transform_3, window_bounds = array<i64: 1, 8>}, {pipeline_mode = #tpu.pipeline_mode<synchronous>, transform_indices = @transform_4, window_bounds = array<i64: 512, 32>}]} {
    %c0 = arith.constant 0 : index
    %c0_0 = arith.constant 0 : index
    %0 = vector.load %arg1[%c0, %c0_0] : memref<512x144xbf16, #tpu.memory_space<vmem>>, vector<512x144xbf16>
    %c0_1 = arith.constant 0 : index
    %c0_2 = arith.constant 0 : index
    %1 = vector.load %arg2[%c0_1, %c0_2] : memref<144x32xbf16, #tpu.memory_space<vmem>>, vector<144x32xbf16>
    %cst = arith.constant dense<0.000000e+00> : vector<512x32xf32>
    %2 = tpu.matmul %0, %1, %cst {dimension_numbers = #tpu.dot_dimension_numbers<[1], [0], [0], [1], [0, 0, 1, 1], [], []>} : vector<512x144xbf16>, vector<144x32xbf16>, vector<512x32xf32> -> vector<512x32xf32>
    %cst_3 = arith.constant dense<0.000000e+00> : vector<32xf32>
    %3 = vector.multi_reduction <add>, %2, %cst_3 [0] : vector<512x32xf32> to vector<32xf32>
    %4 = vector.shape_cast %3 : vector<32xf32> to vector<1x32xf32>
    %5 = vector.extract_strided_slice %4 {offsets = [0, 0], sizes = [1, 8], strides = [1, 1]} : vector<1x32xf32> to vector<1x8xf32>
    %cst_4 = arith.constant 0.000000e+00 : f32
    %6 = vector.broadcast %cst_4 : f32 to vector<1x8xf32>
    %7 = arith.addf %6, %5 : vector<1x8xf32>
    %8 = vector.extract_strided_slice %4 {offsets = [0, 8], sizes = [1, 8], strides = [1, 1]} : vector<1x32xf32> to vector<1x8xf32>
    %9 = arith.addf %7, %8 : vector<1x8xf32>
    %10 = vector.extract_strided_slice %4 {offsets = [0, 16], sizes = [1, 8], strides = [1, 1]} : vector<1x32xf32> to vector<1x8xf32>
    %11 = arith.addf %9, %10 : vector<1x8xf32>
    %12 = vector.extract_strided_slice %4 {offsets = [0, 24], sizes = [1, 8], strides = [1, 1]} : vector<1x32xf32> to vector<1x8xf32>
    %13 = arith.addf %11, %12 : vector<1x8xf32>
    %cst_5 = arith.constant 4.8828125E-4 : f32
    %14 = vector.broadcast %cst_5 : f32 to vector<1x8xf32>
    %15 = arith.mulf %13, %14 : vector<1x8xf32>
    %16 = tpu.concatenate %15, %15, %15, %15 in 1 : vector<1x8xf32>, vector<1x8xf32>, vector<1x8xf32>, vector<1x8xf32> -> vector<1x32xf32>
    %17 = vector.broadcast %16 : vector<1x32xf32> to vector<512x32xf32>
    %18 = arith.subf %2, %17 : vector<512x32xf32>
    %19 = arith.mulf %18, %18 : vector<512x32xf32>
    %cst_6 = arith.constant dense<0.000000e+00> : vector<32xf32>
    %20 = vector.multi_reduction <add>, %19, %cst_6 [0] : vector<512x32xf32> to vector<32xf32>
    %21 = vector.shape_cast %20 : vector<32xf32> to vector<1x32xf32>
    %22 = vector.extract_strided_slice %21 {offsets = [0, 0], sizes = [1, 8], strides = [1, 1]} : vector<1x32xf32> to vector<1x8xf32>
    %cst_7 = arith.constant 0.000000e+00 : f32
    %23 = vector.broadcast %cst_7 : f32 to vector<1x8xf32>
    %24 = arith.addf %23, %22 : vector<1x8xf32>
    %25 = vector.extract_strided_slice %21 {offsets = [0, 8], sizes = [1, 8], strides = [1, 1]} : vector<1x32xf32> to vector<1x8xf32>
    %26 = arith.addf %24, %25 : vector<1x8xf32>
    %27 = vector.extract_strided_slice %21 {offsets = [0, 16], sizes = [1, 8], strides = [1, 1]} : vector<1x32xf32> to vector<1x8xf32>
    %28 = arith.addf %26, %27 : vector<1x8xf32>
    %29 = vector.extract_strided_slice %21 {offsets = [0, 24], sizes = [1, 8], strides = [1, 1]} : vector<1x32xf32> to vector<1x8xf32>
    %30 = arith.addf %28, %29 : vector<1x8xf32>
    %cst_8 = arith.constant 4.8828125E-4 : f32
    %31 = vector.broadcast %cst_8 : f32 to vector<1x8xf32>
    %32 = arith.mulf %30, %31 : vector<1x8xf32>
    %c0_9 = arith.constant 0 : index
    %c0_10 = arith.constant 0 : index
    %33 = vector.load %arg3[%c0_9, %c0_10] : memref<1x8xf32, #tpu.memory_space<vmem>>, vector<1x8xf32>
    %cst_11 = arith.constant 9.99999974E-6 : f32
    %34 = vector.broadcast %cst_11 : f32 to vector<1x8xf32>
    %35 = arith.addf %32, %34 : vector<1x8xf32>
    %36 = math.rsqrt %35 : vector<1x8xf32>
    %37 = arith.mulf %33, %36 : vector<1x8xf32>
    %c0_12 = arith.constant 0 : index
    %c0_13 = arith.constant 0 : index
    %38 = vector.load %arg4[%c0_12, %c0_13] : memref<1x8xf32, #tpu.memory_space<vmem>>, vector<1x8xf32>
    %39 = arith.mulf %15, %37 : vector<1x8xf32>
    %40 = arith.subf %38, %39 : vector<1x8xf32>
    %41 = tpu.concatenate %37, %37, %37, %37 in 1 : vector<1x8xf32>, vector<1x8xf32>, vector<1x8xf32>, vector<1x8xf32> -> vector<1x32xf32>
    %42 = tpu.concatenate %40, %40, %40, %40 in 1 : vector<1x8xf32>, vector<1x8xf32>, vector<1x8xf32>, vector<1x8xf32> -> vector<1x32xf32>
    %43 = vector.broadcast %41 : vector<1x32xf32> to vector<512x32xf32>
    %44 = arith.mulf %2, %43 : vector<512x32xf32>
    %45 = vector.broadcast %42 : vector<1x32xf32> to vector<512x32xf32>
    %46 = arith.addf %44, %45 : vector<512x32xf32>
    %cst_14 = arith.constant 0.000000e+00 : f32
    %47 = vector.broadcast %cst_14 : f32 to vector<512x32xf32>
    %48 = arith.maximumf %46, %47 : vector<512x32xf32>
    %49 = arith.truncf %48 : vector<512x32xf32> to vector<512x32xbf16>
    %c0_15 = arith.constant 0 : index
    %c0_16 = arith.constant 0 : index
    %50 = vector.load %arg5[%c0_15, %c0_16] : memref<512x32xbf16, #tpu.memory_space<vmem>>, vector<512x32xbf16>
    tpu.vector_store %arg5[%c0_15, %c0_16], %49 {strides = array<i32>} : memref<512x32xbf16, #tpu.memory_space<vmem>>, vector<512x32xbf16>,
    return
  }
  func.func @transform_0(%arg0: i32) -> (i32, i32) {
    %c0_i32 = arith.constant 0 : i32
    %c0_i32_0 = arith.constant 0 : i32
    %c0_i32_1 = arith.constant 0 : i32
    return %c0_i32, %c0_i32_0 : i32, i32
  }
  func.func @transform_1(%arg0: i32) -> (i32, i32) {
    %c0_i32 = arith.constant 0 : i32
    %c0_i32_0 = arith.constant 0 : i32
    %c0_i32_1 = arith.constant 0 : i32
    return %c0_i32, %c0_i32_0 : i32, i32
  }
  func.func @transform_2(%arg0: i32) -> (i32, i32) {
    %c0_i32 = arith.constant 0 : i32
    %c0_i32_0 = arith.constant 0 : i32
    %c0_i32_1 = arith.constant 0 : i32
    return %c0_i32, %c0_i32_0 : i32, i32
  }
  func.func @transform_3(%arg0: i32) -> (i32, i32) {
    %c0_i32 = arith.constant 0 : i32
    %c0_i32_0 = arith.constant 0 : i32
    %c0_i32_1 = arith.constant 0 : i32
    return %c0_i32, %c0_i32_0 : i32, i32
  }
  func.func @transform_4(%arg0: i32) -> (i32, i32) {
    %c0_i32 = arith.constant 0 : i32
    %c0_i32_0 = arith.constant 0 : i32
    %c0_i32_1 = arith.constant 0 : i32
    return %c0_i32, %c0_i32_0 : i32, i32
  }
}

module attributes {stable_mosaic.version = 11 : i64} {
  func.func @convt_tanh_kernel(%arg0: i32, %arg1: memref<12x72xbf16, #tpu.memory_space<vmem>>, %arg2: memref<72x1024xbf16, #tpu.memory_space<vmem>>, %arg3: memref<12x1xf32, #tpu.memory_space<vmem>>, %arg4: memref<12x1024xf32, #tpu.memory_space<vmem>>) attributes {dimension_semantics = [#tpu.dimension_semantics<parallel>], iteration_bounds = array<i64: 2>, scalar_prefetch = 0 : i64, scratch_operands = 0 : i64, tpu.core_type = #tpu.core_type<tc>, window_params = [{pipeline_mode = #tpu.pipeline_mode<synchronous>, transform_indices = @transform_0, window_bounds = array<i64: 12, 72>}, {transform_indices = @transform_1, window_bounds = array<i64: 72, 1024>}, {pipeline_mode = #tpu.pipeline_mode<synchronous>, transform_indices = @transform_2, window_bounds = array<i64: 12, 1>}, {transform_indices = @transform_3, window_bounds = array<i64: 12, 1024>}]} {
    %c0 = arith.constant 0 : index
    %c0_0 = arith.constant 0 : index
    %0 = vector.load %arg1[%c0, %c0_0] : memref<12x72xbf16, #tpu.memory_space<vmem>>, vector<12x72xbf16>
    %c0_1 = arith.constant 0 : index
    %c0_2 = arith.constant 0 : index
    %1 = vector.load %arg2[%c0_1, %c0_2] : memref<72x1024xbf16, #tpu.memory_space<vmem>>, vector<72x1024xbf16>
    %cst = arith.constant dense<0.000000e+00> : vector<12x1024xf32>
    %2 = tpu.matmul %0, %1, %cst {dimension_numbers = #tpu.dot_dimension_numbers<[1], [0], [0], [1], [0, 0, 1, 1], [], []>} : vector<12x72xbf16>, vector<72x1024xbf16>, vector<12x1024xf32> -> vector<12x1024xf32>
    %c0_3 = arith.constant 0 : index
    %c0_4 = arith.constant 0 : index
    %3 = vector.load %arg3[%c0_3, %c0_4] : memref<12x1xf32, #tpu.memory_space<vmem>>, vector<12x1xf32>
    %4 = vector.broadcast %3 : vector<12x1xf32> to vector<12x1024xf32>
    %5 = arith.addf %2, %4 : vector<12x1024xf32>
    %6 = math.tanh %5 : vector<12x1024xf32>
    %c0_5 = arith.constant 0 : index
    %c0_6 = arith.constant 0 : index
    %7 = vector.load %arg4[%c0_5, %c0_6] : memref<12x1024xf32, #tpu.memory_space<vmem>>, vector<12x1024xf32>
    tpu.vector_store %arg4[%c0_5, %c0_6], %6 {strides = array<i32>} : memref<12x1024xf32, #tpu.memory_space<vmem>>, vector<12x1024xf32>,
    return
  }
  func.func @transform_0(%arg0: i32) -> (i32, i32) {
    %c0_i32 = arith.constant 0 : i32
    %c0_i32_0 = arith.constant 0 : i32
    %c0_i32_1 = arith.constant 0 : i32
    return %c0_i32, %c0_i32_0 : i32, i32
  }
  func.func @transform_1(%arg0: i32) -> (i32, i32) {
    %c0_i32 = arith.constant 0 : i32
    %c0_i32_0 = arith.constant 0 : i32
    return %c0_i32, %arg0 : i32, i32
  }
  func.func @transform_2(%arg0: i32) -> (i32, i32) {
    %c0_i32 = arith.constant 0 : i32
    %c0_i32_0 = arith.constant 0 : i32
    %c0_i32_1 = arith.constant 0 : i32
    return %c0_i32, %c0_i32_0 : i32, i32
  }
  func.func @transform_3(%arg0: i32) -> (i32, i32) {
    %c0_i32 = arith.constant 0 : i32
    %c0_i32_0 = arith.constant 0 : i32
    return %c0_i32, %arg0 : i32, i32
  }
}

</mosaic_0001>

<llo_original>
// kernel: generator_forward.5
$region0: #{generator_forward.5}
  #allocation0 [shape = 'u32[]', space=smem, size = 0x4, offset = 0x4, fixed_abs, tag = 'smem constant byte address 0x4 - core index']
  #allocation1 [shape = 'u32[144,128]{1,0:T(1,128)}', space=vmem, size = 0x12000, scoped, tag = 'internal scratch']
  %s0 = inlined_call_operand.vmem [shape: bf16[32,128], index: 0, kind: input, shape index: {}]
  %s1 = inlined_call_operand.vmem [shape: bf16[128,64], index: 1, kind: input, shape index: {}]
  %s2 = inlined_call_operand.hbm [shape: f32[1,64], index: 2, kind: input, shape index: {}]
  %s3 = inlined_call_operand.hbm [shape: f32[1,64], index: 3, kind: input, shape index: {}]
  %s4 = inlined_call_operand.vmem [shape: bf16[32,64], index: 4, kind: output, shape index: {}]
  %s5 = sld [smem:[#allocation0]]
  $region34: #{generator_forward.5} parent=0
    _
  %s7 = ssub.s32 1, %s5
  %s8 = scalar_select 0, %s7, %s5
  $region1: #{generator_forward.5} parent=0
    #allocation2 [shape = 'u8[512]{0}', space=vmem, size = 0x400, scoped, tag = 'input window, operand 2, single buffered']
    #allocation3 [shape = 's32[1]{0}', space=sflag, size = 0x4, scoped, tag = 'scoped memory for generator_forward.5']
    #allocation4 [shape = 'u8[512]{0}', space=vmem, size = 0x400, scoped, tag = 'input window, operand 3, single buffered']
    #allocation5 [shape = 's32[1]{0}', space=sflag, size = 0x4, scoped, tag = 'scoped memory for generator_forward.5']
    %9 = vsyncpa [#allocation3], 0
    %10 = vsyncpa [#allocation5], 0
    // Predicated region
    $region2: #{generator_forward.5} parent=1 // pred_check
      _
    $region3: #{generator_forward.5} parent=1 // pred_check_branch
      %12 = sbr.rel (0) target = $region5
    $region4: #{generator_forward.5} parent=1 // pred_region
      _
    $region5: #{generator_forward.5} parent=1 // pred_fallthru
      _
    // Predicated region
    $region6: #{generator_forward.5} parent=1 // pred_check
      _
    $region7: #{generator_forward.5} parent=1 // pred_check_branch
      %14 = sbr.rel (0) target = $region9
    $region8: #{generator_forward.5} parent=1 // pred_region
      _
    $region9: #{generator_forward.5} parent=1 // pred_fallthru
      _
    // Predicated region
    $region10: #{generator_forward.5} parent=1 // pred_check
      _
    $region11: #{generator_forward.5} parent=1 // pred_check_branch
      %16 = sbr.rel (0) target = $region13
    $region12: #{generator_forward.5} parent=1 // pred_region
      %s18 = ssub.s32 16, 16
      %19 = vsyncadd [#allocation3], %s18
      %s21 = sshll.u32 [#allocation2], 4
      %s22 = int_to_ptr.vmem [resolvable:$true] %s21
      %24 = dma.hbm_to_vmem [thread:$0]  %s2, 16, %s22, [#allocation3]
    $region13: #{generator_forward.5} parent=1 // pred_fallthru
      _
    // Predicated region
    $region14: #{generator_forward.5} parent=1 // pred_check
      _
    $region15: #{generator_forward.5} parent=1 // pred_check_branch
      %26 = sbr.rel (0) target = $region17
    $region16: #{generator_forward.5} parent=1 // pred_region
      %s28 = ssub.s32 16, 16
      %29 = vsyncadd [#allocation5], %s28
      %s31 = sshll.u32 [#allocation4], 4
      %s32 = int_to_ptr.vmem [resolvable:$true] %s31
      %34 = dma.hbm_to_vmem [thread:$0]  %s3, 16, %s32, [#allocation5]
    $region17: #{generator_forward.5} parent=1 // pred_fallthru
      _
    // Predicated region
    $region18: #{generator_forward.5} parent=1 // pred_check
      _
    $region19: #{generator_forward.5} parent=1 // pred_check_branch
      %36 = sbr.rel (0) target = $region21
    $region20: #{generator_forward.5} parent=1 // pred_region
      %37 = dma.done [#allocation3], 16
    $region21: #{generator_forward.5} parent=1 // pred_fallthru
      _
    // Predicated region
    $region22: #{generator_forward.5} parent=1 // pred_check
      _
    $region23: #{generator_forward.5} parent=1 // pred_check_branch
      %39 = sbr.rel (0) target = $region25
    $region24: #{generator_forward.5} parent=1 // pred_region
      %40 = dma.done [#allocation5], 16
    $region25: #{generator_forward.5} parent=1 // pred_fallthru
      _
    %v42 = vld [vmem:[%s0] sm:$0xf]
    %v43 = vld [vmem:[%s0 + $0x4] sm:$0xf]
    %v44 = vld [vmem:[%s0 + $0x8] sm:$0xf]
    %v45 = vld [vmem:[%s0 + $0xc] sm:$0xf]
    %v46 = vld [vmem:[%s1] sm:$0xf]
    %v47 = vld [vmem:[%s1 + $0x4] sm:$0xf]
    %v48 = vld [vmem:[%s1 + $0x8] sm:$0xf]
    %v49 = vld [vmem:[%s1 + $0xc] sm:$0xf]
    %v50 = vld [vmem:[%s1 + $0x10] sm:$0xf]
    %v51 = vld [vmem:[%s1 + $0x14] sm:$0xf]
    %v52 = vld [vmem:[%s1 + $0x18] sm:$0xf]
    %v53 = vld [vmem:[%s1 + $0x1c] sm:$0xf]
    %v54 = vld [vmem:[%s1 + $0x20] sm:$0xf]
    %v55 = vld [vmem:[%s1 + $0x24] sm:$0xf]
    %v56 = vld [vmem:[%s1 + $0x28] sm:$0xf]
    %v57 = vld [vmem:[%s1 + $0x2c] sm:$0xf]
    %v58 = vld [vmem:[%s1 + $0x30] sm:$0xf]
    %v59 = vld [vmem:[%s1 + $0x34] sm:$0xf]
    %v60 = vld [vmem:[%s1 + $0x38] sm:$0xf]
    %v61 = vld [vmem:[%s1 + $0x3c] sm:$0xf]
    %v66 = vunpack.c.l.b16 %v42
    %v67 = vunpack.c.l.b16 %v43
    %v68 = vunpack.c.l.b16 %v44
    %v69 = vunpack.c.l.b16 %v45
    %v70 = vpack.c.b16 %v67, %v66
    %v71 = vpack.c.b16 %v69, %v68
    %v90 = vunpack.c.l.b16 %v46
    %v91 = vunpack.c.l.b16 %v47
    %v92 = vunpack.c.l.b16 %v48
    %v93 = vunpack.c.l.b16 %v49
    %v94 = vunpack.c.l.b16 %v50
    %v95 = vunpack.c.l.b16 %v51
    %v96 = vunpack.c.l.b16 %v52
    %v97 = vunpack.c.l.b16 %v53
    %v98 = vunpack.c.l.b16 %v54
    %v99 = vunpack.c.l.b16 %v55
    %v100 = vunpack.c.l.b16 %v56
    %v101 = vunpack.c.l.b16 %v57
    %v102 = vunpack.c.l.b16 %v58
    %v103 = vunpack.c.l.b16 %v59
    %v104 = vunpack.c.l.b16 %v60
    %v105 = vunpack.c.l.b16 %v61
    %v106 = vpack.c.b16 %v91, %v90
    %v107 = vpack.c.b16 %v93, %v92
    %v108 = vpack.c.b16 %v95, %v94
    %v109 = vpack.c.b16 %v97, %v96
    %v110 = vpack.c.b16 %v99, %v98
    %v111 = vpack.c.b16 %v101, %v100
    %v112 = vpack.c.b16 %v103, %v102
    %v113 = vpack.c.b16 %v105, %v104
    %122 = vmatprep.subr.bf16.mxu0 0
    %123 = vmatpush1.bf16.msra.mxu0 %v106
    %124 = vmatprep.subr.bf16.mxu0 0
    %125 = vmatpush1.bf16.msra.mxu0 %v107
    %126 = vmatprep.subr.bf16.mxu0 0
    %127 = vmatpush1.bf16.msra.mxu0 %v108
    %128 = vmatprep.subr.bf16.mxu0 0
    %129 = vmatpush1.bf16.msra.mxu0 %v109
    %130 = vmatprep.subr.bf16.mxu0 0
    %131 = vmatpush1.bf16.msra.mxu0 %v110
    %132 = vmatprep.subr.bf16.mxu0 0
    %133 = vmatpush1.bf16.msra.mxu0 %v111
    %134 = vmatprep.subr.bf16.mxu0 0
    %135 = vmatpush1.bf16.msra.mxu0 %v112
    %136 = vmatprep.subr.bf16.mxu0 0
    %137 = vmatpush1.bf16.msra.mxu0 %v113
    %138 = vmatprep.subr.bf16.mxu0 0
    %139 = vmatpush1.bf16.msra.mxu0 0
    %140 = vmatprep.subr.bf16.mxu0 0
    %141 = vmatpush1.bf16.msra.mxu0 0
    %142 = vmatprep.subr.bf16.mxu0 0
    %143 = vmatpush1.bf16.msra.mxu0 0
    %144 = vmatprep.subr.bf16.mxu0 0
    %145 = vmatpush1.bf16.msra.mxu0 0
    %146 = vmatprep.subr.bf16.mxu0 0
    %147 = vmatpush1.bf16.msra.mxu0 0
    %148 = vmatprep.subr.bf16.mxu0 0
    %149 = vmatpush1.bf16.msra.mxu0 0
    %150 = vmatprep.subr.bf16.mxu0 0
    %151 = vmatpush1.bf16.msra.mxu0 0
    %152 = vmatprep.subr.bf16.mxu0 0
    %153 = vmatpush1.bf16.msra.mxu0 0
    %154 = vmatprep.mubr.bf16.mxu0 0
    %155 = vmatmul.mubr.bf16.gmra.mrb[0].mxu0 %v70
    %v156 = vpop.f32.mrb[0].mxu0
    %v157 = vadd.f32 0.0, %v156
    %v158 = vpop.f32.mrb[0].mxu0
    %v159 = vpop.f32.mrb[0].mxu0
    %v160 = vadd.f32 0.0, %v159
    %v161 = vpop.f32.mrb[0].mxu0
    %162 = vmatprep.mubr.bf16.mxu0 0
    %163 = vmatmul.mubr.bf16.gmra.mrb[0].mxu0 %v71
    %v164 = vpop.f32.mrb[0].mxu0
    %v165 = vadd.f32 0.0, %v164
    %v166 = vpop.f32.mrb[0].mxu0
    %v167 = vpop.f32.mrb[0].mxu0
    %v168 = vadd.f32 0.0, %v167
    %v169 = vpop.f32.mrb[0].mxu0
    %170 = vdwg.mxu0
    %vm171 = vcmask 523264
    %v172 = vsel %vm171, %v157, 0.0
    %v173 = vsel %vm171, %v160, 0.0
    %v174 = vadd.f32 %v172, %v173
    %v175 = vsel %vm171, %v165, 0.0
    %v176 = vadd.f32 %v174, %v175
    %v177 = vsel %vm171, %v168, 0.0
    %v178 = vadd.f32 %v176, %v177
    %v179 = vrot.slane %v178, 4
    %v180 = vadd.f32 %v178, %v179
    %v181 = vrot.slane %v180, 2
    %v182 = vadd.f32 %v180, %v181
    %v183 = vrot.slane %v182, 1
    %v184 = vadd.f32 %v182, %v183
    %v185 = vmul.f32 %v184, 0.03125
    %v186 = vsub.f32 %v157, %v185
    %v187 = vsub.f32 %v160, %v185
    %v188 = vsub.f32 %v165, %v185
    %v189 = vsub.f32 %v168, %v185
    %v190 = vmul.f32 %v186, %v186
    %v191 = vmul.f32 %v187, %v187
    %v192 = vmul.f32 %v188, %v188
    %v193 = vmul.f32 %v189, %v189
    %v194 = vsel %vm171, %v190, 0.0
    %v195 = vsel %vm171, %v191, 0.0
    %v196 = vadd.f32 %v194, %v195
    %v197 = vsel %vm171, %v192, 0.0
    %v198 = vadd.f32 %v196, %v197
    %v199 = vsel %vm171, %v193, 0.0
    %v200 = vadd.f32 %v198, %v199
    %v201 = vrot.slane %v200, 4
    %v202 = vadd.f32 %v200, %v201
    %v203 = vrot.slane %v202, 2
    %v204 = vadd.f32 %v202, %v203
    %v205 = vrot.slane %v204, 1
    %v206 = vadd.f32 %v204, %v205
    %v207 = vmul.f32 %v206, 0.03125
    %v208 = vld [vmem:[#allocation2] sm:$0x1]
    %v209 = vadd.f32 %v207, 1e-05
    %v210 = vrsqrt.pop %v209
    %v211 = vmul.f32 %v208, %v210
    %v212 = vld [vmem:[#allocation4] sm:$0x1]
    %v213 = vmul.f32 %v185, %v211
    %v214 = vsub.f32 %v212, %v213
    %v216 = vlaneseq
    %v217 = vshrl.u32 %v216, 7
    %v218 = vsub.s32 0, %v217
    %v219 = vrot.slane %v211, %v218
    %v221 = vmul.f32 %v157, %v219
    %v222 = vmul.f32 %v160, %v219
    %v223 = vmul.f32 %v165, %v219
    %v224 = vmul.f32 %v168, %v219
    %v226 = vlaneseq
    %v227 = vshrl.u32 %v226, 7
    %v228 = vsub.s32 0, %v227
    %v229 = vrot.slane %v214, %v228
    %v231 = vadd.f32 %v221, %v229
    %v232 = vadd.f32 %v222, %v229
    %v233 = vadd.f32 %v223, %v229
    %v234 = vadd.f32 %v224, %v229
    %v235 = vmax.f32 %v231, 0.0
    %v236 = vmax.f32 %v232, 0.0
    %v237 = vmax.f32 %v233, 0.0
    %v238 = vmax.f32 %v234, 0.0
    %v239 = vpack.c.bf16 %v236, %v235
    %v240 = vpack.c.bf16 %v238, %v237
    %v243 = vunpack.c.l.b16 %v239
    %v244 = vunpack.c.h.b16 %v239
    %v245 = vunpack.c.l.b16 %v240
    %v246 = vunpack.c.h.b16 %v240
    %v247 = vpack.c.b16 %v243, %v243
    %v248 = vpack.c.b16 %v244, %v244
    %v249 = vpack.c.b16 %v245, %v245
    %v250 = vpack.c.b16 %v246, %v246
    %vm255 = vcmask 519168
    %256 = vst.msk [vmem:[%s4] sm:$0xf] %vm255, %v247
    %257 = vst.msk [vmem:[%s4 + $0x4] sm:$0xf] %vm255, %v248
    %258 = vst.msk [vmem:[%s4 + $0x8] sm:$0xf] %vm255, %v249
    %259 = vst.msk [vmem:[%s4 + $0xc] sm:$0xf] %vm255, %v250
    // Predicated region
    $region26: #{generator_forward.5} parent=1 // pred_check
      _
    $region27: #{generator_forward.5} parent=1 // pred_check_branch
      %261 = sbr.rel (0) target = $region29
    $region28: #{generator_forward.5} parent=1 // pred_region
      _
    $region29: #{generator_forward.5} parent=1 // pred_fallthru
      _
    // Predicated region
    $region30: #{generator_forward.5} parent=1 // pred_check
      _
    $region31: #{generator_forward.5} parent=1 // pred_check_branch
      %263 = sbr.rel (0) target = $region33
    $region32: #{generator_forward.5} parent=1 // pred_region
      _
    $region33: #{generator_forward.5} parent=1 // pred_fallthru
      _
    %264 = vsyncpa [#allocation3], 1
    %265 = vsyncpa [#allocation5], 1

// kernel: generator_forward.6
$region0: #{generator_forward.6}
  #allocation0 [shape = 'u32[]', space=smem, size = 0x4, offset = 0x4, fixed_abs, tag = 'smem constant byte address 0x4 - core index']
  #allocation1 [shape = 'u32[144,128]{1,0:T(1,128)}', space=vmem, size = 0x12000, scoped, tag = 'internal scratch']
  %s0 = inlined_call_operand.vmem [shape: bf16[32,576], index: 0, kind: input, shape index: {}]
  %s1 = inlined_call_operand.hbm [shape: bf16[576,128], index: 1, kind: input, shape index: {}]
  %s2 = inlined_call_operand.hbm [shape: f32[1,32], index: 2, kind: input, shape index: {}]
  %s3 = inlined_call_operand.hbm [shape: f32[1,32], index: 3, kind: input, shape index: {}]
  %s4 = inlined_call_operand.vmem [shape: bf16[32,128], index: 4, kind: output, shape index: {}]
  %s5 = sld [smem:[#allocation0]]
  $region38: #{generator_forward.6} parent=0
    _
  %s7 = ssub.s32 1, %s5
  %s8 = scalar_select 0, %s7, %s5
  $region1: #{generator_forward.6} parent=0
    #allocation2 [shape = 'u8[147456]{0}', space=vmem, size = 0x24000, scoped, tag = 'input window, operand 1, single buffered']
    #allocation3 [shape = 's32[1]{0}', space=sflag, size = 0x4, scoped, tag = 'scoped memory for generator_forward.6']
    #allocation4 [shape = 'u8[512]{0}', space=vmem, size = 0x400, scoped, tag = 'input window, operand 2, single buffered']
    #allocation5 [shape = 's32[1]{0}', space=sflag, size = 0x4, scoped, tag = 'scoped memory for generator_forward.6']
    #allocation6 [shape = 'u8[512]{0}', space=vmem, size = 0x400, scoped, tag = 'input window, operand 3, single buffered']
    %9 = vsyncpa [#allocation3], 0
    %10 = vsyncpa [#allocation5], 0
    // Predicated region
    $region2: #{generator_forward.6} parent=1 // pred_check
      _
    $region3: #{generator_forward.6} parent=1 // pred_check_branch
      %12 = sbr.rel (0) target = $region5
    $region4: #{generator_forward.6} parent=1 // pred_region
      _
    $region5: #{generator_forward.6} parent=1 // pred_fallthru
      _
    // Predicated region
    $region6: #{generator_forward.6} parent=1 // pred_check
      _
    $region7: #{generator_forward.6} parent=1 // pred_check_branch
      %14 = sbr.rel (0) target = $region9
    $region8: #{generator_forward.6} parent=1 // pred_region
      %s16 = ssub.s32 4608, 4608
      %17 = vsyncadd [#allocation3], %s16
      %s18 = sshll.u32 [#allocation2], 4
      %s19 = int_to_ptr.vmem [resolvable:$true] %s18
      %24 = dma.hbm_to_vmem [thread:$0]  %s1, 4608, %s19, [#allocation3], 64, 64, 4
    $region9: #{generator_forward.6} parent=1 // pred_fallthru
      _
    // Predicated region
    $region10: #{generator_forward.6} parent=1 // pred_check
      _
    $region11: #{generator_forward.6} parent=1 // pred_check_branch
      %26 = sbr.rel (0) target = $region13
    $region12: #{generator_forward.6} parent=1 // pred_region
      %s28 = ssub.s32 16, 16
      %29 = vsyncadd [#allocation5], %s28
      %s31 = sshll.u32 [#allocation4], 4
      %s32 = int_to_ptr.vmem [resolvable:$true] %s31
      %34 = dma.hbm_to_vmem [thread:$0]  %s2, 16, %s32, [#allocation5]
    $region13: #{generator_forward.6} parent=1 // pred_fallthru
      _
    // Predicated region
    $region14: #{generator_forward.6} parent=1 // pred_check
      _
    $region15: #{generator_forward.6} parent=1 // pred_check_branch
      %36 = sbr.rel (0) target = $region17
    $region16: #{generator_forward.6} parent=1 // pred_region
      %s38 = ssub.s32 16, 16
      %39 = vsyncadd [#allocation5], %s38
      %s41 = sshll.u32 [#allocation6], 4
      %s42 = int_to_ptr.vmem [resolvable:$true] %s41
      %44 = dma.hbm_to_vmem [thread:$0]  %s3, 16, %s42, [#allocation5]
    $region17: #{generator_forward.6} parent=1 // pred_fallthru
      _
    // Predicated region
    $region18: #{generator_forward.6} parent=1 // pred_check
      _
    $region19: #{generator_forward.6} parent=1 // pred_check_branch
      %46 = sbr.rel (0) target = $region21
    $region20: #{generator_forward.6} parent=1 // pred_region
      %47 = dma.done [#allocation3], 4608
    $region21: #{generator_forward.6} parent=1 // pred_fallthru
      _
    // Predicated region
    $region22: #{generator_forward.6} parent=1 // pred_check
      _
    $region23: #{generator_forward.6} parent=1 // pred_check_branch
      %49 = sbr.rel (0) target = $region25
    $region24: #{generator_forward.6} parent=1 // pred_region
      %50 = dma.done [#allocation5], 16
    $region25: #{generator_forward.6} parent=1 // pred_fallthru
      _
    // Predicated region
    $region26: #{generator_forward.6} parent=1 // pred_check
      _
    $region27: #{generator_forward.6} parent=1 // pred_check_branch
      %52 = sbr.rel (0) target = $region29
    $region28: #{generator_forward.6} parent=1 // pred_region
      %53 = dma.done [#allocation5], 16
    $region29: #{generator_forward.6} parent=1 // pred_fallthru
      _
    %v55 = vld [vmem:[%s0] sm:$0xff]
    %v56 = vld [vmem:[%s0 + $0x8] sm:$0xff]
    %v57 = vld [vmem:[%s0 + $0x10] sm:$0xf]
    %v58 = vld [vmem:[%s0 + $0x14] sm:$0xff]
    %v59 = vld [vmem:[%s0 + $0x1c] sm:$0xff]
    %v60 = vld [vmem:[%s0 + $0x24] sm:$0xf]
    %v61 = vld [vmem:[%s0 + $0x28] sm:$0xff]
    %v62 = vld [vmem:[%s0 + $0x30] sm:$0xff]
    %v63 = vld [vmem:[%s0 + $0x38] sm:$0xf]
    %v64 = vld [vmem:[%s0 + $0x3c] sm:$0xff]
    %v65 = vld [vmem:[%s0 + $0x44] sm:$0xff]
    %v66 = vld [vmem:[%s0 + $0x4c] sm:$0xf]
    %v67 = vld [vmem:[#allocation2] sm:$0xf]
    %v68 = vld [vmem:[#allocation2 + $0x4] sm:$0xf]
    %v69 = vld [vmem:[#allocation2 + $0x8] sm:$0xf]
    %v70 = vld [vmem:[#allocation2 + $0xc] sm:$0xf]
    %v71 = vld [vmem:[#allocation2 + $0x10] sm:$0xf]
    %v72 = vld [vmem:[#allocation2 + $0x14] sm:$0xf]
    %v73 = vld [vmem:[#allocation2 + $0x18] sm:$0xf]
    %v74 = vld [vmem:[#allocation2 + $0x1c] sm:$0xf]
    %v75 = vld [vmem:[#allocation2 + $0x20] sm:$0xf]
    %v76 = vld [vmem:[#allocation2 + $0x24] sm:$0xf]
    %v77 = vld [vmem:[#allocation2 + $0x28] sm:$0xf]
    %v78 = vld [vmem:[#allocation2 + $0x2c] sm:$0xf]
    %v79 = vld [vmem:[#allocation2 + $0x30] sm:$0xf]
    %v80 = vld [vmem:[#allocation2 + $0x34] sm:$0xf]
    %v81 = vld [vmem:[#allocation2 + $0x38] sm:$0xf]
    %v82 = vld [vmem:[#allocation2 + $0x3c] sm:$0xf]
    %v83 = vld [vmem:[#allocation2 + $0x40] sm:$0xf]
    %v84 = vld [vmem:[#allocation2 + $0x44] sm:$0xf]
    %v85 = vld [vmem:[#allocation2 + $0x48] sm:$0xf]
    %v86 = vld [vmem:[#allocation2 + $0x4c] sm:$0xf]
    %v87 = vld [vmem:[#allocation2 + $0x50] sm:$0xf]
    %v88 = vld [vmem:[#allocation2 + $0x54] sm:$0xf]
    %v89 = vld [vmem:[#allocation2 + $0x58] sm:$0xf]
    %v90 = vld [vmem:[#allocation2 + $0x5c] sm:$0xf]
    %v91 = vld [vmem:[#allocation2 + $0x60] sm:$0xf]
    %v92 = vld [vmem:[#allocation2 + $0x64] sm:$0xf]
    %v93 = vld [vmem:[#allocation2 + $0x68] sm:$0xf]
    %v94 = vld [vmem:[#allocation2 + $0x6c] sm:$0xf]
    %v95 = vld [vmem:[#allocation2 + $0x70] sm:$0xf]
    %v96 = vld [vmem:[#allocation2 + $0x74] sm:$0xf]
    %v97 = vld [vmem:[#allocation2 + $0x78] sm:$0xf]
    %v98 = vld [vmem:[#allocation2 + $0x7c] sm:$0xf]
    %v99 = vld [vmem:[#allocation2 + $0x80] sm:$0xf]
    %v100 = vld [vmem:[#allocation2 + $0x84] sm:$0xf]
    %v101 = vld [vmem:[#allocation2 + $0x88] sm:$0xf]
    %v102 = vld [vmem:[#allocation2 + $0x8c] sm:$0xf]
    %v103 = vld [vmem:[#allocation2 + $0x90] sm:$0xf]
    %v104 = vld [vmem:[#allocation2 + $0x94] sm:$0xf]
    %v105 = vld [vmem:[#allocation2 + $0x98] sm:$0xf]
    %v106 = vld [vmem:[#allocation2 + $0x9c] sm:$0xf]
    %v107 = vld [vmem:[#allocation2 + $0xa0] sm:$0xf]
    %v108 = vld [vmem:[#allocation2 + $0xa4] sm:$0xf]
    %v109 = vld [vmem:[#allocation2 + $0xa8] sm:$0xf]
    %v110 = vld [vmem:[#allocation2 + $0xac] sm:$0xf]
    %v111 = vld [vmem:[#allocation2 + $0xb0] sm:$0xf]
    %v112 = vld [vmem:[#allocation2 + $0xb4] sm:$0xf]
    %v113 = vld [vmem:[#allocation2 + $0xb8] sm:$0xf]
    %v114 = vld [vmem:[#allocation2 + $0xbc] sm:$0xf]
    %v115 = vld [vmem:[#allocation2 + $0xc0] sm:$0xf]
    %v116 = vld [vmem:[#allocation2 + $0xc4] sm:$0xf]
    %v117 = vld [vmem:[#allocation2 + $0xc8] sm:$0xf]
    %v118 = vld [vmem:[#allocation2 + $0xcc] sm:$0xf]
    %v119 = vld [vmem:[#allocation2 + $0xd0] sm:$0xf]
    %v120 = vld [vmem:[#allocation2 + $0xd4] sm:$0xf]
    %v121 = vld [vmem:[#allocation2 + $0xd8] sm:$0xf]
    %v122 = vld [vmem:[#allocation2 + $0xdc] sm:$0xf]
    %v123 = vld [vmem:[#allocation2 + $0xe0] sm:$0xf]
    %v124 = vld [vmem:[#allocation2 + $0xe4] sm:$0xf]
    %v125 = vld [vmem:[#allocation2 + $0xe8] sm:$0xf]
    %v126 = vld [vmem:[#allocation2 + $0xec] sm:$0xf]
    %v127 = vld [vmem:[#allocation2 + $0xf0] sm:$0xf]
    %v128 = vld [vmem:[#allocation2 + $0xf4] sm:$0xf]
    %v129 = vld [vmem:[#allocation2 + $0xf8] sm:$0xf]
    %v130 = vld [vmem:[#allocation2 + $0xfc] sm:$0xf]
    %v131 = vld [vmem:[#allocation2 + $0x100] sm:$0xf]
    %v132 = vld [vmem:[#allocation2 + $0x104] sm:$0xf]
    %v133 = vld [vmem:[#allocation2 + $0x108] sm:$0xf]
    %v134 = vld [vmem:[#allocation2 + $0x10c] sm:$0xf]
    %v135 = vld [vmem:[#allocation2 + $0x110] sm:$0xf]
    %v136 = vld [vmem:[#allocation2 + $0x114] sm:$0xf]
    %v137 = vld [vmem:[#allocation2 + $0x118] sm:$0xf]
    %v138 = vld [vmem:[#allocation2 + $0x11c] sm:$0xf]
    %v151 = vunpack.c.l.b16 %v55
    %v152 = vunpack.c.h.b16 %v55
    %v153 = vunpack.c.l.b16 %v56
    %v154 = vunpack.c.h.b16 %v56
    %v155 = vunpack.c.l.b16 %v57
    %v156 = vunpack.c.l.b16 %v58
    %v157 = vunpack.c.h.b16 %v58
    %v158 = vunpack.c.l.b16 %v59
    %v159 = vunpack.c.h.b16 %v59
    %v160 = vunpack.c.l.b16 %v60
    %v161 = vunpack.c.l.b16 %v61
    %v162 = vunpack.c.h.b16 %v61
    %v163 = vunpack.c.l.b16 %v62
    %v164 = vunpack.c.h.b16 %v62
    %v165 = vunpack.c.l.b16 %v63
    %v166 = vunpack.c.l.b16 %v64
    %v167 = vunpack.c.h.b16 %v64
    %v168 = vunpack.c.l.b16 %v65
    %v169 = vunpack.c.h.b16 %v65
    %v170 = vunpack.c.l.b16 %v66
    %v171 = vpack.c.b16 %v156, %v151
    %v172 = vpack.c.b16 %v157, %v152
    %v173 = vpack.c.b16 %v158, %v153
    %v174 = vpack.c.b16 %v159, %v154
    %v175 = vpack.c.b16 %v160, %v155
    %v176 = vpack.c.b16 %v166, %v161
    %v177 = vpack.c.b16 %v167, %v162
    %v178 = vpack.c.b16 %v168, %v163
    %v179 = vpack.c.b16 %v169, %v164
    %v180 = vpack.c.b16 %v170, %v165
    %v261 = vunpack.c.l.b16 %v67
    %v262 = vunpack.c.l.b16 %v68
    %v263 = vunpack.c.l.b16 %v69
    %v264 = vunpack.c.l.b16 %v70
    %v265 = vunpack.c.l.b16 %v71
    %v266 = vunpack.c.l.b16 %v72
    %v267 = vunpack.c.l.b16 %v73
    %v268 = vunpack.c.l.b16 %v74
    %v269 = vunpack.c.l.b16 %v75
    %v270 = vunpack.c.l.b16 %v76
    %v271 = vunpack.c.l.b16 %v77
    %v272 = vunpack.c.l.b16 %v78
    %v273 = vunpack.c.l.b16 %v79
    %v274 = vunpack.c.l.b16 %v80
    %v275 = vunpack.c.l.b16 %v81
    %v276 = vunpack.c.l.b16 %v82
    %v277 = vunpack.c.l.b16 %v83
    %v278 = vunpack.c.l.b16 %v84
    %v279 = vunpack.c.l.b16 %v85
    %v280 = vunpack.c.l.b16 %v86
    %v281 = vunpack.c.l.b16 %v87
    %v282 = vunpack.c.l.b16 %v88
    %v283 = vunpack.c.l.b16 %v89
    %v284 = vunpack.c.l.b16 %v90
    %v285 = vunpack.c.l.b16 %v91
    %v286 = vunpack.c.l.b16 %v92
    %v287 = vunpack.c.l.b16 %v93
    %v288 = vunpack.c.l.b16 %v94
    %v289 = vunpack.c.l.b16 %v95
    %v290 = vunpack.c.l.b16 %v96
    %v291 = vunpack.c.l.b16 %v97
    %v292 = vunpack.c.l.b16 %v98
    %v293 = vunpack.c.l.b16 %v99
    %v294 = vunpack.c.l.b16 %v100
    %v295 = vunpack.c.l.b16 %v101
    %v296 = vunpack.c.l.b16 %v102
    %v297 = vunpack.c.l.b16 %v103
    %v298 = vunpack.c.l.b16 %v104
    %v299 = vunpack.c.l.b16 %v105
    %v300 = vunpack.c.l.b16 %v106
    %v301 = vunpack.c.l.b16 %v107
    %v302 = vunpack.c.l.b16 %v108
    %v303 = vunpack.c.l.b16 %v109
    %v304 = vunpack.c.l.b16 %v110
    %v305 = vunpack.c.l.b16 %v111
    %v306 = vunpack.c.l.b16 %v112
    %v307 = vunpack.c.l.b16 %v113
    %v308 = vunpack.c.l.b16 %v114
    %v309 = vunpack.c.l.b16 %v115
    %v310 = vunpack.c.l.b16 %v116
    %v311 = vunpack.c.l.b16 %v117
    %v312 = vunpack.c.l.b16 %v118
    %v313 = vunpack.c.l.b16 %v119
    %v314 = vunpack.c.l.b16 %v120
    %v315 = vunpack.c.l.b16 %v121
    %v316 = vunpack.c.l.b16 %v122
    %v317 = vunpack.c.l.b16 %v123
    %v318 = vunpack.c.l.b16 %v124
    %v319 = vunpack.c.l.b16 %v125
    %v320 = vunpack.c.l.b16 %v126
    %v321 = vunpack.c.l.b16 %v127
    %v322 = vunpack.c.l.b16 %v128
    %v323 = vunpack.c.l.b16 %v129
    %v324 = vunpack.c.l.b16 %v130
    %v325 = vunpack.c.l.b16 %v131
    %v326 = vunpack.c.l.b16 %v132
    %v327 = vunpack.c.l.b16 %v133
    %v328 = vunpack.c.l.b16 %v134
    %v329 = vunpack.c.l.b16 %v135
    %v330 = vunpack.c.l.b16 %v136
    %v331 = vunpack.c.l.b16 %v137
    %v332 = vunpack.c.l.b16 %v138
    %v333 = vpack.c.b16 %v262, %v261
    %v334 = vpack.c.b16 %v264, %v263
    %v335 = vpack.c.b16 %v266, %v265
    %v336 = vpack.c.b16 %v268, %v267
    %v337 = vpack.c.b16 %v270, %v269
    %v338 = vpack.c.b16 %v272, %v271
    %v339 = vpack.c.b16 %v274, %v273
    %v340 = vpack.c.b16 %v276, %v275
    %v341 = vpack.c.b16 %v278, %v277
    %v342 = vpack.c.b16 %v280, %v279
    %v343 = vpack.c.b16 %v282, %v281
    %v344 = vpack.c.b16 %v284, %v283
    %v345 = vpack.c.b16 %v286, %v285
    %v346 = vpack.c.b16 %v288, %v287
    %v347 = vpack.c.b16 %v290, %v289
    %v348 = vpack.c.b16 %v292, %v291
    %v349 = vpack.c.b16 %v294, %v293
    %v350 = vpack.c.b16 %v296, %v295
    %v351 = vpack.c.b16 %v298, %v297
    %v352 = vpack.c.b16 %v300, %v299
    %v353 = vpack.c.b16 %v302, %v301
    %v354 = vpack.c.b16 %v304, %v303
    %v355 = vpack.c.b16 %v306, %v305
    %v356 = vpack.c.b16 %v308, %v307
    %v357 = vpack.c.b16 %v310, %v309
    %v358 = vpack.c.b16 %v312, %v311
    %v359 = vpack.c.b16 %v314, %v313
    %v360 = vpack.c.b16 %v316, %v315
    %v361 = vpack.c.b16 %v318, %v317
    %v362 = vpack.c.b16 %v320, %v319
    %v363 = vpack.c.b16 %v322, %v321
    %v364 = vpack.c.b16 %v324, %v323
    %v365 = vpack.c.b16 %v326, %v325
    %v366 = vpack.c.b16 %v328, %v327
    %v367 = vpack.c.b16 %v330, %v329
    %v368 = vpack.c.b16 %v332, %v331
    %vm405 = vcmask 523264
    %v407 = vsel %vm405, %v175, 0
    %v410 = vsel %vm405, %v180, 0
    %412 = vmatprep.subr.bf16.mxu0 0
    %413 = vmatpush1.bf16.msra.mxu0 %v333
    %414 = vmatprep.subr.bf16.mxu0 0
    %415 = vmatpush1.bf16.msra.mxu0 %v334
    %416 = vmatprep.subr.bf16.mxu0 0
    %417 = vmatpush1.bf16.msra.mxu0 %v335
    %418 = vmatprep.subr.bf16.mxu0 0
    %419 = vmatpush1.bf16.msra.mxu0 %v336
    %420 = vmatprep.subr.bf16.mxu0 0
    %421 = vmatpush1.bf16.msra.mxu0 %v337
    %422 = vmatprep.subr.bf16.mxu0 0
    %423 = vmatpush1.bf16.msra.mxu0 %v338
    %424 = vmatprep.subr.bf16.mxu0 0
    %425 = vmatpush1.bf16.msra.mxu0 %v339
    %426 = vmatprep.subr.bf16.mxu0 0
    %427 = vmatpush1.bf16.msra.mxu0 %v340
    %428 = vmatprep.subr.bf16.mxu0 0
    %429 = vmatpush1.bf16.msra.mxu0 %v341
    %430 = vmatprep.subr.bf16.mxu0 0
    %431 = vmatpush1.bf16.msra.mxu0 %v342
    %432 = vmatprep.subr.bf16.mxu0 0
    %433 = vmatpush1.bf16.msra.mxu0 %v343
    %434 = vmatprep.subr.bf16.mxu0 0
    %435 = vmatpush1.bf16.msra.mxu0 %v344
    %436 = vmatprep.subr.bf16.mxu0 0
    %437 = vmatpush1.bf16.msra.mxu0 %v345
    %438 = vmatprep.subr.bf16.mxu0 0
    %439 = vmatpush1.bf16.msra.mxu0 %v346
    %440 = vmatprep.subr.bf16.mxu0 0
    %441 = vmatpush1.bf16.msra.mxu0 %v347
    %442 = vmatprep.subr.bf16.mxu0 0
    %443 = vmatpush1.bf16.msra.mxu0 %v348
    %444 = vmatprep.mubr.bf16.mxu0 %v172
    %445 = vmatmul.mubr.bf16.gmra.mrb[0].mxu0 %v171
    %v446 = vpop.f32.mrb[0].mxu0
    %v447 = vadd.f32 0.0, %v446
    %v448 = vpop.f32.mrb[0].mxu0
    %v449 = vpop.f32.mrb[0].mxu0
    %v450 = vadd.f32 0.0, %v449
    %v451 = vpop.f32.mrb[0].mxu0
    %452 = vmatprep.mubr.bf16.mxu0 %v177
    %453 = vmatmul.mubr.bf16.gmra.mrb[0].mxu0 %v176
    %v454 = vpop.f32.mrb[0].mxu0
    %v455 = vadd.f32 0.0, %v454
    %v456 = vpop.f32.mrb[0].mxu0
    %v457 = vpop.f32.mrb[0].mxu0
    %v458 = vadd.f32 0.0, %v457
    %v459 = vpop.f32.mrb[0].mxu0
    %460 = vdwg.mxu0
    %461 = vmatprep.subr.bf16.mxu0 0
    %462 = vmatpush1.bf16.msra.mxu0 %v349
    %463 = vmatprep.subr.bf16.mxu0 0
    %464 = vmatpush1.bf16.msra.mxu0 %v350
    %465 = vmatprep.subr.bf16.mxu0 0
    %466 = vmatpush1.bf16.msra.mxu0 %v351
    %467 = vmatprep.subr.bf16.mxu0 0
    %468 = vmatpush1.bf16.msra.mxu0 %v352
    %469 = vmatprep.subr.bf16.mxu0 0
    %470 = vmatpush1.bf16.msra.mxu0 %v353
    %471 = vmatprep.subr.bf16.mxu0 0
    %472 = vmatpush1.bf16.msra.mxu0 %v354
    %473 = vmatprep.subr.bf16.mxu0 0
    %474 = vmatpush1.bf16.msra.mxu0 %v355
    %475 = vmatprep.subr.bf16.mxu0 0
    %476 = vmatpush1.bf16.msra.mxu0 %v356
    %477 = vmatprep.subr.bf16.mxu0 0
    %478 = vmatpush1.bf16.msra.mxu0 %v357
    %479 = vmatprep.subr.bf16.mxu0 0
    %480 = vmatpush1.bf16.msra.mxu0 %v358
    %481 = vmatprep.subr.bf16.mxu0 0
    %482 = vmatpush1.bf16.msra.mxu0 %v359
    %483 = vmatprep.subr.bf16.mxu0 0
    %484 = vmatpush1.bf16.msra.mxu0 %v360
    %485 = vmatprep.subr.bf16.mxu0 0
    %486 = vmatpush1.bf16.msra.mxu0 %v361
    %487 = vmatprep.subr.bf16.mxu0 0
    %488 = vmatpush1.bf16.msra.mxu0 %v362
    %489 = vmatprep.subr.bf16.mxu0 0
    %490 = vmatpush1.bf16.msra.mxu0 %v363
    %491 = vmatprep.subr.bf16.mxu0 0
    %492 = vmatpush1.bf16.msra.mxu0 %v364
    %493 = vmatprep.mubr.bf16.mxu0 %v174
    %494 = vmatmul.mubr.bf16.gmra.mrb[0].mxu0 %v173
    %v495 = vpop.f32.mrb[0].mxu0
    %v496 = vadd.f32 %v447, %v495
    %v497 = vpop.f32.mrb[0].mxu0
    %v498 = vpop.f32.mrb[0].mxu0
    %v499 = vadd.f32 %v450, %v498
    %v500 = vpop.f32.mrb[0].mxu0
    %501 = vmatprep.mubr.bf16.mxu0 %v179
    %502 = vmatmul.mubr.bf16.gmra.mrb[0].mxu0 %v178
    %v503 = vpop.f32.mrb[0].mxu0
    %v504 = vadd.f32 %v455, %v503
    %v505 = vpop.f32.mrb[0].mxu0
    %v506 = vpop.f32.mrb[0].mxu0
    %v507 = vadd.f32 %v458, %v506
    %v508 = vpop.f32.mrb[0].mxu0
    %509 = vdwg.mxu0
    %510 = vmatprep.subr.bf16.mxu0 0
    %511 = vmatpush1.bf16.msra.mxu0 %v365
    %512 = vmatprep.subr.bf16.mxu0 0
    %513 = vmatpush1.bf16.msra.mxu0 %v366
    %514 = vmatprep.subr.bf16.mxu0 0
    %515 = vmatpush1.bf16.msra.mxu0 %v367
    %516 = vmatprep.subr.bf16.mxu0 0
    %517 = vmatpush1.bf16.msra.mxu0 %v368
    %518 = vmatprep.subr.bf16.mxu0 0
    %519 = vmatpush1.bf16.msra.mxu0 0
    %520 = vmatprep.subr.bf16.mxu0 0
    %521 = vmatpush1.bf16.msra.mxu0 0
    %522 = vmatprep.subr.bf16.mxu0 0
    %523 = vmatpush1.bf16.msra.mxu0 0
    %524 = vmatprep.subr.bf16.mxu0 0
    %525 = vmatpush1.bf16.msra.mxu0 0
    %526 = vmatprep.subr.bf16.mxu0 0
    %527 = vmatpush1.bf16.msra.mxu0 0
    %528 = vmatprep.subr.bf16.mxu0 0
    %529 = vmatpush1.bf16.msra.mxu0 0
    %530 = vmatprep.subr.bf16.mxu0 0
    %531 = vmatpush1.bf16.msra.mxu0 0
    %532 = vmatprep.subr.bf16.mxu0 0
    %533 = vmatpush1.bf16.msra.mxu0 0
    %534 = vmatprep.subr.bf16.mxu0 0
    %535 = vmatpush1.bf16.msra.mxu0 0
    %536 = vmatprep.subr.bf16.mxu0 0
    %537 = vmatpush1.bf16.msra.mxu0 0
    %538 = vmatprep.subr.bf16.mxu0 0
    %539 = vmatpush1.bf16.msra.mxu0 0
    %540 = vmatprep.subr.bf16.mxu0 0
    %541 = vmatpush1.bf16.msra.mxu0 0
    %542 = vmatprep.mubr.bf16.mxu0 0
    %543 = vmatmul.mubr.bf16.gmra.mrb[0].mxu0 %v407
    %v544 = vpop.f32.mrb[0].mxu0
    %v545 = vadd.f32 %v496, %v544
    %v546 = vpop.f32.mrb[0].mxu0
    %v547 = vpop.f32.mrb[0].mxu0
    %v548 = vadd.f32 %v499, %v547
    %v549 = vpop.f32.mrb[0].mxu0
    %550 = vmatprep.mubr.bf16.mxu0 0
    %551 = vmatmul.mubr.bf16.gmra.mrb[0].mxu0 %v410
    %v552 = vpop.f32.mrb[0].mxu0
    %v553 = vadd.f32 %v504, %v552
    %v554 = vpop.f32.mrb[0].mxu0
    %v555 = vpop.f32.mrb[0].mxu0
    %v556 = vadd.f32 %v507, %v555
    %v557 = vpop.f32.mrb[0].mxu0
    %558 = vdwg.mxu0
    %v559 = vadd.f32 %v545, %v548
    %v560 = vadd.f32 %v559, %v553
    %v561 = vadd.f32 %v560, %v556
    %v562 = vrot.slane %v561, 4
    %v563 = vadd.f32 %v561, %v562
    %v564 = vrot.slane %v563, 2
    %v565 = vadd.f32 %v563, %v564
    %v566 = vrot.slane %v565, 1
    %v567 = vadd.f32 %v565, %v566
    %v568 = vadd.f32 %v567, 0.0
    %570 = vrot.lane.b32.xlu0 %v567, 96
    %v571 = vpop.permute.xlu0 %570
    %v573 = vadd.f32 %v568, %v571
    %574 = vrot.lane.b32.xlu0 %v567, 64
    %v575 = vpop.permute.xlu0 %574
    %v577 = vadd.f32 %v573, %v575
    %578 = vrot.lane.b32.xlu0 %v567, 32
    %v579 = vpop.permute.xlu0 %578
    %v581 = vadd.f32 %v577, %v579
    %v582 = vmul.f32 %v581, 0.0078125
    %584 = vrot.lane.b32.xlu0 %v582, 32
    %v585 = vpop.permute.xlu0 %584
    %587 = vrot.lane.b32.xlu0 %v582, 64
    %v588 = vpop.permute.xlu0 %587
    %590 = vrot.lane.b32.xlu0 %v582, 96
    %v591 = vpop.permute.xlu0 %590
    %vm593 = vcmask 261120
    %v594 = vsel %vm593, %v582, %v585
    %v595 = vsel %vm405, %v594, %v588
    %vm596 = vcmask 785408
    %v597 = vsel %vm596, %v595, %v591
    %v598 = vlaneseq
    %v599 = vshrl.u32 %v598, 7
    %v600 = vsub.s32 0, %v599
    %v601 = vrot.slane %v597, %v600
    %v602 = vsub.f32 %v545, %v601
    %v603 = vsub.f32 %v548, %v601
    %v604 = vsub.f32 %v553, %v601
    %v605 = vsub.f32 %v556, %v601
    %v606 = vmul.f32 %v602, %v602
    %v607 = vmul.f32 %v603, %v603
    %v608 = vmul.f32 %v604, %v604
    %v609 = vmul.f32 %v605, %v605
    %v610 = vadd.f32 %v606, %v607
    %v611 = vadd.f32 %v610, %v608
    %v612 = vadd.f32 %v611, %v609
    %v613 = vrot.slane %v612, 4
    %v614 = vadd.f32 %v612, %v613
    %v615 = vrot.slane %v614, 2
    %v616 = vadd.f32 %v614, %v615
    %v617 = vrot.slane %v616, 1
    %v618 = vadd.f32 %v616, %v617
    %v619 = vadd.f32 %v618, 0.0
    %621 = vrot.lane.b32.xlu0 %v618, 96
    %v622 = vpop.permute.xlu0 %621
    %v624 = vadd.f32 %v619, %v622
    %625 = vrot.lane.b32.xlu0 %v618, 64
    %v626 = vpop.permute.xlu0 %625
    %v628 = vadd.f32 %v624, %v626
    %629 = vrot.lane.b32.xlu0 %v618, 32
    %v630 = vpop.permute.xlu0 %629
    %v632 = vadd.f32 %v628, %v630
    %v633 = vmul.f32 %v632, 0.0078125
    %v634 = vld [vmem:[#allocation4] sm:$0x1]
    %v635 = vadd.f32 %v633, 1e-05
    %v636 = vrsqrt.pop %v635
    %v637 = vmul.f32 %v634, %v636
    %v638 = vld [vmem:[#allocation6] sm:$0x1]
    %v639 = vmul.f32 %v582, %v637
    %v640 = vsub.f32 %v638, %v639
    %v642 = vlaneseq
    %v643 = vshrl.u32 %v642, 7
    %v644 = vsub.s32 0, %v643
    %v645 = vrot.slane %v637, %v644
    %646 = vrot.lane.b32.xlu0 %v645, 32
    %v647 = vpop.permute.xlu0 %646
    %649 = vrot.lane.b32.xlu0 %v645, 64
    %v650 = vpop.permute.xlu0 %649
    %652 = vrot.lane.b32.xlu0 %v645, 96
    %v653 = vpop.permute.xlu0 %652
    %v655 = vsel %vm593, %v637, %v647
    %v656 = vsel %vm405, %v655, %v650
    %v657 = vsel %vm596, %v656, %v653
    %v659 = vlaneseq
    %v660 = vshrl.u32 %v659, 7
    %v661 = vsub.s32 0, %v660
    %v662 = vrot.slane %v640, %v661
    %663 = vrot.lane.b32.xlu0 %v662, 32
    %v664 = vpop.permute.xlu0 %663
    %666 = vrot.lane.b32.xlu0 %v662, 64
    %v667 = vpop.permute.xlu0 %666
    %669 = vrot.lane.b32.xlu0 %v662, 96
    %v670 = vpop.permute.xlu0 %669
    %v672 = vsel %vm593, %v640, %v664
    %v673 = vsel %vm405, %v672, %v667
    %v674 = vsel %vm596, %v673, %v670
    %v675 = vlaneseq
    %v676 = vshrl.u32 %v675, 7
    %v677 = vsub.s32 0, %v676
    %v678 = vrot.slane %v657, %v677
    %v679 = vmul.f32 %v545, %v678
    %v680 = vmul.f32 %v548, %v678
    %v681 = vmul.f32 %v553, %v678
    %v682 = vmul.f32 %v556, %v678
    %v683 = vlaneseq
    %v684 = vshrl.u32 %v683, 7
    %v685 = vsub.s32 0, %v684
    %v686 = vrot.slane %v674, %v685
    %v687 = vadd.f32 %v679, %v686
    %v688 = vadd.f32 %v680, %v686
    %v689 = vadd.f32 %v681, %v686
    %v690 = vadd.f32 %v682, %v686
    %v691 = vmax.f32 %v687, 0.0
    %v692 = vmax.f32 %v688, 0.0
    %v693 = vmax.f32 %v689, 0.0
    %v694 = vmax.f32 %v690, 0.0
    %v695 = vpack.c.bf16 %v692, %v691
    %v696 = vpack.c.bf16 %v694, %v693
    %v699 = vunpack.c.l.b16 %v695
    %v700 = vunpack.c.h.b16 %v695
    %v701 = vunpack.c.l.b16 %v696
    %v702 = vunpack.c.h.b16 %v696
    %v703 = vpack.c.b16 %v699, %v699
    %v704 = vpack.c.b16 %v700, %v700
    %v705 = vpack.c.b16 %v701, %v701
    %v706 = vpack.c.b16 %v702, %v702
    %711 = vst [vmem:[%s4] sm:$0xf] %v703
    %712 = vst [vmem:[%s4 + $0x4] sm:$0xf] %v704
    %713 = vst [vmem:[%s4 + $0x8] sm:$0xf] %v705
    %714 = vst [vmem:[%s4 + $0xc] sm:$0xf] %v706
    // Predicated region
    $region30: #{generator_forward.6} parent=1 // pred_check
      _
    $region31: #{generator_forward.6} parent=1 // pred_check_branch
      %716 = sbr.rel (0) target = $region33
    $region32: #{generator_forward.6} parent=1 // pred_region
      _
    $region33: #{generator_forward.6} parent=1 // pred_fallthru
      _
    // Predicated region
    $region34: #{generator_forward.6} parent=1 // pred_check
      _
    $region35: #{generator_forward.6} parent=1 // pred_check_branch
      %718 = sbr.rel (0) target = $region37
    $region36: #{generator_forward.6} parent=1 // pred_region
      _
    $region37: #{generator_forward.6} parent=1 // pred_fallthru
      _
    %719 = vsyncpa [#allocation3], 1
    %720 = vsyncpa [#allocation5], 1

// kernel: generator_forward.7
$region0: #{generator_forward.7}
  #allocation0 [shape = 'u32[]', space=smem, size = 0x4, offset = 0x4, fixed_abs, tag = 'smem constant byte address 0x4 - core index']
  #allocation1 [shape = 'u32[144,128]{1,0:T(1,128)}', space=vmem, size = 0x12000, scoped, tag = 'internal scratch']
  %s0 = inlined_call_operand.vmem [shape: bf16[128,288], index: 0, kind: input, shape index: {}]
  %s1 = inlined_call_operand.vmem [shape: bf16[288,64], index: 1, kind: input, shape index: {}]
  %s2 = inlined_call_operand.vmem [shape: f32[1,16], index: 2, kind: input, shape index: {}]
  %s3 = inlined_call_operand.vmem [shape: f32[1,16], index: 3, kind: input, shape index: {}]
  %s4 = inlined_call_operand.vmem [shape: bf16[128,64], index: 4, kind: output, shape index: {}]
  %s5 = sld [smem:[#allocation0]]
  $region26: #{generator_forward.7} parent=0
    _
  %s7 = ssub.s32 1, %s5
  %s8 = scalar_select 0, %s7, %s5
  // Predicated region
  $region2: #{generator_forward.7} parent=0 // pred_check
    _
  $region3: #{generator_forward.7} parent=0 // pred_check_branch
    %10 = sbr.rel (0) target = $region5
  $region4: #{generator_forward.7} parent=0 // pred_region
    _
  $region5: #{generator_forward.7} parent=0 // pred_fallthru
    _
  // Predicated region
  $region6: #{generator_forward.7} parent=0 // pred_check
    _
  $region7: #{generator_forward.7} parent=0 // pred_check_branch
    %12 = sbr.rel (0) target = $region9
  $region8: #{generator_forward.7} parent=0 // pred_region
    _
  $region9: #{generator_forward.7} parent=0 // pred_fallthru
    _
  // Predicated region
  $region10: #{generator_forward.7} parent=0 // pred_check
    _
  $region11: #{generator_forward.7} parent=0 // pred_check_branch
    %14 = sbr.rel (0) target = $region13
  $region12: #{generator_forward.7} parent=0 // pred_region
    _
  $region13: #{generator_forward.7} parent=0 // pred_fallthru
    _
  // Predicated region
  $region14: #{generator_forward.7} parent=0 // pred_check
    _
  $region15: #{generator_forward.7} parent=0 // pred_check_branch
    %16 = sbr.rel (0) target = $region17
  $region16: #{generator_forward.7} parent=0 // pred_region
    _
  $region17: #{generator_forward.7} parent=0 // pred_fallthru
    _
  %v18 = vld [vmem:[%s0] sm:$0xff]
  %v19 = vld [vmem:[%s0 + $0x8] sm:$0xf]
  %v20 = vld [vmem:[%s0 + $0xc] sm:$0xff]
  %v21 = vld [vmem:[%s0 + $0x14] sm:$0xf]
  %v22 = vld [vmem:[%s0 + $0x18] sm:$0xff]
  %v23 = vld [vmem:[%s0 + $0x20] sm:$0xf]
  %v24 = vld [vmem:[%s0 + $0x24] sm:$0xff]
  %v25 = vld [vmem:[%s0 + $0x2c] sm:$0xf]
  %v26 = vld [vmem:[%s0 + $0x30] sm:$0xff]
  %v27 = vld [vmem:[%s0 + $0x38] sm:$0xf]
  %v28 = vld [vmem:[%s0 + $0x3c] sm:$0xff]
  %v29 = vld [vmem:[%s0 + $0x44] sm:$0xf]
  %v30 = vld [vmem:[%s0 + $0x48] sm:$0xff]
  %v31 = vld [vmem:[%s0 + $0x50] sm:$0xf]
  %v32 = vld [vmem:[%s0 + $0x54] sm:$0xff]
  %v33 = vld [vmem:[%s0 + $0x5c] sm:$0xf]
  %v34 = vld [vmem:[%s0 + $0x60] sm:$0xff]
  %v35 = vld [vmem:[%s0 + $0x68] sm:$0xf]
  %v36 = vld [vmem:[%s0 + $0x6c] sm:$0xff]
  %v37 = vld [vmem:[%s0 + $0x74] sm:$0xf]
  %v38 = vld [vmem:[%s0 + $0x78] sm:$0xff]
  %v39 = vld [vmem:[%s0 + $0x80] sm:$0xf]
  %v40 = vld [vmem:[%s0 + $0x84] sm:$0xff]
  %v41 = vld [vmem:[%s0 + $0x8c] sm:$0xf]
  %v42 = vld [vmem:[%s0 + $0x90] sm:$0xff]
  %v43 = vld [vmem:[%s0 + $0x98] sm:$0xf]
  %v44 = vld [vmem:[%s0 + $0x9c] sm:$0xff]
  %v45 = vld [vmem:[%s0 + $0xa4] sm:$0xf]
  %v46 = vld [vmem:[%s0 + $0xa8] sm:$0xff]
  %v47 = vld [vmem:[%s0 + $0xb0] sm:$0xf]
  %v48 = vld [vmem:[%s0 + $0xb4] sm:$0xff]
  %v49 = vld [vmem:[%s0 + $0xbc] sm:$0xf]
  %v50 = vld [vmem:[%s1] sm:$0xf]
  %v51 = vld [vmem:[%s1 + $0x4] sm:$0xf]
  %v52 = vld [vmem:[%s1 + $0x8] sm:$0xf]
  %v53 = vld [vmem:[%s1 + $0xc] sm:$0xf]
  %v54 = vld [vmem:[%s1 + $0x10] sm:$0xf]
  %v55 = vld [vmem:[%s1 + $0x14] sm:$0xf]
  %v56 = vld [vmem:[%s1 + $0x18] sm:$0xf]
  %v57 = vld [vmem:[%s1 + $0x1c] sm:$0xf]
  %v58 = vld [vmem:[%s1 + $0x20] sm:$0xf]
  %v59 = vld [vmem:[%s1 + $0x24] sm:$0xf]
  %v60 = vld [vmem:[%s1 + $0x28] sm:$0xf]
  %v61 = vld [vmem:[%s1 + $0x2c] sm:$0xf]
  %v62 = vld [vmem:[%s1 + $0x30] sm:$0xf]
  %v63 = vld [vmem:[%s1 + $0x34] sm:$0xf]
  %v64 = vld [vmem:[%s1 + $0x38] sm:$0xf]
  %v65 = vld [vmem:[%s1 + $0x3c] sm:$0xf]
  %v66 = vld [vmem:[%s1 + $0x40] sm:$0xf]
  %v67 = vld [vmem:[%s1 + $0x44] sm:$0xf]
  %v68 = vld [vmem:[%s1 + $0x48] sm:$0xf]
  %v69 = vld [vmem:[%s1 + $0x4c] sm:$0xf]
  %v70 = vld [vmem:[%s1 + $0x50] sm:$0xf]
  %v71 = vld [vmem:[%s1 + $0x54] sm:$0xf]
  %v72 = vld [vmem:[%s1 + $0x58] sm:$0xf]
  %v73 = vld [vmem:[%s1 + $0x5c] sm:$0xf]
  %v74 = vld [vmem:[%s1 + $0x60] sm:$0xf]
  %v75 = vld [vmem:[%s1 + $0x64] sm:$0xf]
  %v76 = vld [vmem:[%s1 + $0x68] sm:$0xf]
  %v77 = vld [vmem:[%s1 + $0x6c] sm:$0xf]
  %v78 = vld [vmem:[%s1 + $0x70] sm:$0xf]
  %v79 = vld [vmem:[%s1 + $0x74] sm:$0xf]
  %v80 = vld [vmem:[%s1 + $0x78] sm:$0xf]
  %v81 = vld [vmem:[%s1 + $0x7c] sm:$0xf]
  %v82 = vld [vmem:[%s1 + $0x80] sm:$0xf]
  %v83 = vld [vmem:[%s1 + $0x84] sm:$0xf]
  %v84 = vld [vmem:[%s1 + $0x88] sm:$0xf]
  %v85 = vld [vmem:[%s1 + $0x8c] sm:$0xf]
  %v118 = vunpack.c.l.b16 %v18
  %v119 = vunpack.c.h.b16 %v18
  %v120 = vunpack.c.l.b16 %v19
  %v121 = vunpack.c.l.b16 %v20
  %v122 = vunpack.c.h.b16 %v20
  %v123 = vunpack.c.l.b16 %v21
  %v124 = vunpack.c.l.b16 %v22
  %v125 = vunpack.c.h.b16 %v22
  %v126 = vunpack.c.l.b16 %v23
  %v127 = vunpack.c.l.b16 %v24
  %v128 = vunpack.c.h.b16 %v24
  %v129 = vunpack.c.l.b16 %v25
  %v130 = vunpack.c.l.b16 %v26
  %v131 = vunpack.c.h.b16 %v26
  %v132 = vunpack.c.l.b16 %v27
  %v133 = vunpack.c.l.b16 %v28
  %v134 = vunpack.c.h.b16 %v28
  %v135 = vunpack.c.l.b16 %v29
  %v136 = vunpack.c.l.b16 %v30
  %v137 = vunpack.c.h.b16 %v30
  %v138 = vunpack.c.l.b16 %v31
  %v139 = vunpack.c.l.b16 %v32
  %v140 = vunpack.c.h.b16 %v32
  %v141 = vunpack.c.l.b16 %v33
  %v142 = vunpack.c.l.b16 %v34
  %v143 = vunpack.c.h.b16 %v34
  %v144 = vunpack.c.l.b16 %v35
  %v145 = vunpack.c.l.b16 %v36
  %v146 = vunpack.c.h.b16 %v36
  %v147 = vunpack.c.l.b16 %v37
  %v148 = vunpack.c.l.b16 %v38
  %v149 = vunpack.c.h.b16 %v38
  %v150 = vunpack.c.l.b16 %v39
  %v151 = vunpack.c.l.b16 %v40
  %v152 = vunpack.c.h.b16 %v40
  %v153 = vunpack.c.l.b16 %v41
  %v154 = vunpack.c.l.b16 %v42
  %v155 = vunpack.c.h.b16 %v42
  %v156 = vunpack.c.l.b16 %v43
  %v157 = vunpack.c.l.b16 %v44
  %v158 = vunpack.c.h.b16 %v44
  %v159 = vunpack.c.l.b16 %v45
  %v160 = vunpack.c.l.b16 %v46
  %v161 = vunpack.c.h.b16 %v46
  %v162 = vunpack.c.l.b16 %v47
  %v163 = vunpack.c.l.b16 %v48
  %v164 = vunpack.c.h.b16 %v48
  %v165 = vunpack.c.l.b16 %v49
  %v166 = vpack.c.b16 %v121, %v118
  %v167 = vpack.c.b16 %v122, %v119
  %v168 = vpack.c.b16 %v123, %v120
  %v169 = vpack.c.b16 %v127, %v124
  %v170 = vpack.c.b16 %v128, %v125
  %v171 = vpack.c.b16 %v129, %v126
  %v172 = vpack.c.b16 %v133, %v130
  %v173 = vpack.c.b16 %v134, %v131
  %v174 = vpack.c.b16 %v135, %v132
  %v175 = vpack.c.b16 %v139, %v136
  %v176 = vpack.c.b16 %v140, %v137
  %v177 = vpack.c.b16 %v141, %v138
  %v178 = vpack.c.b16 %v145, %v142
  %v179 = vpack.c.b16 %v146, %v143
  %v180 = vpack.c.b16 %v147, %v144
  %v181 = vpack.c.b16 %v151, %v148
  %v182 = vpack.c.b16 %v152, %v149
  %v183 = vpack.c.b16 %v153, %v150
  %v184 = vpack.c.b16 %v157, %v154
  %v185 = vpack.c.b16 %v158, %v155
  %v186 = vpack.c.b16 %v159, %v156
  %v187 = vpack.c.b16 %v163, %v160
  %v188 = vpack.c.b16 %v164, %v161
  %v189 = vpack.c.b16 %v165, %v162
  %v242 = vunpack.c.l.b16 %v50
  %v243 = vunpack.c.l.b16 %v51
  %v244 = vunpack.c.l.b16 %v52
  %v245 = vunpack.c.l.b16 %v53
  %v246 = vunpack.c.l.b16 %v54
  %v247 = vunpack.c.l.b16 %v55
  %v248 = vunpack.c.l.b16 %v56
  %v249 = vunpack.c.l.b16 %v57
  %v250 = vunpack.c.l.b16 %v58
  %v251 = vunpack.c.l.b16 %v59
  %v252 = vunpack.c.l.b16 %v60
  %v253 = vunpack.c.l.b16 %v61
  %v254 = vunpack.c.l.b16 %v62
  %v255 = vunpack.c.l.b16 %v63
  %v256 = vunpack.c.l.b16 %v64
  %v257 = vunpack.c.l.b16 %v65
  %v258 = vunpack.c.l.b16 %v66
  %v259 = vunpack.c.l.b16 %v67
  %v260 = vunpack.c.l.b16 %v68
  %v261 = vunpack.c.l.b16 %v69
  %v262 = vunpack.c.l.b16 %v70
  %v263 = vunpack.c.l.b16 %v71
  %v264 = vunpack.c.l.b16 %v72
  %v265 = vunpack.c.l.b16 %v73
  %v266 = vunpack.c.l.b16 %v74
  %v267 = vunpack.c.l.b16 %v75
  %v268 = vunpack.c.l.b16 %v76
  %v269 = vunpack.c.l.b16 %v77
  %v270 = vunpack.c.l.b16 %v78
  %v271 = vunpack.c.l.b16 %v79
  %v272 = vunpack.c.l.b16 %v80
  %v273 = vunpack.c.l.b16 %v81
  %v274 = vunpack.c.l.b16 %v82
  %v275 = vunpack.c.l.b16 %v83
  %v276 = vunpack.c.l.b16 %v84
  %v277 = vunpack.c.l.b16 %v85
  %v278 = vpack.c.b16 %v243, %v242
  %v279 = vpack.c.b16 %v245, %v244
  %v280 = vpack.c.b16 %v247, %v246
  %v281 = vpack.c.b16 %v249, %v248
  %v282 = vpack.c.b16 %v251, %v250
  %v283 = vpack.c.b16 %v253, %v252
  %v284 = vpack.c.b16 %v255, %v254
  %v285 = vpack.c.b16 %v257, %v256
  %v286 = vpack.c.b16 %v259, %v258
  %v287 = vpack.c.b16 %v261, %v260
  %v288 = vpack.c.b16 %v263, %v262
  %v289 = vpack.c.b16 %v265, %v264
  %v290 = vpack.c.b16 %v267, %v266
  %v291 = vpack.c.b16 %v269, %v268
  %v292 = vpack.c.b16 %v271, %v270
  %v293 = vpack.c.b16 %v273, %v272
  %v294 = vpack.c.b16 %v275, %v274
  %v295 = vpack.c.b16 %v277, %v276
  %vm314 = vcmask 261120
  %v316 = vsel %vm314, %v168, 0
  %v319 = vsel %vm314, %v171, 0
  %v322 = vsel %vm314, %v174, 0
  %v325 = vsel %vm314, %v177, 0
  %v328 = vsel %vm314, %v180, 0
  %v331 = vsel %vm314, %v183, 0
  %v334 = vsel %vm314, %v186, 0
  %v337 = vsel %vm314, %v189, 0
  %339 = vmatprep.subr.bf16.mxu0 0
  %340 = vmatpush1.bf16.msra.mxu0 %v278
  %341 = vmatprep.subr.bf16.mxu0 0
  %342 = vmatpush1.bf16.msra.mxu0 %v279
  %343 = vmatprep.subr.bf16.mxu0 0
  %344 = vmatpush1.bf16.msra.mxu0 %v280
  %345 = vmatprep.subr.bf16.mxu0 0
  %346 = vmatpush1.bf16.msra.mxu0 %v281
  %347 = vmatprep.subr.bf16.mxu0 0
  %348 = vmatpush1.bf16.msra.mxu0 %v282
  %349 = vmatprep.subr.bf16.mxu0 0
  %350 = vmatpush1.bf16.msra.mxu0 %v283
  %351 = vmatprep.subr.bf16.mxu0 0
  %352 = vmatpush1.bf16.msra.mxu0 %v284
  %353 = vmatprep.subr.bf16.mxu0 0
  %354 = vmatpush1.bf16.msra.mxu0 %v285
  %355 = vmatprep.subr.bf16.mxu0 0
  %356 = vmatpush1.bf16.msra.mxu0 %v286
  %357 = vmatprep.subr.bf16.mxu0 0
  %358 = vmatpush1.bf16.msra.mxu0 %v287
  %359 = vmatprep.subr.bf16.mxu0 0
  %360 = vmatpush1.bf16.msra.mxu0 %v288
  %361 = vmatprep.subr.bf16.mxu0 0
  %362 = vmatpush1.bf16.msra.mxu0 %v289
  %363 = vmatprep.subr.bf16.mxu0 0
  %364 = vmatpush1.bf16.msra.mxu0 %v290
  %365 = vmatprep.subr.bf16.mxu0 0
  %366 = vmatpush1.bf16.msra.mxu0 %v291
  %367 = vmatprep.subr.bf16.mxu0 0
  %368 = vmatpush1.bf16.msra.mxu0 %v292
  %369 = vmatprep.subr.bf16.mxu0 0
  %370 = vmatpush1.bf16.msra.mxu0 %v293
  %371 = vmatprep.mubr.bf16.mxu0 %v167
  %372 = vmatmul.mubr.bf16.gmra.mrb[0].mxu0 %v166
  %v373 = vpop.f32.mrb[0].mxu0
  %v374 = vadd.f32 0.0, %v373
  %v375 = vpop.f32.mrb[0].mxu0
  %v376 = vpop.f32.mrb[0].mxu0
  %v377 = vadd.f32 0.0, %v376
  %v378 = vpop.f32.mrb[0].mxu0
  %379 = vmatprep.mubr.bf16.mxu0 %v170
  %380 = vmatmul.mubr.bf16.gmra.mrb[0].mxu0 %v169
  %v381 = vpop.f32.mrb[0].mxu0
  %v382 = vadd.f32 0.0, %v381
  %v383 = vpop.f32.mrb[0].mxu0
  %v384 = vpop.f32.mrb[0].mxu0
  %v385 = vadd.f32 0.0, %v384
  %v386 = vpop.f32.mrb[0].mxu0
  %387 = vmatprep.mubr.bf16.mxu0 %v173
  %388 = vmatmul.mubr.bf16.gmra.mrb[0].mxu0 %v172
  %v389 = vpop.f32.mrb[0].mxu0
  %v390 = vadd.f32 0.0, %v389
  %v391 = vpop.f32.mrb[0].mxu0
  %v392 = vpop.f32.mrb[0].mxu0
  %v393 = vadd.f32 0.0, %v392
  %v394 = vpop.f32.mrb[0].mxu0
  %395 = vmatprep.mubr.bf16.mxu0 %v176
  %396 = vmatmul.mubr.bf16.gmra.mrb[0].mxu0 %v175
  %v397 = vpop.f32.mrb[0].mxu0
  %v398 = vadd.f32 0.0, %v397
  %v399 = vpop.f32.mrb[0].mxu0
  %v400 = vpop.f32.mrb[0].mxu0
  %v401 = vadd.f32 0.0, %v400
  %v402 = vpop.f32.mrb[0].mxu0
  %403 = vmatprep.mubr.bf16.mxu0 %v179
  %404 = vmatmul.mubr.bf16.gmra.mrb[0].mxu0 %v178
  %v405 = vpop.f32.mrb[0].mxu0
  %v406 = vadd.f32 0.0, %v405
  %v407 = vpop.f32.mrb[0].mxu0
  %v408 = vpop.f32.mrb[0].mxu0
  %v409 = vadd.f32 0.0, %v408
  %v410 = vpop.f32.mrb[0].mxu0
  %411 = vmatprep.mubr.bf16.mxu0 %v182
  %412 = vmatmul.mubr.bf16.gmra.mrb[0].mxu0 %v181
  %v413 = vpop.f32.mrb[0].mxu0
  %v414 = vadd.f32 0.0, %v413
  %v415 = vpop.f32.mrb[0].mxu0
  %v416 = vpop.f32.mrb[0].mxu0
  %v417 = vadd.f32 0.0, %v416
  %v418 = vpop.f32.mrb[0].mxu0
  %419 = vmatprep.mubr.bf16.mxu0 %v185
  %420 = vmatmul.mubr.bf16.gmra.mrb[0].mxu0 %v184
  %v421 = vpop.f32.mrb[0].mxu0
  %v422 = vadd.f32 0.0, %v421
  %v423 = vpop.f32.mrb[0].mxu0
  %v424 = vpop.f32.mrb[0].mxu0
  %v425 = vadd.f32 0.0, %v424
  %v426 = vpop.f32.mrb[0].mxu0
  %427 = vmatprep.mubr.bf16.mxu0 %v188
  %428 = vmatmul.mubr.bf16.gmra.mrb[0].mxu0 %v187
  %v429 = vpop.f32.mrb[0].mxu0
  %v430 = vadd.f32 0.0, %v429
  %v431 = vpop.f32.mrb[0].mxu0
  %v432 = vpop.f32.mrb[0].mxu0
  %v433 = vadd.f32 0.0, %v432
  %v434 = vpop.f32.mrb[0].mxu0
  %435 = vdwg.mxu0
  %436 = vmatprep.subr.bf16.mxu0 0
  %437 = vmatpush1.bf16.msra.mxu0 %v294
  %438 = vmatprep.subr.bf16.mxu0 0
  %439 = vmatpush1.bf16.msra.mxu0 %v295
  %440 = vmatprep.subr.bf16.mxu0 0
  %441 = vmatpush1.bf16.msra.mxu0 0
  %442 = vmatprep.subr.bf16.mxu0 0
  %443 = vmatpush1.bf16.msra.mxu0 0
  %444 = vmatprep.subr.bf16.mxu0 0
  %445 = vmatpush1.bf16.msra.mxu0 0
  %446 = vmatprep.subr.bf16.mxu0 0
  %447 = vmatpush1.bf16.msra.mxu0 0
  %448 = vmatprep.subr.bf16.mxu0 0
  %449 = vmatpush1.bf16.msra.mxu0 0
  %450 = vmatprep.subr.bf16.mxu0 0
  %451 = vmatpush1.bf16.msra.mxu0 0
  %452 = vmatprep.subr.bf16.mxu0 0
  %453 = vmatpush1.bf16.msra.mxu0 0
  %454 = vmatprep.subr.bf16.mxu0 0
  %455 = vmatpush1.bf16.msra.mxu0 0
  %456 = vmatprep.subr.bf16.mxu0 0
  %457 = vmatpush1.bf16.msra.mxu0 0
  %458 = vmatprep.subr.bf16.mxu0 0
  %459 = vmatpush1.bf16.msra.mxu0 0
  %460 = vmatprep.subr.bf16.mxu0 0
  %461 = vmatpush1.bf16.msra.mxu0 0
  %462 = vmatprep.subr.bf16.mxu0 0
  %463 = vmatpush1.bf16.msra.mxu0 0
  %464 = vmatprep.subr.bf16.mxu0 0
  %465 = vmatpush1.bf16.msra.mxu0 0
  %466 = vmatprep.subr.bf16.mxu0 0
  %467 = vmatpush1.bf16.msra.mxu0 0
  %468 = vmatprep.mubr.bf16.mxu0 0
  %469 = vmatmul.mubr.bf16.gmra.mrb[0].mxu0 %v316
  %v470 = vpop.f32.mrb[0].mxu0
  %v471 = vadd.f32 %v374, %v470
  %v472 = vpop.f32.mrb[0].mxu0
  %v473 = vpop.f32.mrb[0].mxu0
  %v474 = vadd.f32 %v377, %v473
  %v475 = vpop.f32.mrb[0].mxu0
  %476 = vmatprep.mubr.bf16.mxu0 0
  %477 = vmatmul.mubr.bf16.gmra.mrb[0].mxu0 %v319
  %v478 = vpop.f32.mrb[0].mxu0
  %v479 = vadd.f32 %v382, %v478
  %v480 = vpop.f32.mrb[0].mxu0
  %v481 = vpop.f32.mrb[0].mxu0
  %v482 = vadd.f32 %v385, %v481
  %v483 = vpop.f32.mrb[0].mxu0
  %484 = vmatprep.mubr.bf16.mxu0 0
  %485 = vmatmul.mubr.bf16.gmra.mrb[0].mxu0 %v322
  %v486 = vpop.f32.mrb[0].mxu0
  %v487 = vadd.f32 %v390, %v486
  %v488 = vpop.f32.mrb[0].mxu0
  %v489 = vpop.f32.mrb[0].mxu0
  %v490 = vadd.f32 %v393, %v489
  %v491 = vpop.f32.mrb[0].mxu0
  %492 = vmatprep.mubr.bf16.mxu0 0
  %493 = vmatmul.mubr.bf16.gmra.mrb[0].mxu0 %v325
  %v494 = vpop.f32.mrb[0].mxu0
  %v495 = vadd.f32 %v398, %v494
  %v496 = vpop.f32.mrb[0].mxu0
  %v497 = vpop.f32.mrb[0].mxu0
  %v498 = vadd.f32 %v401, %v497
  %v499 = vpop.f32.mrb[0].mxu0
  %500 = vmatprep.mubr.bf16.mxu0 0
  %501 = vmatmul.mubr.bf16.gmra.mrb[0].mxu0 %v328
  %v502 = vpop.f32.mrb[0].mxu0
  %v503 = vadd.f32 %v406, %v502
  %v504 = vpop.f32.mrb[0].mxu0
  %v505 = vpop.f32.mrb[0].mxu0
  %v506 = vadd.f32 %v409, %v505
  %v507 = vpop.f32.mrb[0].mxu0
  %508 = vmatprep.mubr.bf16.mxu0 0
  %509 = vmatmul.mubr.bf16.gmra.mrb[0].mxu0 %v331
  %v510 = vpop.f32.mrb[0].mxu0
  %v511 = vadd.f32 %v414, %v510
  %v512 = vpop.f32.mrb[0].mxu0
  %v513 = vpop.f32.mrb[0].mxu0
  %v514 = vadd.f32 %v417, %v513
  %v515 = vpop.f32.mrb[0].mxu0
  %516 = vmatprep.mubr.bf16.mxu0 0
  %517 = vmatmul.mubr.bf16.gmra.mrb[0].mxu0 %v334
  %v518 = vpop.f32.mrb[0].mxu0
  %v519 = vadd.f32 %v422, %v518
  %v520 = vpop.f32.mrb[0].mxu0
  %v521 = vpop.f32.mrb[0].mxu0
  %v522 = vadd.f32 %v425, %v521
  %v523 = vpop.f32.mrb[0].mxu0
  %524 = vmatprep.mubr.bf16.mxu0 0
  %525 = vmatmul.mubr.bf16.gmra.mrb[0].mxu0 %v337
  %v526 = vpop.f32.mrb[0].mxu0
  %v527 = vadd.f32 %v430, %v526
  %v528 = vpop.f32.mrb[0].mxu0
  %v529 = vpop.f32.mrb[0].mxu0
  %v530 = vadd.f32 %v433, %v529
  %v531 = vpop.f32.mrb[0].mxu0
  %532 = vdwg.mxu0
  %vm533 = vcmask 523264
  %v534 = vsel %vm533, %v471, 0.0
  %v535 = vsel %vm533, %v474, 0.0
  %v536 = vadd.f32 %v534, %v535
  %v537 = vsel %vm533, %v479, 0.0
  %v538 = vadd.f32 %v536, %v537
  %v539 = vsel %vm533, %v482, 0.0
  %v540 = vadd.f32 %v538, %v539
  %v541 = vsel %vm533, %v487, 0.0
  %v542 = vadd.f32 %v540, %v541
  %v543 = vsel %vm533, %v490, 0.0
  %v544 = vadd.f32 %v542, %v543
  %v545 = vsel %vm533, %v495, 0.0
  %v546 = vadd.f32 %v544, %v545
  %v547 = vsel %vm533, %v498, 0.0
  %v548 = vadd.f32 %v546, %v547
  %v549 = vsel %vm533, %v503, 0.0
  %v550 = vadd.f32 %v548, %v549
  %v551 = vsel %vm533, %v506, 0.0
  %v552 = vadd.f32 %v550, %v551
  %v553 = vsel %vm533, %v511, 0.0
  %v554 = vadd.f32 %v552, %v553
  %v555 = vsel %vm533, %v514, 0.0
  %v556 = vadd.f32 %v554, %v555
  %v557 = vsel %vm533, %v519, 0.0
  %v558 = vadd.f32 %v556, %v557
  %v559 = vsel %vm533, %v522, 0.0
  %v560 = vadd.f32 %v558, %v559
  %v561 = vsel %vm533, %v527, 0.0
  %v562 = vadd.f32 %v560, %v561
  %v563 = vsel %vm533, %v530, 0.0
  %v564 = vadd.f32 %v562, %v563
  %v565 = vrot.slane %v564, 4
  %v566 = vadd.f32 %v564, %v565
  %v567 = vrot.slane %v566, 2
  %v568 = vadd.f32 %v566, %v567
  %v569 = vrot.slane %v568, 1
  %v570 = vadd.f32 %v568, %v569
  %v571 = vadd.f32 %v570, 0.0
  %573 = vrot.lane.b32.xlu0 %v570, 112
  %v574 = vpop.permute.xlu0 %573
  %v576 = vadd.f32 %v571, %v574
  %577 = vrot.lane.b32.xlu0 %v570, 96
  %v578 = vpop.permute.xlu0 %577
  %v580 = vadd.f32 %v576, %v578
  %581 = vrot.lane.b32.xlu0 %v570, 80
  %v582 = vpop.permute.xlu0 %581
  %v584 = vadd.f32 %v580, %v582
  %v585 = vmul.f32 %v584, 0.001953125
  %587 = vrot.lane.b32.xlu0 %v585, 16
  %v588 = vpop.permute.xlu0 %587
  %590 = vrot.lane.b32.xlu0 %v585, 32
  %v591 = vpop.permute.xlu0 %590
  %593 = vrot.lane.b32.xlu0 %v585, 48
  %v594 = vpop.permute.xlu0 %593
  %vm596 = vcmask 130048
  %v597 = vsel %vm596, %v585, %v588
  %v598 = vsel %vm314, %v597, %v591
  %vm599 = vcmask 392192
  %v600 = vsel %vm599, %v598, %v594
  %v601 = vlaneseq
  %v602 = vshrl.u32 %v601, 7
  %v603 = vsub.s32 0, %v602
  %v604 = vrot.slane %v600, %v603
  %v605 = vsub.f32 %v471, %v604
  %v606 = vsub.f32 %v474, %v604
  %v607 = vsub.f32 %v479, %v604
  %v608 = vsub.f32 %v482, %v604
  %v609 = vsub.f32 %v487, %v604
  %v610 = vsub.f32 %v490, %v604
  %v611 = vsub.f32 %v495, %v604
  %v612 = vsub.f32 %v498, %v604
  %v613 = vsub.f32 %v503, %v604
  %v614 = vsub.f32 %v506, %v604
  %v615 = vsub.f32 %v511, %v604
  %v616 = vsub.f32 %v514, %v604
  %v617 = vsub.f32 %v519, %v604
  %v618 = vsub.f32 %v522, %v604
  %v619 = vsub.f32 %v527, %v604
  %v620 = vsub.f32 %v530, %v604
  %v621 = vmul.f32 %v605, %v605
  %v622 = vmul.f32 %v606, %v606
  %v623 = vmul.f32 %v607, %v607
  %v624 = vmul.f32 %v608, %v608
  %v625 = vmul.f32 %v609, %v609
  %v626 = vmul.f32 %v610, %v610
  %v627 = vmul.f32 %v611, %v611
  %v628 = vmul.f32 %v612, %v612
  %v629 = vmul.f32 %v613, %v613
  %v630 = vmul.f32 %v614, %v614
  %v631 = vmul.f32 %v615, %v615
  %v632 = vmul.f32 %v616, %v616
  %v633 = vmul.f32 %v617, %v617
  %v634 = vmul.f32 %v618, %v618
  %v635 = vmul.f32 %v619, %v619
  %v636 = vmul.f32 %v620, %v620
  %v637 = vsel %vm533, %v621, 0.0
  %v638 = vsel %vm533, %v622, 0.0
  %v639 = vadd.f32 %v637, %v638
  %v640 = vsel %vm533, %v623, 0.0
  %v641 = vadd.f32 %v639, %v640
  %v642 = vsel %vm533, %v624, 0.0
  %v643 = vadd.f32 %v641, %v642
  %v644 = vsel %vm533, %v625, 0.0
  %v645 = vadd.f32 %v643, %v644
  %v646 = vsel %vm533, %v626, 0.0
  %v647 = vadd.f32 %v645, %v646
  %v648 = vsel %vm533, %v627, 0.0
  %v649 = vadd.f32 %v647, %v648
  %v650 = vsel %vm533, %v628, 0.0
  %v651 = vadd.f32 %v649, %v650
  %v652 = vsel %vm533, %v629, 0.0
  %v653 = vadd.f32 %v651, %v652
  %v654 = vsel %vm533, %v630, 0.0
  %v655 = vadd.f32 %v653, %v654
  %v656 = vsel %vm533, %v631, 0.0
  %v657 = vadd.f32 %v655, %v656
  %v658 = vsel %vm533, %v632, 0.0
  %v659 = vadd.f32 %v657, %v658
  %v660 = vsel %vm533, %v633, 0.0
  %v661 = vadd.f32 %v659, %v660
  %v662 = vsel %vm533, %v634, 0.0
  %v663 = vadd.f32 %v661, %v662
  %v664 = vsel %vm533, %v635, 0.0
  %v665 = vadd.f32 %v663, %v664
  %v666 = vsel %vm533, %v636, 0.0
  %v667 = vadd.f32 %v665, %v666
  %v668 = vrot.slane %v667, 4
  %v669 = vadd.f32 %v667, %v668
  %v670 = vrot.slane %v669, 2
  %v671 = vadd.f32 %v669, %v670
  %v672 = vrot.slane %v671, 1
  %v673 = vadd.f32 %v671, %v672
  %v674 = vadd.f32 %v673, 0.0
  %676 = vrot.lane.b32.xlu0 %v673, 112
  %v677 = vpop.permute.xlu0 %676
  %v679 = vadd.f32 %v674, %v677
  %680 = vrot.lane.b32.xlu0 %v673, 96
  %v681 = vpop.permute.xlu0 %680
  %v683 = vadd.f32 %v679, %v681
  %684 = vrot.lane.b32.xlu0 %v673, 80
  %v685 = vpop.permute.xlu0 %684
  %v687 = vadd.f32 %v683, %v685
  %v688 = vmul.f32 %v687, 0.001953125
  %v689 = vld [vmem:[%s2] sm:$0x1]
  %v690 = vadd.f32 %v688, 1e-05
  %v691 = vrsqrt.pop %v690
  %v692 = vmul.f32 %v689, %v691
  %v693 = vld [vmem:[%s3] sm:$0x1]
  %v694 = vmul.f32 %v585, %v692
  %v695 = vsub.f32 %v693, %v694
  %v697 = vlaneseq
  %v698 = vshrl.u32 %v697, 7
  %v699 = vsub.s32 0, %v698
  %v700 = vrot.slane %v692, %v699
  %701 = vrot.lane.b32.xlu0 %v700, 16
  %v702 = vpop.permute.xlu0 %701
  %704 = vrot.lane.b32.xlu0 %v700, 32
  %v705 = vpop.permute.xlu0 %704
  %707 = vrot.lane.b32.xlu0 %v700, 48
  %v708 = vpop.permute.xlu0 %707
  %v710 = vsel %vm596, %v692, %v702
  %v711 = vsel %vm314, %v710, %v705
  %v712 = vsel %vm599, %v711, %v708
  %v714 = vlaneseq
  %v715 = vshrl.u32 %v714, 7
  %v716 = vsub.s32 0, %v715
  %v717 = vrot.slane %v695, %v716
  %718 = vrot.lane.b32.xlu0 %v717, 16
  %v719 = vpop.permute.xlu0 %718
  %721 = vrot.lane.b32.xlu0 %v717, 32
  %v722 = vpop.permute.xlu0 %721
  %724 = vrot.lane.b32.xlu0 %v717, 48
  %v725 = vpop.permute.xlu0 %724
  %v727 = vsel %vm596, %v695, %v719
  %v728 = vsel %vm314, %v727, %v722
  %v729 = vsel %vm599, %v728, %v725
  %v730 = vlaneseq
  %v731 = vshrl.u32 %v730, 7
  %v732 = vsub.s32 0, %v731
  %v733 = vrot.slane %v712, %v732
  %v734 = vmul.f32 %v471, %v733
  %v735 = vmul.f32 %v474, %v733
  %v736 = vmul.f32 %v479, %v733
  %v737 = vmul.f32 %v482, %v733
  %v738 = vmul.f32 %v487, %v733
  %v739 = vmul.f32 %v490, %v733
  %v740 = vmul.f32 %v495, %v733
  %v741 = vmul.f32 %v498, %v733
  %v742 = vmul.f32 %v503, %v733
  %v743 = vmul.f32 %v506, %v733
  %v744 = vmul.f32 %v511, %v733
  %v745 = vmul.f32 %v514, %v733
  %v746 = vmul.f32 %v519, %v733
  %v747 = vmul.f32 %v522, %v733
  %v748 = vmul.f32 %v527, %v733
  %v749 = vmul.f32 %v530, %v733
  %v750 = vlaneseq
  %v751 = vshrl.u32 %v750, 7
  %v752 = vsub.s32 0, %v751
  %v753 = vrot.slane %v729, %v752
  %v754 = vadd.f32 %v734, %v753
  %v755 = vadd.f32 %v735, %v753
  %v756 = vadd.f32 %v736, %v753
  %v757 = vadd.f32 %v737, %v753
  %v758 = vadd.f32 %v738, %v753
  %v759 = vadd.f32 %v739, %v753
  %v760 = vadd.f32 %v740, %v753
  %v761 = vadd.f32 %v741, %v753
  %v762 = vadd.f32 %v742, %v753
  %v763 = vadd.f32 %v743, %v753
  %v764 = vadd.f32 %v744, %v753
  %v765 = vadd.f32 %v745, %v753
  %v766 = vadd.f32 %v746, %v753
  %v767 = vadd.f32 %v747, %v753
  %v768 = vadd.f32 %v748, %v753
  %v769 = vadd.f32 %v749, %v753
  %v770 = vmax.f32 %v754, 0.0
  %v771 = vmax.f32 %v755, 0.0
  %v772 = vmax.f32 %v756, 0.0
  %v773 = vmax.f32 %v757, 0.0
  %v774 = vmax.f32 %v758, 0.0
  %v775 = vmax.f32 %v759, 0.0
  %v776 = vmax.f32 %v760, 0.0
  %v777 = vmax.f32 %v761, 0.0
  %v778 = vmax.f32 %v762, 0.0
  %v779 = vmax.f32 %v763, 0.0
  %v780 = vmax.f32 %v764, 0.0
  %v781 = vmax.f32 %v765, 0.0
  %v782 = vmax.f32 %v766, 0.0
  %v783 = vmax.f32 %v767, 0.0
  %v784 = vmax.f32 %v768, 0.0
  %v785 = vmax.f32 %v769, 0.0
  %v786 = vpack.c.bf16 %v771, %v770
  %v787 = vpack.c.bf16 %v773, %v772
  %v788 = vpack.c.bf16 %v775, %v774
  %v789 = vpack.c.bf16 %v777, %v776
  %v790 = vpack.c.bf16 %v779, %v778
  %v791 = vpack.c.bf16 %v781, %v780
  %v792 = vpack.c.bf16 %v783, %v782
  %v793 = vpack.c.bf16 %v785, %v784
  %v802 = vunpack.c.l.b16 %v786
  %v803 = vunpack.c.h.b16 %v786
  %v804 = vunpack.c.l.b16 %v787
  %v805 = vunpack.c.h.b16 %v787
  %v806 = vunpack.c.l.b16 %v788
  %v807 = vunpack.c.h.b16 %v788
  %v808 = vunpack.c.l.b16 %v789
  %v809 = vunpack.c.h.b16 %v789
  %v810 = vunpack.c.l.b16 %v790
  %v811 = vunpack.c.h.b16 %v790
  %v812 = vunpack.c.l.b16 %v791
  %v813 = vunpack.c.h.b16 %v791
  %v814 = vunpack.c.l.b16 %v792
  %v815 = vunpack.c.h.b16 %v792
  %v816 = vunpack.c.l.b16 %v793
  %v817 = vunpack.c.h.b16 %v793
  %v818 = vpack.c.b16 %v802, %v802
  %v819 = vpack.c.b16 %v803, %v803
  %v820 = vpack.c.b16 %v804, %v804
  %v821 = vpack.c.b16 %v805, %v805
  %v822 = vpack.c.b16 %v806, %v806
  %v823 = vpack.c.b16 %v807, %v807
  %v824 = vpack.c.b16 %v808, %v808
  %v825 = vpack.c.b16 %v809, %v809
  %v826 = vpack.c.b16 %v810, %v810
  %v827 = vpack.c.b16 %v811, %v811
  %v828 = vpack.c.b16 %v812, %v812
  %v829 = vpack.c.b16 %v813, %v813
  %v830 = vpack.c.b16 %v814, %v814
  %v831 = vpack.c.b16 %v815, %v815
  %v832 = vpack.c.b16 %v816, %v816
  %v833 = vpack.c.b16 %v817, %v817
  %vm850 = vcmask 519168
  %851 = vst.msk [vmem:[%s4] sm:$0xf] %vm850, %v818
  %852 = vst.msk [vmem:[%s4 + $0x4] sm:$0xf] %vm850, %v819
  %853 = vst.msk [vmem:[%s4 + $0x8] sm:$0xf] %vm850, %v820
  %854 = vst.msk [vmem:[%s4 + $0xc] sm:$0xf] %vm850, %v821
  %855 = vst.msk [vmem:[%s4 + $0x10] sm:$0xf] %vm850, %v822
  %856 = vst.msk [vmem:[%s4 + $0x14] sm:$0xf] %vm850, %v823
  %857 = vst.msk [vmem:[%s4 + $0x18] sm:$0xf] %vm850, %v824
  %858 = vst.msk [vmem:[%s4 + $0x1c] sm:$0xf] %vm850, %v825
  %859 = vst.msk [vmem:[%s4 + $0x20] sm:$0xf] %vm850, %v826
  %860 = vst.msk [vmem:[%s4 + $0x24] sm:$0xf] %vm850, %v827
  %861 = vst.msk [vmem:[%s4 + $0x28] sm:$0xf] %vm850, %v828
  %862 = vst.msk [vmem:[%s4 + $0x2c] sm:$0xf] %vm850, %v829
  %863 = vst.msk [vmem:[%s4 + $0x30] sm:$0xf] %vm850, %v830
  %864 = vst.msk [vmem:[%s4 + $0x34] sm:$0xf] %vm850, %v831
  %865 = vst.msk [vmem:[%s4 + $0x38] sm:$0xf] %vm850, %v832
  %866 = vst.msk [vmem:[%s4 + $0x3c] sm:$0xf] %vm850, %v833
  // Predicated region
  $region18: #{generator_forward.7} parent=0 // pred_check
    _
  $region19: #{generator_forward.7} parent=0 // pred_check_branch
    %868 = sbr.rel (0) target = $region21
  $region20: #{generator_forward.7} parent=0 // pred_region
    _
  $region21: #{generator_forward.7} parent=0 // pred_fallthru
    _
  // Predicated region
  $region22: #{generator_forward.7} parent=0 // pred_check
    _
  $region23: #{generator_forward.7} parent=0 // pred_check_branch
    %870 = sbr.rel (0) target = $region25
  $region24: #{generator_forward.7} parent=0 // pred_region
    _
  $region25: #{generator_forward.7} parent=0 // pred_fallthru
    _

// kernel: generator_forward.8
$region0: #{generator_forward.8}
  #allocation0 [shape = 'u32[]', space=smem, size = 0x4, offset = 0x4, fixed_abs, tag = 'smem constant byte address 0x4 - core index']
  #allocation1 [shape = 'u32[144,128]{1,0:T(1,128)}', space=vmem, size = 0x12000, scoped, tag = 'internal scratch']
  %s0 = inlined_call_operand.vmem [shape: bf16[512,144], index: 0, kind: input, shape index: {}]
  %s1 = inlined_call_operand.vmem [shape: bf16[144,32], index: 1, kind: input, shape index: {}]
  %s2 = inlined_call_operand.vmem [shape: f32[1,8], index: 2, kind: input, shape index: {}]
  %s3 = inlined_call_operand.vmem [shape: f32[1,8], index: 3, kind: input, shape index: {}]
  %s4 = inlined_call_operand.vmem [shape: bf16[512,32], index: 4, kind: output, shape index: {}]
  %s5 = sld [smem:[#allocation0]]
  $region26: #{generator_forward.8} parent=0
    _
  %s7 = ssub.s32 1, %s5
  %s8 = scalar_select 0, %s7, %s5
  // Predicated region
  $region2: #{generator_forward.8} parent=0 // pred_check
    _
  $region3: #{generator_forward.8} parent=0 // pred_check_branch
    %10 = sbr.rel (0) target = $region5
  $region4: #{generator_forward.8} parent=0 // pred_region
    _
  $region5: #{generator_forward.8} parent=0 // pred_fallthru
    _
  // Predicated region
  $region6: #{generator_forward.8} parent=0 // pred_check
    _
  $region7: #{generator_forward.8} parent=0 // pred_check_branch
    %12 = sbr.rel (0) target = $region9
  $region8: #{generator_forward.8} parent=0 // pred_region
    _
  $region9: #{generator_forward.8} parent=0 // pred_fallthru
    _
  // Predicated region
  $region10: #{generator_forward.8} parent=0 // pred_check
    _
  $region11: #{generator_forward.8} parent=0 // pred_check_branch
    %14 = sbr.rel (0) target = $region13
  $region12: #{generator_forward.8} parent=0 // pred_region
    _
  $region13: #{generator_forward.8} parent=0 // pred_fallthru
    _
  // Predicated region
  $region14: #{generator_forward.8} parent=0 // pred_check
    _
  $region15: #{generator_forward.8} parent=0 // pred_check_branch
    %16 = sbr.rel (0) target = $region17
  $region16: #{generator_forward.8} parent=0 // pred_region
    _
  $region17: #{generator_forward.8} parent=0 // pred_fallthru
    _
  %v18 = vld [vmem:[%s0] sm:$0xff]
  %v19 = vld [vmem:[%s0 + $0x8] sm:$0xff]
  %v20 = vld [vmem:[%s0 + $0x10] sm:$0xff]
  %v21 = vld [vmem:[%s0 + $0x18] sm:$0xff]
  %v22 = vld [vmem:[%s0 + $0x20] sm:$0xff]
  %v23 = vld [vmem:[%s0 + $0x28] sm:$0xff]
  %v24 = vld [vmem:[%s0 + $0x30] sm:$0xff]
  %v25 = vld [vmem:[%s0 + $0x38] sm:$0xff]
  %v26 = vld [vmem:[%s0 + $0x40] sm:$0xff]
  %v27 = vld [vmem:[%s0 + $0x48] sm:$0xff]
  %v28 = vld [vmem:[%s0 + $0x50] sm:$0xff]
  %v29 = vld [vmem:[%s0 + $0x58] sm:$0xff]
  %v30 = vld [vmem:[%s0 + $0x60] sm:$0xff]
  %v31 = vld [vmem:[%s0 + $0x68] sm:$0xff]
  %v32 = vld [vmem:[%s0 + $0x70] sm:$0xff]
  %v33 = vld [vmem:[%s0 + $0x78] sm:$0xff]
  %v34 = vld [vmem:[%s0 + $0x80] sm:$0xff]
  %v35 = vld [vmem:[%s0 + $0x88] sm:$0xff]
  %v36 = vld [vmem:[%s0 + $0x90] sm:$0xff]
  %v37 = vld [vmem:[%s0 + $0x98] sm:$0xff]
  %v38 = vld [vmem:[%s0 + $0xa0] sm:$0xff]
  %v39 = vld [vmem:[%s0 + $0xa8] sm:$0xff]
  %v40 = vld [vmem:[%s0 + $0xb0] sm:$0xff]
  %v41 = vld [vmem:[%s0 + $0xb8] sm:$0xff]
  %v42 = vld [vmem:[%s0 + $0xc0] sm:$0xff]
  %v43 = vld [vmem:[%s0 + $0xc8] sm:$0xff]
  %v44 = vld [vmem:[%s0 + $0xd0] sm:$0xff]
  %v45 = vld [vmem:[%s0 + $0xd8] sm:$0xff]
  %v46 = vld [vmem:[%s0 + $0xe0] sm:$0xff]
  %v47 = vld [vmem:[%s0 + $0xe8] sm:$0xff]
  %v48 = vld [vmem:[%s0 + $0xf0] sm:$0xff]
  %v49 = vld [vmem:[%s0 + $0xf8] sm:$0xff]
  %v50 = vld [vmem:[%s0 + $0x100] sm:$0xff]
  %v51 = vld [vmem:[%s0 + $0x108] sm:$0xff]
  %v52 = vld [vmem:[%s0 + $0x110] sm:$0xff]
  %v53 = vld [vmem:[%s0 + $0x118] sm:$0xff]
  %v54 = vld [vmem:[%s0 + $0x120] sm:$0xff]
  %v55 = vld [vmem:[%s0 + $0x128] sm:$0xff]
  %v56 = vld [vmem:[%s0 + $0x130] sm:$0xff]
  %v57 = vld [vmem:[%s0 + $0x138] sm:$0xff]
  %v58 = vld [vmem:[%s0 + $0x140] sm:$0xff]
  %v59 = vld [vmem:[%s0 + $0x148] sm:$0xff]
  %v60 = vld [vmem:[%s0 + $0x150] sm:$0xff]
  %v61 = vld [vmem:[%s0 + $0x158] sm:$0xff]
  %v62 = vld [vmem:[%s0 + $0x160] sm:$0xff]
  %v63 = vld [vmem:[%s0 + $0x168] sm:$0xff]
  %v64 = vld [vmem:[%s0 + $0x170] sm:$0xff]
  %v65 = vld [vmem:[%s0 + $0x178] sm:$0xff]
  %v66 = vld [vmem:[%s0 + $0x180] sm:$0xff]
  %v67 = vld [vmem:[%s0 + $0x188] sm:$0xff]
  %v68 = vld [vmem:[%s0 + $0x190] sm:$0xff]
  %v69 = vld [vmem:[%s0 + $0x198] sm:$0xff]
  %v70 = vld [vmem:[%s0 + $0x1a0] sm:$0xff]
  %v71 = vld [vmem:[%s0 + $0x1a8] sm:$0xff]
  %v72 = vld [vmem:[%s0 + $0x1b0] sm:$0xff]
  %v73 = vld [vmem:[%s0 + $0x1b8] sm:$0xff]
  %v74 = vld [vmem:[%s0 + $0x1c0] sm:$0xff]
  %v75 = vld [vmem:[%s0 + $0x1c8] sm:$0xff]
  %v76 = vld [vmem:[%s0 + $0x1d0] sm:$0xff]
  %v77 = vld [vmem:[%s0 + $0x1d8] sm:$0xff]
  %v78 = vld [vmem:[%s0 + $0x1e0] sm:$0xff]
  %v79 = vld [vmem:[%s0 + $0x1e8] sm:$0xff]
  %v80 = vld [vmem:[%s0 + $0x1f0] sm:$0xff]
  %v81 = vld [vmem:[%s0 + $0x1f8] sm:$0xff]
  %v82 = vld [vmem:[%s1] sm:$0xf]
  %v83 = vld [vmem:[%s1 + $0x4] sm:$0xf]
  %v84 = vld [vmem:[%s1 + $0x8] sm:$0xf]
  %v85 = vld [vmem:[%s1 + $0xc] sm:$0xf]
  %v86 = vld [vmem:[%s1 + $0x10] sm:$0xf]
  %v87 = vld [vmem:[%s1 + $0x14] sm:$0xf]
  %v88 = vld [vmem:[%s1 + $0x18] sm:$0xf]
  %v89 = vld [vmem:[%s1 + $0x1c] sm:$0xf]
  %v90 = vld [vmem:[%s1 + $0x20] sm:$0xf]
  %v91 = vld [vmem:[%s1 + $0x24] sm:$0xf]
  %v92 = vld [vmem:[%s1 + $0x28] sm:$0xf]
  %v93 = vld [vmem:[%s1 + $0x2c] sm:$0xf]
  %v94 = vld [vmem:[%s1 + $0x30] sm:$0xf]
  %v95 = vld [vmem:[%s1 + $0x34] sm:$0xf]
  %v96 = vld [vmem:[%s1 + $0x38] sm:$0xf]
  %v97 = vld [vmem:[%s1 + $0x3c] sm:$0xf]
  %v98 = vld [vmem:[%s1 + $0x40] sm:$0xf]
  %v99 = vld [vmem:[%s1 + $0x44] sm:$0xf]
  %v164 = vunpack.c.l.b16 %v18
  %v165 = vunpack.c.h.b16 %v18
  %v166 = vunpack.c.l.b16 %v19
  %v167 = vunpack.c.h.b16 %v19
  %v168 = vunpack.c.l.b16 %v20
  %v169 = vunpack.c.h.b16 %v20
  %v170 = vunpack.c.l.b16 %v21
  %v171 = vunpack.c.h.b16 %v21
  %v172 = vunpack.c.l.b16 %v22
  %v173 = vunpack.c.h.b16 %v22
  %v174 = vunpack.c.l.b16 %v23
  %v175 = vunpack.c.h.b16 %v23
  %v176 = vunpack.c.l.b16 %v24
  %v177 = vunpack.c.h.b16 %v24
  %v178 = vunpack.c.l.b16 %v25
  %v179 = vunpack.c.h.b16 %v25
  %v180 = vunpack.c.l.b16 %v26
  %v181 = vunpack.c.h.b16 %v26
  %v182 = vunpack.c.l.b16 %v27
  %v183 = vunpack.c.h.b16 %v27
  %v184 = vunpack.c.l.b16 %v28
  %v185 = vunpack.c.h.b16 %v28
  %v186 = vunpack.c.l.b16 %v29
  %v187 = vunpack.c.h.b16 %v29
  %v188 = vunpack.c.l.b16 %v30
  %v189 = vunpack.c.h.b16 %v30
  %v190 = vunpack.c.l.b16 %v31
  %v191 = vunpack.c.h.b16 %v31
  %v192 = vunpack.c.l.b16 %v32
  %v193 = vunpack.c.h.b16 %v32
  %v194 = vunpack.c.l.b16 %v33
  %v195 = vunpack.c.h.b16 %v33
  %v196 = vunpack.c.l.b16 %v34
  %v197 = vunpack.c.h.b16 %v34
  %v198 = vunpack.c.l.b16 %v35
  %v199 = vunpack.c.h.b16 %v35
  %v200 = vunpack.c.l.b16 %v36
  %v201 = vunpack.c.h.b16 %v36
  %v202 = vunpack.c.l.b16 %v37
  %v203 = vunpack.c.h.b16 %v37
  %v204 = vunpack.c.l.b16 %v38
  %v205 = vunpack.c.h.b16 %v38
  %v206 = vunpack.c.l.b16 %v39
  %v207 = vunpack.c.h.b16 %v39
  %v208 = vunpack.c.l.b16 %v40
  %v209 = vunpack.c.h.b16 %v40
  %v210 = vunpack.c.l.b16 %v41
  %v211 = vunpack.c.h.b16 %v41
  %v212 = vunpack.c.l.b16 %v42
  %v213 = vunpack.c.h.b16 %v42
  %v214 = vunpack.c.l.b16 %v43
  %v215 = vunpack.c.h.b16 %v43
  %v216 = vunpack.c.l.b16 %v44
  %v217 = vunpack.c.h.b16 %v44
  %v218 = vunpack.c.l.b16 %v45
  %v219 = vunpack.c.h.b16 %v45
  %v220 = vunpack.c.l.b16 %v46
  %v221 = vunpack.c.h.b16 %v46
  %v222 = vunpack.c.l.b16 %v47
  %v223 = vunpack.c.h.b16 %v47
  %v224 = vunpack.c.l.b16 %v48
  %v225 = vunpack.c.h.b16 %v48
  %v226 = vunpack.c.l.b16 %v49
  %v227 = vunpack.c.h.b16 %v49
  %v228 = vunpack.c.l.b16 %v50
  %v229 = vunpack.c.h.b16 %v50
  %v230 = vunpack.c.l.b16 %v51
  %v231 = vunpack.c.h.b16 %v51
  %v232 = vunpack.c.l.b16 %v52
  %v233 = vunpack.c.h.b16 %v52
  %v234 = vunpack.c.l.b16 %v53
  %v235 = vunpack.c.h.b16 %v53
  %v236 = vunpack.c.l.b16 %v54
  %v237 = vunpack.c.h.b16 %v54
  %v238 = vunpack.c.l.b16 %v55
  %v239 = vunpack.c.h.b16 %v55
  %v240 = vunpack.c.l.b16 %v56
  %v241 = vunpack.c.h.b16 %v56
  %v242 = vunpack.c.l.b16 %v57
  %v243 = vunpack.c.h.b16 %v57
  %v244 = vunpack.c.l.b16 %v58
  %v245 = vunpack.c.h.b16 %v58
  %v246 = vunpack.c.l.b16 %v59
  %v247 = vunpack.c.h.b16 %v59
  %v248 = vunpack.c.l.b16 %v60
  %v249 = vunpack.c.h.b16 %v60
  %v250 = vunpack.c.l.b16 %v61
  %v251 = vunpack.c.h.b16 %v61
  %v252 = vunpack.c.l.b16 %v62
  %v253 = vunpack.c.h.b16 %v62
  %v254 = vunpack.c.l.b16 %v63
  %v255 = vunpack.c.h.b16 %v63
  %v256 = vunpack.c.l.b16 %v64
  %v257 = vunpack.c.h.b16 %v64
  %v258 = vunpack.c.l.b16 %v65
  %v259 = vunpack.c.h.b16 %v65
  %v260 = vunpack.c.l.b16 %v66
  %v261 = vunpack.c.h.b16 %v66
  %v262 = vunpack.c.l.b16 %v67
  %v263 = vunpack.c.h.b16 %v67
  %v264 = vunpack.c.l.b16 %v68
  %v265 = vunpack.c.h.b16 %v68
  %v266 = vunpack.c.l.b16 %v69
  %v267 = vunpack.c.h.b16 %v69
  %v268 = vunpack.c.l.b16 %v70
  %v269 = vunpack.c.h.b16 %v70
  %v270 = vunpack.c.l.b16 %v71
  %v271 = vunpack.c.h.b16 %v71
  %v272 = vunpack.c.l.b16 %v72
  %v273 = vunpack.c.h.b16 %v72
  %v274 = vunpack.c.l.b16 %v73
  %v275 = vunpack.c.h.b16 %v73
  %v276 = vunpack.c.l.b16 %v74
  %v277 = vunpack.c.h.b16 %v74
  %v278 = vunpack.c.l.b16 %v75
  %v279 = vunpack.c.h.b16 %v75
  %v280 = vunpack.c.l.b16 %v76
  %v281 = vunpack.c.h.b16 %v76
  %v282 = vunpack.c.l.b16 %v77
  %v283 = vunpack.c.h.b16 %v77
  %v284 = vunpack.c.l.b16 %v78
  %v285 = vunpack.c.h.b16 %v78
  %v286 = vunpack.c.l.b16 %v79
  %v287 = vunpack.c.h.b16 %v79
  %v288 = vunpack.c.l.b16 %v80
  %v289 = vunpack.c.h.b16 %v80
  %v290 = vunpack.c.l.b16 %v81
  %v291 = vunpack.c.h.b16 %v81
  %v292 = vpack.c.b16 %v166, %v164
  %v293 = vpack.c.b16 %v167, %v165
  %v294 = vpack.c.b16 %v170, %v168
  %v295 = vpack.c.b16 %v171, %v169
  %v296 = vpack.c.b16 %v174, %v172
  %v297 = vpack.c.b16 %v175, %v173
  %v298 = vpack.c.b16 %v178, %v176
  %v299 = vpack.c.b16 %v179, %v177
  %v300 = vpack.c.b16 %v182, %v180
  %v301 = vpack.c.b16 %v183, %v181
  %v302 = vpack.c.b16 %v186, %v184
  %v303 = vpack.c.b16 %v187, %v185
  %v304 = vpack.c.b16 %v190, %v188
  %v305 = vpack.c.b16 %v191, %v189
  %v306 = vpack.c.b16 %v194, %v192
  %v307 = vpack.c.b16 %v195, %v193
  %v308 = vpack.c.b16 %v198, %v196
  %v309 = vpack.c.b16 %v199, %v197
  %v310 = vpack.c.b16 %v202, %v200
  %v311 = vpack.c.b16 %v203, %v201
  %v312 = vpack.c.b16 %v206, %v204
  %v313 = vpack.c.b16 %v207, %v205
  %v314 = vpack.c.b16 %v210, %v208
  %v315 = vpack.c.b16 %v211, %v209
  %v316 = vpack.c.b16 %v214, %v212
  %v317 = vpack.c.b16 %v215, %v213
  %v318 = vpack.c.b16 %v218, %v216
  %v319 = vpack.c.b16 %v219, %v217
  %v320 = vpack.c.b16 %v222, %v220
  %v321 = vpack.c.b16 %v223, %v221
  %v322 = vpack.c.b16 %v226, %v224
  %v323 = vpack.c.b16 %v227, %v225
  %v324 = vpack.c.b16 %v230, %v228
  %v325 = vpack.c.b16 %v231, %v229
  %v326 = vpack.c.b16 %v234, %v232
  %v327 = vpack.c.b16 %v235, %v233
  %v328 = vpack.c.b16 %v238, %v236
  %v329 = vpack.c.b16 %v239, %v237
  %v330 = vpack.c.b16 %v242, %v240
  %v331 = vpack.c.b16 %v243, %v241
  %v332 = vpack.c.b16 %v246, %v244
  %v333 = vpack.c.b16 %v247, %v245
  %v334 = vpack.c.b16 %v250, %v248
  %v335 = vpack.c.b16 %v251, %v249
  %v336 = vpack.c.b16 %v254, %v252
  %v337 = vpack.c.b16 %v255, %v253
  %v338 = vpack.c.b16 %v258, %v256
  %v339 = vpack.c.b16 %v259, %v257
  %v340 = vpack.c.b16 %v262, %v260
  %v341 = vpack.c.b16 %v263, %v261
  %v342 = vpack.c.b16 %v266, %v264
  %v343 = vpack.c.b16 %v267, %v265
  %v344 = vpack.c.b16 %v270, %v268
  %v345 = vpack.c.b16 %v271, %v269
  %v346 = vpack.c.b16 %v274, %v272
  %v347 = vpack.c.b16 %v275, %v273
  %v348 = vpack.c.b16 %v278, %v276
  %v349 = vpack.c.b16 %v279, %v277
  %v350 = vpack.c.b16 %v282, %v280
  %v351 = vpack.c.b16 %v283, %v281
  %v352 = vpack.c.b16 %v286, %v284
  %v353 = vpack.c.b16 %v287, %v285
  %v354 = vpack.c.b16 %v290, %v288
  %v355 = vpack.c.b16 %v291, %v289
  %v406 = vunpack.c.l.b16 %v82
  %v407 = vunpack.c.l.b16 %v83
  %v408 = vunpack.c.l.b16 %v84
  %v409 = vunpack.c.l.b16 %v85
  %v410 = vunpack.c.l.b16 %v86
  %v411 = vunpack.c.l.b16 %v87
  %v412 = vunpack.c.l.b16 %v88
  %v413 = vunpack.c.l.b16 %v89
  %v414 = vunpack.c.l.b16 %v90
  %v415 = vunpack.c.l.b16 %v91
  %v416 = vunpack.c.l.b16 %v92
  %v417 = vunpack.c.l.b16 %v93
  %v418 = vunpack.c.l.b16 %v94
  %v419 = vunpack.c.l.b16 %v95
  %v420 = vunpack.c.l.b16 %v96
  %v421 = vunpack.c.l.b16 %v97
  %v422 = vunpack.c.l.b16 %v98
  %v423 = vunpack.c.l.b16 %v99
  %v424 = vpack.c.b16 %v407, %v406
  %v425 = vpack.c.b16 %v409, %v408
  %v426 = vpack.c.b16 %v411, %v410
  %v427 = vpack.c.b16 %v413, %v412
  %v428 = vpack.c.b16 %v415, %v414
  %v429 = vpack.c.b16 %v417, %v416
  %v430 = vpack.c.b16 %v419, %v418
  %v431 = vpack.c.b16 %v421, %v420
  %v432 = vpack.c.b16 %v423, %v422
  %vm442 = vcmask 130048
  %v444 = vsel %vm442, %v293, 0
  %v447 = vsel %vm442, %v295, 0
  %v450 = vsel %vm442, %v297, 0
  %v453 = vsel %vm442, %v299, 0
  %v456 = vsel %vm442, %v301, 0
  %v459 = vsel %vm442, %v303, 0
  %v462 = vsel %vm442, %v305, 0
  %v465 = vsel %vm442, %v307, 0
  %v468 = vsel %vm442, %v309, 0
  %v471 = vsel %vm442, %v311, 0
  %v474 = vsel %vm442, %v313, 0
  %v477 = vsel %vm442, %v315, 0
  %v480 = vsel %vm442, %v317, 0
  %v483 = vsel %vm442, %v319, 0
  %v486 = vsel %vm442, %v321, 0
  %v489 = vsel %vm442, %v323, 0
  %v492 = vsel %vm442, %v325, 0
  %v495 = vsel %vm442, %v327, 0
  %v498 = vsel %vm442, %v329, 0
  %v501 = vsel %vm442, %v331, 0
  %v504 = vsel %vm442, %v333, 0
  %v507 = vsel %vm442, %v335, 0
  %v510 = vsel %vm442, %v337, 0
  %v513 = vsel %vm442, %v339, 0
  %v516 = vsel %vm442, %v341, 0
  %v519 = vsel %vm442, %v343, 0
  %v522 = vsel %vm442, %v345, 0
  %v525 = vsel %vm442, %v347, 0
  %v528 = vsel %vm442, %v349, 0
  %v531 = vsel %vm442, %v351, 0
  %v534 = vsel %vm442, %v353, 0
  %v537 = vsel %vm442, %v355, 0
  %539 = vmatprep.subr.bf16.mxu0 0
  %540 = vmatpush1.bf16.msra.mxu0 %v424
  %541 = vmatprep.subr.bf16.mxu0 0
  %542 = vmatpush1.bf16.msra.mxu0 %v425
  %543 = vmatprep.subr.bf16.mxu0 0
  %544 = vmatpush1.bf16.msra.mxu0 %v426
  %545 = vmatprep.subr.bf16.mxu0 0
  %546 = vmatpush1.bf16.msra.mxu0 %v427
  %547 = vmatprep.subr.bf16.mxu0 0
  %548 = vmatpush1.bf16.msra.mxu0 %v428
  %549 = vmatprep.subr.bf16.mxu0 0
  %550 = vmatpush1.bf16.msra.mxu0 %v429
  %551 = vmatprep.subr.bf16.mxu0 0
  %552 = vmatpush1.bf16.msra.mxu0 %v430
  %553 = vmatprep.subr.bf16.mxu0 0
  %554 = vmatpush1.bf16.msra.mxu0 %v431
  %555 = vmatprep.subr.bf16.mxu0 0
  %556 = vmatpush1.bf16.msra.mxu0 %v432
  %557 = vmatprep.subr.bf16.mxu0 0
  %558 = vmatpush1.bf16.msra.mxu0 0
  %559 = vmatprep.subr.bf16.mxu0 0
  %560 = vmatpush1.bf16.msra.mxu0 0
  %561 = vmatprep.subr.bf16.mxu0 0
  %562 = vmatpush1.bf16.msra.mxu0 0
  %563 = vmatprep.subr.bf16.mxu0 0
  %564 = vmatpush1.bf16.msra.mxu0 0
  %565 = vmatprep.subr.bf16.mxu0 0
  %566 = vmatpush1.bf16.msra.mxu0 0
  %567 = vmatprep.subr.bf16.mxu0 0
  %568 = vmatpush1.bf16.msra.mxu0 0
  %569 = vmatprep.subr.bf16.mxu0 0
  %570 = vmatpush1.bf16.msra.mxu0 0
  %571 = vmatprep.mubr.bf16.mxu0 %v444
  %572 = vmatmul.mubr.bf16.gmra.mrb[0].mxu0 %v292
  %v573 = vpop.f32.mrb[0].mxu0
  %v574 = vadd.f32 0.0, %v573
  %v575 = vpop.f32.mrb[0].mxu0
  %v576 = vpop.f32.mrb[0].mxu0
  %v577 = vadd.f32 0.0, %v576
  %v578 = vpop.f32.mrb[0].mxu0
  %579 = vmatprep.mubr.bf16.mxu0 %v447
  %580 = vmatmul.mubr.bf16.gmra.mrb[0].mxu0 %v294
  %v581 = vpop.f32.mrb[0].mxu0
  %v582 = vadd.f32 0.0, %v581
  %v583 = vpop.f32.mrb[0].mxu0
  %v584 = vpop.f32.mrb[0].mxu0
  %v585 = vadd.f32 0.0, %v584
  %v586 = vpop.f32.mrb[0].mxu0
  %587 = vmatprep.mubr.bf16.mxu0 %v450
  %588 = vmatmul.mubr.bf16.gmra.mrb[0].mxu0 %v296
  %v589 = vpop.f32.mrb[0].mxu0
  %v590 = vadd.f32 0.0, %v589
  %v591 = vpop.f32.mrb[0].mxu0
  %v592 = vpop.f32.mrb[0].mxu0
  %v593 = vadd.f32 0.0, %v592
  %v594 = vpop.f32.mrb[0].mxu0
  %595 = vmatprep.mubr.bf16.mxu0 %v453
  %596 = vmatmul.mubr.bf16.gmra.mrb[0].mxu0 %v298
  %v597 = vpop.f32.mrb[0].mxu0
  %v598 = vadd.f32 0.0, %v597
  %v599 = vpop.f32.mrb[0].mxu0
  %v600 = vpop.f32.mrb[0].mxu0
  %v601 = vadd.f32 0.0, %v600
  %v602 = vpop.f32.mrb[0].mxu0
  %603 = vmatprep.mubr.bf16.mxu0 %v456
  %604 = vmatmul.mubr.bf16.gmra.mrb[0].mxu0 %v300
  %v605 = vpop.f32.mrb[0].mxu0
  %v606 = vadd.f32 0.0, %v605
  %v607 = vpop.f32.mrb[0].mxu0
  %v608 = vpop.f32.mrb[0].mxu0
  %v609 = vadd.f32 0.0, %v608
  %v610 = vpop.f32.mrb[0].mxu0
  %611 = vmatprep.mubr.bf16.mxu0 %v459
  %612 = vmatmul.mubr.bf16.gmra.mrb[0].mxu0 %v302
  %v613 = vpop.f32.mrb[0].mxu0
  %v614 = vadd.f32 0.0, %v613
  %v615 = vpop.f32.mrb[0].mxu0
  %v616 = vpop.f32.mrb[0].mxu0
  %v617 = vadd.f32 0.0, %v616
  %v618 = vpop.f32.mrb[0].mxu0
  %619 = vmatprep.mubr.bf16.mxu0 %v462
  %620 = vmatmul.mubr.bf16.gmra.mrb[0].mxu0 %v304
  %v621 = vpop.f32.mrb[0].mxu0
  %v622 = vadd.f32 0.0, %v621
  %v623 = vpop.f32.mrb[0].mxu0
  %v624 = vpop.f32.mrb[0].mxu0
  %v625 = vadd.f32 0.0, %v624
  %v626 = vpop.f32.mrb[0].mxu0
  %627 = vmatprep.mubr.bf16.mxu0 %v465
  %628 = vmatmul.mubr.bf16.gmra.mrb[0].mxu0 %v306
  %v629 = vpop.f32.mrb[0].mxu0
  %v630 = vadd.f32 0.0, %v629
  %v631 = vpop.f32.mrb[0].mxu0
  %v632 = vpop.f32.mrb[0].mxu0
  %v633 = vadd.f32 0.0, %v632
  %v634 = vpop.f32.mrb[0].mxu0
  %635 = vmatprep.mubr.bf16.mxu0 %v468
  %636 = vmatmul.mubr.bf16.gmra.mrb[0].mxu0 %v308
  %v637 = vpop.f32.mrb[0].mxu0
  %v638 = vadd.f32 0.0, %v637
  %v639 = vpop.f32.mrb[0].mxu0
  %v640 = vpop.f32.mrb[0].mxu0
  %v641 = vadd.f32 0.0, %v640
  %v642 = vpop.f32.mrb[0].mxu0
  %643 = vmatprep.mubr.bf16.mxu0 %v471
  %644 = vmatmul.mubr.bf16.gmra.mrb[0].mxu0 %v310
  %v645 = vpop.f32.mrb[0].mxu0
  %v646 = vadd.f32 0.0, %v645
  %v647 = vpop.f32.mrb[0].mxu0
  %v648 = vpop.f32.mrb[0].mxu0
  %v649 = vadd.f32 0.0, %v648
  %v650 = vpop.f32.mrb[0].mxu0
  %651 = vmatprep.mubr.bf16.mxu0 %v474
  %652 = vmatmul.mubr.bf16.gmra.mrb[0].mxu0 %v312
  %v653 = vpop.f32.mrb[0].mxu0
  %v654 = vadd.f32 0.0, %v653
  %v655 = vpop.f32.mrb[0].mxu0
  %v656 = vpop.f32.mrb[0].mxu0
  %v657 = vadd.f32 0.0, %v656
  %v658 = vpop.f32.mrb[0].mxu0
  %659 = vmatprep.mubr.bf16.mxu0 %v477
  %660 = vmatmul.mubr.bf16.gmra.mrb[0].mxu0 %v314
  %v661 = vpop.f32.mrb[0].mxu0
  %v662 = vadd.f32 0.0, %v661
  %v663 = vpop.f32.mrb[0].mxu0
  %v664 = vpop.f32.mrb[0].mxu0
  %v665 = vadd.f32 0.0, %v664
  %v666 = vpop.f32.mrb[0].mxu0
  %667 = vmatprep.mubr.bf16.mxu0 %v480
  %668 = vmatmul.mubr.bf16.gmra.mrb[0].mxu0 %v316
  %v669 = vpop.f32.mrb[0].mxu0
  %v670 = vadd.f32 0.0, %v669
  %v671 = vpop.f32.mrb[0].mxu0
  %v672 = vpop.f32.mrb[0].mxu0
  %v673 = vadd.f32 0.0, %v672
  %v674 = vpop.f32.mrb[0].mxu0
  %675 = vmatprep.mubr.bf16.mxu0 %v483
  %676 = vmatmul.mubr.bf16.gmra.mrb[0].mxu0 %v318
  %v677 = vpop.f32.mrb[0].mxu0
  %v678 = vadd.f32 0.0, %v677
  %v679 = vpop.f32.mrb[0].mxu0
  %v680 = vpop.f32.mrb[0].mxu0
  %v681 = vadd.f32 0.0, %v680
  %v682 = vpop.f32.mrb[0].mxu0
  %683 = vmatprep.mubr.bf16.mxu0 %v486
  %684 = vmatmul.mubr.bf16.gmra.mrb[0].mxu0 %v320
  %v685 = vpop.f32.mrb[0].mxu0
  %v686 = vadd.f32 0.0, %v685
  %v687 = vpop.f32.mrb[0].mxu0
  %v688 = vpop.f32.mrb[0].mxu0
  %v689 = vadd.f32 0.0, %v688
  %v690 = vpop.f32.mrb[0].mxu0
  %691 = vmatprep.mubr.bf16.mxu0 %v489
  %692 = vmatmul.mubr.bf16.gmra.mrb[0].mxu0 %v322
  %v693 = vpop.f32.mrb[0].mxu0
  %v694 = vadd.f32 0.0, %v693
  %v695 = vpop.f32.mrb[0].mxu0
  %v696 = vpop.f32.mrb[0].mxu0
  %v697 = vadd.f32 0.0, %v696
  %v698 = vpop.f32.mrb[0].mxu0
  %699 = vmatprep.mubr.bf16.mxu0 %v492
  %700 = vmatmul.mubr.bf16.gmra.mrb[0].mxu0 %v324
  %v701 = vpop.f32.mrb[0].mxu0
  %v702 = vadd.f32 0.0, %v701
  %v703 = vpop.f32.mrb[0].mxu0
  %v704 = vpop.f32.mrb[0].mxu0
  %v705 = vadd.f32 0.0, %v704
  %v706 = vpop.f32.mrb[0].mxu0
  %707 = vmatprep.mubr.bf16.mxu0 %v495
  %708 = vmatmul.mubr.bf16.gmra.mrb[0].mxu0 %v326
  %v709 = vpop.f32.mrb[0].mxu0
  %v710 = vadd.f32 0.0, %v709
  %v711 = vpop.f32.mrb[0].mxu0
  %v712 = vpop.f32.mrb[0].mxu0
  %v713 = vadd.f32 0.0, %v712
  %v714 = vpop.f32.mrb[0].mxu0
  %715 = vmatprep.mubr.bf16.mxu0 %v498
  %716 = vmatmul.mubr.bf16.gmra.mrb[0].mxu0 %v328
  %v717 = vpop.f32.mrb[0].mxu0
  %v718 = vadd.f32 0.0, %v717
  %v719 = vpop.f32.mrb[0].mxu0
  %v720 = vpop.f32.mrb[0].mxu0
  %v721 = vadd.f32 0.0, %v720
  %v722 = vpop.f32.mrb[0].mxu0
  %723 = vmatprep.mubr.bf16.mxu0 %v501
  %724 = vmatmul.mubr.bf16.gmra.mrb[0].mxu0 %v330
  %v725 = vpop.f32.mrb[0].mxu0
  %v726 = vadd.f32 0.0, %v725
  %v727 = vpop.f32.mrb[0].mxu0
  %v728 = vpop.f32.mrb[0].mxu0
  %v729 = vadd.f32 0.0, %v728
  %v730 = vpop.f32.mrb[0].mxu0
  %731 = vmatprep.mubr.bf16.mxu0 %v504
  %732 = vmatmul.mubr.bf16.gmra.mrb[0].mxu0 %v332
  %v733 = vpop.f32.mrb[0].mxu0
  %v734 = vadd.f32 0.0, %v733
  %v735 = vpop.f32.mrb[0].mxu0
  %v736 = vpop.f32.mrb[0].mxu0
  %v737 = vadd.f32 0.0, %v736
  %v738 = vpop.f32.mrb[0].mxu0
  %739 = vmatprep.mubr.bf16.mxu0 %v507
  %740 = vmatmul.mubr.bf16.gmra.mrb[0].mxu0 %v334
  %v741 = vpop.f32.mrb[0].mxu0
  %v742 = vadd.f32 0.0, %v741
  %v743 = vpop.f32.mrb[0].mxu0
  %v744 = vpop.f32.mrb[0].mxu0
  %v745 = vadd.f32 0.0, %v744
  %v746 = vpop.f32.mrb[0].mxu0
  %747 = vmatprep.mubr.bf16.mxu0 %v510
  %748 = vmatmul.mubr.bf16.gmra.mrb[0].mxu0 %v336
  %v749 = vpop.f32.mrb[0].mxu0
  %v750 = vadd.f32 0.0, %v749
  %v751 = vpop.f32.mrb[0].mxu0
  %v752 = vpop.f32.mrb[0].mxu0
  %v753 = vadd.f32 0.0, %v752
  %v754 = vpop.f32.mrb[0].mxu0
  %755 = vmatprep.mubr.bf16.mxu0 %v513
  %756 = vmatmul.mubr.bf16.gmra.mrb[0].mxu0 %v338
  %v757 = vpop.f32.mrb[0].mxu0
  %v758 = vadd.f32 0.0, %v757
  %v759 = vpop.f32.mrb[0].mxu0
  %v760 = vpop.f32.mrb[0].mxu0
  %v761 = vadd.f32 0.0, %v760
  %v762 = vpop.f32.mrb[0].mxu0
  %763 = vmatprep.mubr.bf16.mxu0 %v516
  %764 = vmatmul.mubr.bf16.gmra.mrb[0].mxu0 %v340
  %v765 = vpop.f32.mrb[0].mxu0
  %v766 = vadd.f32 0.0, %v765
  %v767 = vpop.f32.mrb[0].mxu0
  %v768 = vpop.f32.mrb[0].mxu0
  %v769 = vadd.f32 0.0, %v768
  %v770 = vpop.f32.mrb[0].mxu0
  %771 = vmatprep.mubr.bf16.mxu0 %v519
  %772 = vmatmul.mubr.bf16.gmra.mrb[0].mxu0 %v342
  %v773 = vpop.f32.mrb[0].mxu0
  %v774 = vadd.f32 0.0, %v773
  %v775 = vpop.f32.mrb[0].mxu0
  %v776 = vpop.f32.mrb[0].mxu0
  %v777 = vadd.f32 0.0, %v776
  %v778 = vpop.f32.mrb[0].mxu0
  %779 = vmatprep.mubr.bf16.mxu0 %v522
  %780 = vmatmul.mubr.bf16.gmra.mrb[0].mxu0 %v344
  %v781 = vpop.f32.mrb[0].mxu0
  %v782 = vadd.f32 0.0, %v781
  %v783 = vpop.f32.mrb[0].mxu0
  %v784 = vpop.f32.mrb[0].mxu0
  %v785 = vadd.f32 0.0, %v784
  %v786 = vpop.f32.mrb[0].mxu0
  %787 = vmatprep.mubr.bf16.mxu0 %v525
  %788 = vmatmul.mubr.bf16.gmra.mrb[0].mxu0 %v346
  %v789 = vpop.f32.mrb[0].mxu0
  %v790 = vadd.f32 0.0, %v789
  %v791 = vpop.f32.mrb[0].mxu0
  %v792 = vpop.f32.mrb[0].mxu0
  %v793 = vadd.f32 0.0, %v792
  %v794 = vpop.f32.mrb[0].mxu0
  %795 = vmatprep.mubr.bf16.mxu0 %v528
  %796 = vmatmul.mubr.bf16.gmra.mrb[0].mxu0 %v348
  %v797 = vpop.f32.mrb[0].mxu0
  %v798 = vadd.f32 0.0, %v797
  %v799 = vpop.f32.mrb[0].mxu0
  %v800 = vpop.f32.mrb[0].mxu0
  %v801 = vadd.f32 0.0, %v800
  %v802 = vpop.f32.mrb[0].mxu0
  %803 = vmatprep.mubr.bf16.mxu0 %v531
  %804 = vmatmul.mubr.bf16.gmra.mrb[0].mxu0 %v350
  %v805 = vpop.f32.mrb[0].mxu0
  %v806 = vadd.f32 0.0, %v805
  %v807 = vpop.f32.mrb[0].mxu0
  %v808 = vpop.f32.mrb[0].mxu0
  %v809 = vadd.f32 0.0, %v808
  %v810 = vpop.f32.mrb[0].mxu0
  %811 = vmatprep.mubr.bf16.mxu0 %v534
  %812 = vmatmul.mubr.bf16.gmra.mrb[0].mxu0 %v352
  %v813 = vpop.f32.mrb[0].mxu0
  %v814 = vadd.f32 0.0, %v813
  %v815 = vpop.f32.mrb[0].mxu0
  %v816 = vpop.f32.mrb[0].mxu0
  %v817 = vadd.f32 0.0, %v816
  %v818 = vpop.f32.mrb[0].mxu0
  %819 = vmatprep.mubr.bf16.mxu0 %v537
  %820 = vmatmul.mubr.bf16.gmra.mrb[0].mxu0 %v354
  %v821 = vpop.f32.mrb[0].mxu0
  %v822 = vadd.f32 0.0, %v821
  %v823 = vpop.f32.mrb[0].mxu0
  %v824 = vpop.f32.mrb[0].mxu0
  %v825 = vadd.f32 0.0, %v824
  %v826 = vpop.f32.mrb[0].mxu0
  %827 = vdwg.mxu0
  %vm828 = vcmask 261120
  %v829 = vsel %vm828, %v574, 0.0
  %v830 = vsel %vm828, %v577, 0.0
  %v831 = vadd.f32 %v829, %v830
  %v832 = vsel %vm828, %v582, 0.0
  %v833 = vadd.f32 %v831, %v832
  %v834 = vsel %vm828, %v585, 0.0
  %v835 = vadd.f32 %v833, %v834
  %v836 = vsel %vm828, %v590, 0.0
  %v837 = vadd.f32 %v835, %v836
  %v838 = vsel %vm828, %v593, 0.0
  %v839 = vadd.f32 %v837, %v838
  %v840 = vsel %vm828, %v598, 0.0
  %v841 = vadd.f32 %v839, %v840
  %v842 = vsel %vm828, %v601, 0.0
  %v843 = vadd.f32 %v841, %v842
  %v844 = vsel %vm828, %v606, 0.0
  %v845 = vadd.f32 %v843, %v844
  %v846 = vsel %vm828, %v609, 0.0
  %v847 = vadd.f32 %v845, %v846
  %v848 = vsel %vm828, %v614, 0.0
  %v849 = vadd.f32 %v847, %v848
  %v850 = vsel %vm828, %v617, 0.0
  %v851 = vadd.f32 %v849, %v850
  %v852 = vsel %vm828, %v622, 0.0
  %v853 = vadd.f32 %v851, %v852
  %v854 = vsel %vm828, %v625, 0.0
  %v855 = vadd.f32 %v853, %v854
  %v856 = vsel %vm828, %v630, 0.0
  %v857 = vadd.f32 %v855, %v856
  %v858 = vsel %vm828, %v633, 0.0
  %v859 = vadd.f32 %v857, %v858
  %v860 = vsel %vm828, %v638, 0.0
  %v861 = vadd.f32 %v859, %v860
  %v862 = vsel %vm828, %v641, 0.0
  %v863 = vadd.f32 %v861, %v862
  %v864 = vsel %vm828, %v646, 0.0
  %v865 = vadd.f32 %v863, %v864
  %v866 = vsel %vm828, %v649, 0.0
  %v867 = vadd.f32 %v865, %v866
  %v868 = vsel %vm828, %v654, 0.0
  %v869 = vadd.f32 %v867, %v868
  %v870 = vsel %vm828, %v657, 0.0
  %v871 = vadd.f32 %v869, %v870
  %v872 = vsel %vm828, %v662, 0.0
  %v873 = vadd.f32 %v871, %v872
  %v874 = vsel %vm828, %v665, 0.0
  %v875 = vadd.f32 %v873, %v874
  %v876 = vsel %vm828, %v670, 0.0
  %v877 = vadd.f32 %v875, %v876
  %v878 = vsel %vm828, %v673, 0.0
  %v879 = vadd.f32 %v877, %v878
  %v880 = vsel %vm828, %v678, 0.0
  %v881 = vadd.f32 %v879, %v880
  %v882 = vsel %vm828, %v681, 0.0
  %v883 = vadd.f32 %v881, %v882
  %v884 = vsel %vm828, %v686, 0.0
  %v885 = vadd.f32 %v883, %v884
  %v886 = vsel %vm828, %v689, 0.0
  %v887 = vadd.f32 %v885, %v886
  %v888 = vsel %vm828, %v694, 0.0
  %v889 = vadd.f32 %v887, %v888
  %v890 = vsel %vm828, %v697, 0.0
  %v891 = vadd.f32 %v889, %v890
  %v892 = vsel %vm828, %v702, 0.0
  %v893 = vadd.f32 %v891, %v892
  %v894 = vsel %vm828, %v705, 0.0
  %v895 = vadd.f32 %v893, %v894
  %v896 = vsel %vm828, %v710, 0.0
  %v897 = vadd.f32 %v895, %v896
  %v898 = vsel %vm828, %v713, 0.0
  %v899 = vadd.f32 %v897, %v898
  %v900 = vsel %vm828, %v718, 0.0
  %v901 = vadd.f32 %v899, %v900
  %v902 = vsel %vm828, %v721, 0.0
  %v903 = vadd.f32 %v901, %v902
  %v904 = vsel %vm828, %v726, 0.0
  %v905 = vadd.f32 %v903, %v904
  %v906 = vsel %vm828, %v729, 0.0
  %v907 = vadd.f32 %v905, %v906
  %v908 = vsel %vm828, %v734, 0.0
  %v909 = vadd.f32 %v907, %v908
  %v910 = vsel %vm828, %v737, 0.0
  %v911 = vadd.f32 %v909, %v910
  %v912 = vsel %vm828, %v742, 0.0
  %v913 = vadd.f32 %v911, %v912
  %v914 = vsel %vm828, %v745, 0.0
  %v915 = vadd.f32 %v913, %v914
  %v916 = vsel %vm828, %v750, 0.0
  %v917 = vadd.f32 %v915, %v916
  %v918 = vsel %vm828, %v753, 0.0
  %v919 = vadd.f32 %v917, %v918
  %v920 = vsel %vm828, %v758, 0.0
  %v921 = vadd.f32 %v919, %v920
  %v922 = vsel %vm828, %v761, 0.0
  %v923 = vadd.f32 %v921, %v922
  %v924 = vsel %vm828, %v766, 0.0
  %v925 = vadd.f32 %v923, %v924
  %v926 = vsel %vm828, %v769, 0.0
  %v927 = vadd.f32 %v925, %v926
  %v928 = vsel %vm828, %v774, 0.0
  %v929 = vadd.f32 %v927, %v928
  %v930 = vsel %vm828, %v777, 0.0
  %v931 = vadd.f32 %v929, %v930
  %v932 = vsel %vm828, %v782, 0.0
  %v933 = vadd.f32 %v931, %v932
  %v934 = vsel %vm828, %v785, 0.0
  %v935 = vadd.f32 %v933, %v934
  %v936 = vsel %vm828, %v790, 0.0
  %v937 = vadd.f32 %v935, %v936
  %v938 = vsel %vm828, %v793, 0.0
  %v939 = vadd.f32 %v937, %v938
  %v940 = vsel %vm828, %v798, 0.0
  %v941 = vadd.f32 %v939, %v940
  %v942 = vsel %vm828, %v801, 0.0
  %v943 = vadd.f32 %v941, %v942
  %v944 = vsel %vm828, %v806, 0.0
  %v945 = vadd.f32 %v943, %v944
  %v946 = vsel %vm828, %v809, 0.0
  %v947 = vadd.f32 %v945, %v946
  %v948 = vsel %vm828, %v814, 0.0
  %v949 = vadd.f32 %v947, %v948
  %v950 = vsel %vm828, %v817, 0.0
  %v951 = vadd.f32 %v949, %v950
  %v952 = vsel %vm828, %v822, 0.0
  %v953 = vadd.f32 %v951, %v952
  %v954 = vsel %vm828, %v825, 0.0
  %v955 = vadd.f32 %v953, %v954
  %v956 = vrot.slane %v955, 4
  %v957 = vadd.f32 %v955, %v956
  %v958 = vrot.slane %v957, 2
  %v959 = vadd.f32 %v957, %v958
  %v960 = vrot.slane %v959, 1
  %v961 = vadd.f32 %v959, %v960
  %v962 = vadd.f32 %v961, 0.0
  %964 = vrot.lane.b32.xlu0 %v961, 120
  %v965 = vpop.permute.xlu0 %964
  %v967 = vadd.f32 %v962, %v965
  %968 = vrot.lane.b32.xlu0 %v961, 112
  %v969 = vpop.permute.xlu0 %968
  %v971 = vadd.f32 %v967, %v969
  %972 = vrot.lane.b32.xlu0 %v961, 104
  %v973 = vpop.permute.xlu0 %972
  %v975 = vadd.f32 %v971, %v973
  %v976 = vmul.f32 %v975, 0.00048828125
  %978 = vrot.lane.b32.xlu0 %v976, 8
  %v979 = vpop.permute.xlu0 %978
  %981 = vrot.lane.b32.xlu0 %v976, 16
  %v982 = vpop.permute.xlu0 %981
  %984 = vrot.lane.b32.xlu0 %v976, 24
  %v985 = vpop.permute.xlu0 %984
  %vm987 = vcmask 64512
  %v988 = vsel %vm987, %v976, %v979
  %v989 = vsel %vm442, %v988, %v982
  %vm990 = vcmask 195584
  %v991 = vsel %vm990, %v989, %v985
  %v992 = vlaneseq
  %v993 = vshrl.u32 %v992, 7
  %v994 = vsub.s32 0, %v993
  %v995 = vrot.slane %v991, %v994
  %v996 = vsub.f32 %v574, %v995
  %v997 = vsub.f32 %v577, %v995
  %v998 = vsub.f32 %v582, %v995
  %v999 = vsub.f32 %v585, %v995
  %v1000 = vsub.f32 %v590, %v995
  %v1001 = vsub.f32 %v593, %v995
  %v1002 = vsub.f32 %v598, %v995
  %v1003 = vsub.f32 %v601, %v995
  %v1004 = vsub.f32 %v606, %v995
  %v1005 = vsub.f32 %v609, %v995
  %v1006 = vsub.f32 %v614, %v995
  %v1007 = vsub.f32 %v617, %v995
  %v1008 = vsub.f32 %v622, %v995
  %v1009 = vsub.f32 %v625, %v995
  %v1010 = vsub.f32 %v630, %v995
  %v1011 = vsub.f32 %v633, %v995
  %v1012 = vsub.f32 %v638, %v995
  %v1013 = vsub.f32 %v641, %v995
  %v1014 = vsub.f32 %v646, %v995
  %v1015 = vsub.f32 %v649, %v995
  %v1016 = vsub.f32 %v654, %v995
  %v1017 = vsub.f32 %v657, %v995
  %v1018 = vsub.f32 %v662, %v995
  %v1019 = vsub.f32 %v665, %v995
  %v1020 = vsub.f32 %v670, %v995
  %v1021 = vsub.f32 %v673, %v995
  %v1022 = vsub.f32 %v678, %v995
  %v1023 = vsub.f32 %v681, %v995
  %v1024 = vsub.f32 %v686, %v995
  %v1025 = vsub.f32 %v689, %v995
  %v1026 = vsub.f32 %v694, %v995
  %v1027 = vsub.f32 %v697, %v995
  %v1028 = vsub.f32 %v702, %v995
  %v1029 = vsub.f32 %v705, %v995
  %v1030 = vsub.f32 %v710, %v995
  %v1031 = vsub.f32 %v713, %v995
  %v1032 = vsub.f32 %v718, %v995
  %v1033 = vsub.f32 %v721, %v995
  %v1034 = vsub.f32 %v726, %v995
  %v1035 = vsub.f32 %v729, %v995
  %v1036 = vsub.f32 %v734, %v995
  %v1037 = vsub.f32 %v737, %v995
  %v1038 = vsub.f32 %v742, %v995
  %v1039 = vsub.f32 %v745, %v995
  %v1040 = vsub.f32 %v750, %v995
  %v1041 = vsub.f32 %v753, %v995
  %v1042 = vsub.f32 %v758, %v995
  %v1043 = vsub.f32 %v761, %v995
  %v1044 = vsub.f32 %v766, %v995
  %v1045 = vsub.f32 %v769, %v995
  %v1046 = vsub.f32 %v774, %v995
  %v1047 = vsub.f32 %v777, %v995
  %v1048 = vsub.f32 %v782, %v995
  %v1049 = vsub.f32 %v785, %v995
  %v1050 = vsub.f32 %v790, %v995
  %v1051 = vsub.f32 %v793, %v995
  %v1052 = vsub.f32 %v798, %v995
  %v1053 = vsub.f32 %v801, %v995
  %v1054 = vsub.f32 %v806, %v995
  %v1055 = vsub.f32 %v809, %v995
  %v1056 = vsub.f32 %v814, %v995
  %v1057 = vsub.f32 %v817, %v995
  %v1058 = vsub.f32 %v822, %v995
  %v1059 = vsub.f32 %v825, %v995
  %v1060 = vmul.f32 %v996, %v996
  %v1061 = vmul.f32 %v997, %v997
  %v1062 = vmul.f32 %v998, %v998
  %v1063 = vmul.f32 %v999, %v999
  %v1064 = vmul.f32 %v1000, %v1000
  %v1065 = vmul.f32 %v1001, %v1001
  %v1066 = vmul.f32 %v1002, %v1002
  %v1067 = vmul.f32 %v1003, %v1003
  %v1068 = vmul.f32 %v1004, %v1004
  %v1069 = vmul.f32 %v1005, %v1005
  %v1070 = vmul.f32 %v1006, %v1006
  %v1071 = vmul.f32 %v1007, %v1007
  %v1072 = vmul.f32 %v1008, %v1008
  %v1073 = vmul.f32 %v1009, %v1009
  %v1074 = vmul.f32 %v1010, %v1010
  %v1075 = vmul.f32 %v1011, %v1011
  %v1076 = vmul.f32 %v1012, %v1012
  %v1077 = vmul.f32 %v1013, %v1013
  %v1078 = vmul.f32 %v1014, %v1014
  %v1079 = vmul.f32 %v1015, %v1015
  %v1080 = vmul.f32 %v1016, %v1016
  %v1081 = vmul.f32 %v1017, %v1017
  %v1082 = vmul.f32 %v1018, %v1018
  %v1083 = vmul.f32 %v1019, %v1019
  %v1084 = vmul.f32 %v1020, %v1020
  %v1085 = vmul.f32 %v1021, %v1021
  %v1086 = vmul.f32 %v1022, %v1022
  %v1087 = vmul.f32 %v1023, %v1023
  %v1088 = vmul.f32 %v1024, %v1024
  %v1089 = vmul.f32 %v1025, %v1025
  %v1090 = vmul.f32 %v1026, %v1026
  %v1091 = vmul.f32 %v1027, %v1027
  %v1092 = vmul.f32 %v1028, %v1028
  %v1093 = vmul.f32 %v1029, %v1029
  %v1094 = vmul.f32 %v1030, %v1030
  %v1095 = vmul.f32 %v1031, %v1031
  %v1096 = vmul.f32 %v1032, %v1032
  %v1097 = vmul.f32 %v1033, %v1033
  %v1098 = vmul.f32 %v1034, %v1034
  %v1099 = vmul.f32 %v1035, %v1035
  %v1100 = vmul.f32 %v1036, %v1036
  %v1101 = vmul.f32 %v1037, %v1037
  %v1102 = vmul.f32 %v1038, %v1038
  %v1103 = vmul.f32 %v1039, %v1039
  %v1104 = vmul.f32 %v1040, %v1040
  %v1105 = vmul.f32 %v1041, %v1041
  %v1106 = vmul.f32 %v1042, %v1042
  %v1107 = vmul.f32 %v1043, %v1043
  %v1108 = vmul.f32 %v1044, %v1044
  %v1109 = vmul.f32 %v1045, %v1045
  %v1110 = vmul.f32 %v1046, %v1046
  %v1111 = vmul.f32 %v1047, %v1047
  %v1112 = vmul.f32 %v1048, %v1048
  %v1113 = vmul.f32 %v1049, %v1049
  %v1114 = vmul.f32 %v1050, %v1050
  %v1115 = vmul.f32 %v1051, %v1051
  %v1116 = vmul.f32 %v1052, %v1052
  %v1117 = vmul.f32 %v1053, %v1053
  %v1118 = vmul.f32 %v1054, %v1054
  %v1119 = vmul.f32 %v1055, %v1055
  %v1120 = vmul.f32 %v1056, %v1056
  %v1121 = vmul.f32 %v1057, %v1057
  %v1122 = vmul.f32 %v1058, %v1058
  %v1123 = vmul.f32 %v1059, %v1059
  %v1124 = vsel %vm828, %v1060, 0.0
  %v1125 = vsel %vm828, %v1061, 0.0
  %v1126 = vadd.f32 %v1124, %v1125
  %v1127 = vsel %vm828, %v1062, 0.0
  %v1128 = vadd.f32 %v1126, %v1127
  %v1129 = vsel %vm828, %v1063, 0.0
  %v1130 = vadd.f32 %v1128, %v1129
  %v1131 = vsel %vm828, %v1064, 0.0
  %v1132 = vadd.f32 %v1130, %v1131
  %v1133 = vsel %vm828, %v1065, 0.0
  %v1134 = vadd.f32 %v1132, %v1133
  %v1135 = vsel %vm828, %v1066, 0.0
  %v1136 = vadd.f32 %v1134, %v1135
  %v1137 = vsel %vm828, %v1067, 0.0
  %v1138 = vadd.f32 %v1136, %v1137
  %v1139 = vsel %vm828, %v1068, 0.0
  %v1140 = vadd.f32 %v1138, %v1139
  %v1141 = vsel %vm828, %v1069, 0.0
  %v1142 = vadd.f32 %v1140, %v1141
  %v1143 = vsel %vm828, %v1070, 0.0
  %v1144 = vadd.f32 %v1142, %v1143
  %v1145 = vsel %vm828, %v1071, 0.0
  %v1146 = vadd.f32 %v1144, %v1145
  %v1147 = vsel %vm828, %v1072, 0.0
  %v1148 = vadd.f32 %v1146, %v1147
  %v1149 = vsel %vm828, %v1073, 0.0
  %v1150 = vadd.f32 %v1148, %v1149
  %v1151 = vsel %vm828, %v1074, 0.0
  %v1152 = vadd.f32 %v1150, %v1151
  %v1153 = vsel %vm828, %v1075, 0.0
  %v1154 = vadd.f32 %v1152, %v1153
  %v1155 = vsel %vm828, %v1076, 0.0
  %v1156 = vadd.f32 %v1154, %v1155
  %v1157 = vsel %vm828, %v1077, 0.0
  %v1158 = vadd.f32 %v1156, %v1157
  %v1159 = vsel %vm828, %v1078, 0.0
  %v1160 = vadd.f32 %v1158, %v1159
  %v1161 = vsel %vm828, %v1079, 0.0
  %v1162 = vadd.f32 %v1160, %v1161
  %v1163 = vsel %vm828, %v1080, 0.0
  %v1164 = vadd.f32 %v1162, %v1163
  %v1165 = vsel %vm828, %v1081, 0.0
  %v1166 = vadd.f32 %v1164, %v1165
  %v1167 = vsel %vm828, %v1082, 0.0
  %v1168 = vadd.f32 %v1166, %v1167
  %v1169 = vsel %vm828, %v1083, 0.0
  %v1170 = vadd.f32 %v1168, %v1169
  %v1171 = vsel %vm828, %v1084, 0.0
  %v1172 = vadd.f32 %v1170, %v1171
  %v1173 = vsel %vm828, %v1085, 0.0
  %v1174 = vadd.f32 %v1172, %v1173
  %v1175 = vsel %vm828, %v1086, 0.0
  %v1176 = vadd.f32 %v1174, %v1175
  %v1177 = vsel %vm828, %v1087, 0.0
  %v1178 = vadd.f32 %v1176, %v1177
  %v1179 = vsel %vm828, %v1088, 0.0
  %v1180 = vadd.f32 %v1178, %v1179
  %v1181 = vsel %vm828, %v1089, 0.0
  %v1182 = vadd.f32 %v1180, %v1181
  %v1183 = vsel %vm828, %v1090, 0.0
  %v1184 = vadd.f32 %v1182, %v1183
  %v1185 = vsel %vm828, %v1091, 0.0
  %v1186 = vadd.f32 %v1184, %v1185
  %v1187 = vsel %vm828, %v1092, 0.0
  %v1188 = vadd.f32 %v1186, %v1187
  %v1189 = vsel %vm828, %v1093, 0.0
  %v1190 = vadd.f32 %v1188, %v1189
  %v1191 = vsel %vm828, %v1094, 0.0
  %v1192 = vadd.f32 %v1190, %v1191
  %v1193 = vsel %vm828, %v1095, 0.0
  %v1194 = vadd.f32 %v1192, %v1193
  %v1195 = vsel %vm828, %v1096, 0.0
  %v1196 = vadd.f32 %v1194, %v1195
  %v1197 = vsel %vm828, %v1097, 0.0
  %v1198 = vadd.f32 %v1196, %v1197
  %v1199 = vsel %vm828, %v1098, 0.0
  %v1200 = vadd.f32 %v1198, %v1199
  %v1201 = vsel %vm828, %v1099, 0.0
  %v1202 = vadd.f32 %v1200, %v1201
  %v1203 = vsel %vm828, %v1100, 0.0
  %v1204 = vadd.f32 %v1202, %v1203
  %v1205 = vsel %vm828, %v1101, 0.0
  %v1206 = vadd.f32 %v1204, %v1205
  %v1207 = vsel %vm828, %v1102, 0.0
  %v1208 = vadd.f32 %v1206, %v1207
  %v1209 = vsel %vm828, %v1103, 0.0
  %v1210 = vadd.f32 %v1208, %v1209
  %v1211 = vsel %vm828, %v1104, 0.0
  %v1212 = vadd.f32 %v1210, %v1211
  %v1213 = vsel %vm828, %v1105, 0.0
  %v1214 = vadd.f32 %v1212, %v1213
  %v1215 = vsel %vm828, %v1106, 0.0
  %v1216 = vadd.f32 %v1214, %v1215
  %v1217 = vsel %vm828, %v1107, 0.0
  %v1218 = vadd.f32 %v1216, %v1217
  %v1219 = vsel %vm828, %v1108, 0.0
  %v1220 = vadd.f32 %v1218, %v1219
  %v1221 = vsel %vm828, %v1109, 0.0
  %v1222 = vadd.f32 %v1220, %v1221
  %v1223 = vsel %vm828, %v1110, 0.0
  %v1224 = vadd.f32 %v1222, %v1223
  %v1225 = vsel %vm828, %v1111, 0.0
  %v1226 = vadd.f32 %v1224, %v1225
  %v1227 = vsel %vm828, %v1112, 0.0
  %v1228 = vadd.f32 %v1226, %v1227
  %v1229 = vsel %vm828, %v1113, 0.0
  %v1230 = vadd.f32 %v1228, %v1229
  %v1231 = vsel %vm828, %v1114, 0.0
  %v1232 = vadd.f32 %v1230, %v1231
  %v1233 = vsel %vm828, %v1115, 0.0
  %v1234 = vadd.f32 %v1232, %v1233
  %v1235 = vsel %vm828, %v1116, 0.0
  %v1236 = vadd.f32 %v1234, %v1235
  %v1237 = vsel %vm828, %v1117, 0.0
  %v1238 = vadd.f32 %v1236, %v1237
  %v1239 = vsel %vm828, %v1118, 0.0
  %v1240 = vadd.f32 %v1238, %v1239
  %v1241 = vsel %vm828, %v1119, 0.0
  %v1242 = vadd.f32 %v1240, %v1241
  %v1243 = vsel %vm828, %v1120, 0.0
  %v1244 = vadd.f32 %v1242, %v1243
  %v1245 = vsel %vm828, %v1121, 0.0
  %v1246 = vadd.f32 %v1244, %v1245
  %v1247 = vsel %vm828, %v1122, 0.0
  %v1248 = vadd.f32 %v1246, %v1247
  %v1249 = vsel %vm828, %v1123, 0.0
  %v1250 = vadd.f32 %v1248, %v1249
  %v1251 = vrot.slane %v1250, 4
  %v1252 = vadd.f32 %v1250, %v1251
  %v1253 = vrot.slane %v1252, 2
  %v1254 = vadd.f32 %v1252, %v1253
  %v1255 = vrot.slane %v1254, 1
  %v1256 = vadd.f32 %v1254, %v1255
  %v1257 = vadd.f32 %v1256, 0.0
  %1259 = vrot.lane.b32.xlu0 %v1256, 120
  %v1260 = vpop.permute.xlu0 %1259
  %v1262 = vadd.f32 %v1257, %v1260
  %1263 = vrot.lane.b32.xlu0 %v1256, 112
  %v1264 = vpop.permute.xlu0 %1263
  %v1266 = vadd.f32 %v1262, %v1264
  %1267 = vrot.lane.b32.xlu0 %v1256, 104
  %v1268 = vpop.permute.xlu0 %1267
  %v1270 = vadd.f32 %v1266, %v1268
  %v1271 = vmul.f32 %v1270, 0.00048828125
  %v1272 = vld [vmem:[%s2] sm:$0x1]
  %v1273 = vadd.f32 %v1271, 1e-05
  %v1274 = vrsqrt.pop %v1273
  %v1275 = vmul.f32 %v1272, %v1274
  %v1276 = vld [vmem:[%s3] sm:$0x1]
  %v1277 = vmul.f32 %v976, %v1275
  %v1278 = vsub.f32 %v1276, %v1277
  %v1280 = vlaneseq
  %v1281 = vshrl.u32 %v1280, 7
  %v1282 = vsub.s32 0, %v1281
  %v1283 = vrot.slane %v1275, %v1282
  %1284 = vrot.lane.b32.xlu0 %v1283, 8
  %v1285 = vpop.permute.xlu0 %1284
  %1287 = vrot.lane.b32.xlu0 %v1283, 16
  %v1288 = vpop.permute.xlu0 %1287
  %1290 = vrot.lane.b32.xlu0 %v1283, 24
  %v1291 = vpop.permute.xlu0 %1290
  %v1293 = vsel %vm987, %v1275, %v1285
  %v1294 = vsel %vm442, %v1293, %v1288
  %v1295 = vsel %vm990, %v1294, %v1291
  %v1297 = vlaneseq
  %v1298 = vshrl.u32 %v1297, 7
  %v1299 = vsub.s32 0, %v1298
  %v1300 = vrot.slane %v1278, %v1299
  %1301 = vrot.lane.b32.xlu0 %v1300, 8
  %v1302 = vpop.permute.xlu0 %1301
  %1304 = vrot.lane.b32.xlu0 %v1300, 16
  %v1305 = vpop.permute.xlu0 %1304
  %1307 = vrot.lane.b32.xlu0 %v1300, 24
  %v1308 = vpop.permute.xlu0 %1307
  %v1310 = vsel %vm987, %v1278, %v1302
  %v1311 = vsel %vm442, %v1310, %v1305
  %v1312 = vsel %vm990, %v1311, %v1308
  %v1313 = vlaneseq
  %v1314 = vshrl.u32 %v1313, 7
  %v1315 = vsub.s32 0, %v1314
  %v1316 = vrot.slane %v1295, %v1315
  %v1317 = vmul.f32 %v574, %v1316
  %v1318 = vmul.f32 %v577, %v1316
  %v1319 = vmul.f32 %v582, %v1316
  %v1320 = vmul.f32 %v585, %v1316
  %v1321 = vmul.f32 %v590, %v1316
  %v1322 = vmul.f32 %v593, %v1316
  %v1323 = vmul.f32 %v598, %v1316
  %v1324 = vmul.f32 %v601, %v1316
  %v1325 = vmul.f32 %v606, %v1316
  %v1326 = vmul.f32 %v609, %v1316
  %v1327 = vmul.f32 %v614, %v1316
  %v1328 = vmul.f32 %v617, %v1316
  %v1329 = vmul.f32 %v622, %v1316
  %v1330 = vmul.f32 %v625, %v1316
  %v1331 = vmul.f32 %v630, %v1316
  %v1332 = vmul.f32 %v633, %v1316
  %v1333 = vmul.f32 %v638, %v1316
  %v1334 = vmul.f32 %v641, %v1316
  %v1335 = vmul.f32 %v646, %v1316
  %v1336 = vmul.f32 %v649, %v1316
  %v1337 = vmul.f32 %v654, %v1316
  %v1338 = vmul.f32 %v657, %v1316
  %v1339 = vmul.f32 %v662, %v1316
  %v1340 = vmul.f32 %v665, %v1316
  %v1341 = vmul.f32 %v670, %v1316
  %v1342 = vmul.f32 %v673, %v1316
  %v1343 = vmul.f32 %v678, %v1316
  %v1344 = vmul.f32 %v681, %v1316
  %v1345 = vmul.f32 %v686, %v1316
  %v1346 = vmul.f32 %v689, %v1316
  %v1347 = vmul.f32 %v694, %v1316
  %v1348 = vmul.f32 %v697, %v1316
  %v1349 = vmul.f32 %v702, %v1316
  %v1350 = vmul.f32 %v705, %v1316
  %v1351 = vmul.f32 %v710, %v1316
  %v1352 = vmul.f32 %v713, %v1316
  %v1353 = vmul.f32 %v718, %v1316
  %v1354 = vmul.f32 %v721, %v1316
  %v1355 = vmul.f32 %v726, %v1316
  %v1356 = vmul.f32 %v729, %v1316
  %v1357 = vmul.f32 %v734, %v1316
  %v1358 = vmul.f32 %v737, %v1316
  %v1359 = vmul.f32 %v742, %v1316
  %v1360 = vmul.f32 %v745, %v1316
  %v1361 = vmul.f32 %v750, %v1316
  %v1362 = vmul.f32 %v753, %v1316
  %v1363 = vmul.f32 %v758, %v1316
  %v1364 = vmul.f32 %v761, %v1316
  %v1365 = vmul.f32 %v766, %v1316
  %v1366 = vmul.f32 %v769, %v1316
  %v1367 = vmul.f32 %v774, %v1316
  %v1368 = vmul.f32 %v777, %v1316
  %v1369 = vmul.f32 %v782, %v1316
  %v1370 = vmul.f32 %v785, %v1316
  %v1371 = vmul.f32 %v790, %v1316
  %v1372 = vmul.f32 %v793, %v1316
  %v1373 = vmul.f32 %v798, %v1316
  %v1374 = vmul.f32 %v801, %v1316
  %v1375 = vmul.f32 %v806, %v1316
  %v1376 = vmul.f32 %v809, %v1316
  %v1377 = vmul.f32 %v814, %v1316
  %v1378 = vmul.f32 %v817, %v1316
  %v1379 = vmul.f32 %v822, %v1316
  %v1380 = vmul.f32 %v825, %v1316
  %v1381 = vlaneseq
  %v1382 = vshrl.u32 %v1381, 7
  %v1383 = vsub.s32 0, %v1382
  %v1384 = vrot.slane %v1312, %v1383
  %v1385 = vadd.f32 %v1317, %v1384
  %v1386 = vadd.f32 %v1318, %v1384
  %v1387 = vadd.f32 %v1319, %v1384
  %v1388 = vadd.f32 %v1320, %v1384
  %v1389 = vadd.f32 %v1321, %v1384
  %v1390 = vadd.f32 %v1322, %v1384
  %v1391 = vadd.f32 %v1323, %v1384
  %v1392 = vadd.f32 %v1324, %v1384
  %v1393 = vadd.f32 %v1325, %v1384
  %v1394 = vadd.f32 %v1326, %v1384
  %v1395 = vadd.f32 %v1327, %v1384
  %v1396 = vadd.f32 %v1328, %v1384
  %v1397 = vadd.f32 %v1329, %v1384
  %v1398 = vadd.f32 %v1330, %v1384
  %v1399 = vadd.f32 %v1331, %v1384
  %v1400 = vadd.f32 %v1332, %v1384
  %v1401 = vadd.f32 %v1333, %v1384
  %v1402 = vadd.f32 %v1334, %v1384
  %v1403 = vadd.f32 %v1335, %v1384
  %v1404 = vadd.f32 %v1336, %v1384
  %v1405 = vadd.f32 %v1337, %v1384
  %v1406 = vadd.f32 %v1338, %v1384
  %v1407 = vadd.f32 %v1339, %v1384
  %v1408 = vadd.f32 %v1340, %v1384
  %v1409 = vadd.f32 %v1341, %v1384
  %v1410 = vadd.f32 %v1342, %v1384
  %v1411 = vadd.f32 %v1343, %v1384
  %v1412 = vadd.f32 %v1344, %v1384
  %v1413 = vadd.f32 %v1345, %v1384
  %v1414 = vadd.f32 %v1346, %v1384
  %v1415 = vadd.f32 %v1347, %v1384
  %v1416 = vadd.f32 %v1348, %v1384
  %v1417 = vadd.f32 %v1349, %v1384
  %v1418 = vadd.f32 %v1350, %v1384
  %v1419 = vadd.f32 %v1351, %v1384
  %v1420 = vadd.f32 %v1352, %v1384
  %v1421 = vadd.f32 %v1353, %v1384
  %v1422 = vadd.f32 %v1354, %v1384
  %v1423 = vadd.f32 %v1355, %v1384
  %v1424 = vadd.f32 %v1356, %v1384
  %v1425 = vadd.f32 %v1357, %v1384
  %v1426 = vadd.f32 %v1358, %v1384
  %v1427 = vadd.f32 %v1359, %v1384
  %v1428 = vadd.f32 %v1360, %v1384
  %v1429 = vadd.f32 %v1361, %v1384
  %v1430 = vadd.f32 %v1362, %v1384
  %v1431 = vadd.f32 %v1363, %v1384
  %v1432 = vadd.f32 %v1364, %v1384
  %v1433 = vadd.f32 %v1365, %v1384
  %v1434 = vadd.f32 %v1366, %v1384
  %v1435 = vadd.f32 %v1367, %v1384
  %v1436 = vadd.f32 %v1368, %v1384
  %v1437 = vadd.f32 %v1369, %v1384
  %v1438 = vadd.f32 %v1370, %v1384
  %v1439 = vadd.f32 %v1371, %v1384
  %v1440 = vadd.f32 %v1372, %v1384
  %v1441 = vadd.f32 %v1373, %v1384
  %v1442 = vadd.f32 %v1374, %v1384
  %v1443 = vadd.f32 %v1375, %v1384
  %v1444 = vadd.f32 %v1376, %v1384
  %v1445 = vadd.f32 %v1377, %v1384
  %v1446 = vadd.f32 %v1378, %v1384
  %v1447 = vadd.f32 %v1379, %v1384
  %v1448 = vadd.f32 %v1380, %v1384
  %v1449 = vmax.f32 %v1385, 0.0
  %v1450 = vmax.f32 %v1386, 0.0
  %v1451 = vmax.f32 %v1387, 0.0
  %v1452 = vmax.f32 %v1388, 0.0
  %v1453 = vmax.f32 %v1389, 0.0
  %v1454 = vmax.f32 %v1390, 0.0
  %v1455 = vmax.f32 %v1391, 0.0
  %v1456 = vmax.f32 %v1392, 0.0
  %v1457 = vmax.f32 %v1393, 0.0
  %v1458 = vmax.f32 %v1394, 0.0
  %v1459 = vmax.f32 %v1395, 0.0
  %v1460 = vmax.f32 %v1396, 0.0
  %v1461 = vmax.f32 %v1397, 0.0
  %v1462 = vmax.f32 %v1398, 0.0
  %v1463 = vmax.f32 %v1399, 0.0
  %v1464 = vmax.f32 %v1400, 0.0
  %v1465 = vmax.f32 %v1401, 0.0
  %v1466 = vmax.f32 %v1402, 0.0
  %v1467 = vmax.f32 %v1403, 0.0
  %v1468 = vmax.f32 %v1404, 0.0
  %v1469 = vmax.f32 %v1405, 0.0
  %v1470 = vmax.f32 %v1406, 0.0
  %v1471 = vmax.f32 %v1407, 0.0
  %v1472 = vmax.f32 %v1408, 0.0
  %v1473 = vmax.f32 %v1409, 0.0
  %v1474 = vmax.f32 %v1410, 0.0
  %v1475 = vmax.f32 %v1411, 0.0
  %v1476 = vmax.f32 %v1412, 0.0
  %v1477 = vmax.f32 %v1413, 0.0
  %v1478 = vmax.f32 %v1414, 0.0
  %v1479 = vmax.f32 %v1415, 0.0
  %v1480 = vmax.f32 %v1416, 0.0
  %v1481 = vmax.f32 %v1417, 0.0
  %v1482 = vmax.f32 %v1418, 0.0
  %v1483 = vmax.f32 %v1419, 0.0
  %v1484 = vmax.f32 %v1420, 0.0
  %v1485 = vmax.f32 %v1421, 0.0
  %v1486 = vmax.f32 %v1422, 0.0
  %v1487 = vmax.f32 %v1423, 0.0
  %v1488 = vmax.f32 %v1424, 0.0
  %v1489 = vmax.f32 %v1425, 0.0
  %v1490 = vmax.f32 %v1426, 0.0
  %v1491 = vmax.f32 %v1427, 0.0
  %v1492 = vmax.f32 %v1428, 0.0
  %v1493 = vmax.f32 %v1429, 0.0
  %v1494 = vmax.f32 %v1430, 0.0
  %v1495 = vmax.f32 %v1431, 0.0
  %v1496 = vmax.f32 %v1432, 0.0
  %v1497 = vmax.f32 %v1433, 0.0
  %v1498 = vmax.f32 %v1434, 0.0
  %v1499 = vmax.f32 %v1435, 0.0
  %v1500 = vmax.f32 %v1436, 0.0
  %v1501 = vmax.f32 %v1437, 0.0
  %v1502 = vmax.f32 %v1438, 0.0
  %v1503 = vmax.f32 %v1439, 0.0
  %v1504 = vmax.f32 %v1440, 0.0
  %v1505 = vmax.f32 %v1441, 0.0
  %v1506 = vmax.f32 %v1442, 0.0
  %v1507 = vmax.f32 %v1443, 0.0
  %v1508 = vmax.f32 %v1444, 0.0
  %v1509 = vmax.f32 %v1445, 0.0
  %v1510 = vmax.f32 %v1446, 0.0
  %v1511 = vmax.f32 %v1447, 0.0
  %v1512 = vmax.f32 %v1448, 0.0
  %v1513 = vpack.c.bf16 %v1450, %v1449
  %v1514 = vpack.c.bf16 %v1452, %v1451
  %v1515 = vpack.c.bf16 %v1454, %v1453
  %v1516 = vpack.c.bf16 %v1456, %v1455
  %v1517 = vpack.c.bf16 %v1458, %v1457
  %v1518 = vpack.c.bf16 %v1460, %v1459
  %v1519 = vpack.c.bf16 %v1462, %v1461
  %v1520 = vpack.c.bf16 %v1464, %v1463
  %v1521 = vpack.c.bf16 %v1466, %v1465
  %v1522 = vpack.c.bf16 %v1468, %v1467
  %v1523 = vpack.c.bf16 %v1470, %v1469
  %v1524 = vpack.c.bf16 %v1472, %v1471
  %v1525 = vpack.c.bf16 %v1474, %v1473
  %v1526 = vpack.c.bf16 %v1476, %v1475
  %v1527 = vpack.c.bf16 %v1478, %v1477
  %v1528 = vpack.c.bf16 %v1480, %v1479
  %v1529 = vpack.c.bf16 %v1482, %v1481
  %v1530 = vpack.c.bf16 %v1484, %v1483
  %v1531 = vpack.c.bf16 %v1486, %v1485
  %v1532 = vpack.c.bf16 %v1488, %v1487
  %v1533 = vpack.c.bf16 %v1490, %v1489
  %v1534 = vpack.c.bf16 %v1492, %v1491
  %v1535 = vpack.c.bf16 %v1494, %v1493
  %v1536 = vpack.c.bf16 %v1496, %v1495
  %v1537 = vpack.c.bf16 %v1498, %v1497
  %v1538 = vpack.c.bf16 %v1500, %v1499
  %v1539 = vpack.c.bf16 %v1502, %v1501
  %v1540 = vpack.c.bf16 %v1504, %v1503
  %v1541 = vpack.c.bf16 %v1506, %v1505
  %v1542 = vpack.c.bf16 %v1508, %v1507
  %v1543 = vpack.c.bf16 %v1510, %v1509
  %v1544 = vpack.c.bf16 %v1512, %v1511
  %v1577 = vunpack.c.l.b16 %v1513
  %v1578 = vunpack.c.h.b16 %v1513
  %v1579 = vunpack.c.l.b16 %v1514
  %v1580 = vunpack.c.h.b16 %v1514
  %v1581 = vunpack.c.l.b16 %v1515
  %v1582 = vunpack.c.h.b16 %v1515
  %v1583 = vunpack.c.l.b16 %v1516
  %v1584 = vunpack.c.h.b16 %v1516
  %v1585 = vunpack.c.l.b16 %v1517
  %v1586 = vunpack.c.h.b16 %v1517
  %v1587 = vunpack.c.l.b16 %v1518
  %v1588 = vunpack.c.h.b16 %v1518
  %v1589 = vunpack.c.l.b16 %v1519
  %v1590 = vunpack.c.h.b16 %v1519
  %v1591 = vunpack.c.l.b16 %v1520
  %v1592 = vunpack.c.h.b16 %v1520
  %v1593 = vunpack.c.l.b16 %v1521
  %v1594 = vunpack.c.h.b16 %v1521
  %v1595 = vunpack.c.l.b16 %v1522
  %v1596 = vunpack.c.h.b16 %v1522
  %v1597 = vunpack.c.l.b16 %v1523
  %v1598 = vunpack.c.h.b16 %v1523
  %v1599 = vunpack.c.l.b16 %v1524
  %v1600 = vunpack.c.h.b16 %v1524
  %v1601 = vunpack.c.l.b16 %v1525
  %v1602 = vunpack.c.h.b16 %v1525
  %v1603 = vunpack.c.l.b16 %v1526
  %v1604 = vunpack.c.h.b16 %v1526
  %v1605 = vunpack.c.l.b16 %v1527
  %v1606 = vunpack.c.h.b16 %v1527
  %v1607 = vunpack.c.l.b16 %v1528
  %v1608 = vunpack.c.h.b16 %v1528
  %v1609 = vunpack.c.l.b16 %v1529
  %v1610 = vunpack.c.h.b16 %v1529
  %v1611 = vunpack.c.l.b16 %v1530
  %v1612 = vunpack.c.h.b16 %v1530
  %v1613 = vunpack.c.l.b16 %v1531
  %v1614 = vunpack.c.h.b16 %v1531
  %v1615 = vunpack.c.l.b16 %v1532
  %v1616 = vunpack.c.h.b16 %v1532
  %v1617 = vunpack.c.l.b16 %v1533
  %v1618 = vunpack.c.h.b16 %v1533
  %v1619 = vunpack.c.l.b16 %v1534
  %v1620 = vunpack.c.h.b16 %v1534
  %v1621 = vunpack.c.l.b16 %v1535
  %v1622 = vunpack.c.h.b16 %v1535
  %v1623 = vunpack.c.l.b16 %v1536
  %v1624 = vunpack.c.h.b16 %v1536
  %v1625 = vunpack.c.l.b16 %v1537
  %v1626 = vunpack.c.h.b16 %v1537
  %v1627 = vunpack.c.l.b16 %v1538
  %v1628 = vunpack.c.h.b16 %v1538
  %v1629 = vunpack.c.l.b16 %v1539
  %v1630 = vunpack.c.h.b16 %v1539
  %v1631 = vunpack.c.l.b16 %v1540
  %v1632 = vunpack.c.h.b16 %v1540
  %v1633 = vunpack.c.l.b16 %v1541
  %v1634 = vunpack.c.h.b16 %v1541
  %v1635 = vunpack.c.l.b16 %v1542
  %v1636 = vunpack.c.h.b16 %v1542
  %v1637 = vunpack.c.l.b16 %v1543
  %v1638 = vunpack.c.h.b16 %v1543
  %v1639 = vunpack.c.l.b16 %v1544
  %v1640 = vunpack.c.h.b16 %v1544
  %v1641 = vpack.c.b16 %v1577, %v1577
  %v1642 = vpack.c.b16 %v1578, %v1578
  %v1643 = vpack.c.b16 %v1579, %v1579
  %v1644 = vpack.c.b16 %v1580, %v1580
  %v1645 = vpack.c.b16 %v1581, %v1581
  %v1646 = vpack.c.b16 %v1582, %v1582
  %v1647 = vpack.c.b16 %v1583, %v1583
  %v1648 = vpack.c.b16 %v1584, %v1584
  %v1649 = vpack.c.b16 %v1585, %v1585
  %v1650 = vpack.c.b16 %v1586, %v1586
  %v1651 = vpack.c.b16 %v1587, %v1587
  %v1652 = vpack.c.b16 %v1588, %v1588
  %v1653 = vpack.c.b16 %v1589, %v1589
  %v1654 = vpack.c.b16 %v1590, %v1590
  %v1655 = vpack.c.b16 %v1591, %v1591
  %v1656 = vpack.c.b16 %v1592, %v1592
  %v1657 = vpack.c.b16 %v1593, %v1593
  %v1658 = vpack.c.b16 %v1594, %v1594
  %v1659 = vpack.c.b16 %v1595, %v1595
  %v1660 = vpack.c.b16 %v1596, %v1596
  %v1661 = vpack.c.b16 %v1597, %v1597
  %v1662 = vpack.c.b16 %v1598, %v1598
  %v1663 = vpack.c.b16 %v1599, %v1599
  %v1664 = vpack.c.b16 %v1600, %v1600
  %v1665 = vpack.c.b16 %v1601, %v1601
  %v1666 = vpack.c.b16 %v1602, %v1602
  %v1667 = vpack.c.b16 %v1603, %v1603
  %v1668 = vpack.c.b16 %v1604, %v1604
  %v1669 = vpack.c.b16 %v1605, %v1605
  %v1670 = vpack.c.b16 %v1606, %v1606
  %v1671 = vpack.c.b16 %v1607, %v1607
  %v1672 = vpack.c.b16 %v1608, %v1608
  %v1673 = vpack.c.b16 %v1609, %v1609
  %v1674 = vpack.c.b16 %v1610, %v1610
  %v1675 = vpack.c.b16 %v1611, %v1611
  %v1676 = vpack.c.b16 %v1612, %v1612
  %v1677 = vpack.c.b16 %v1613, %v1613
  %v1678 = vpack.c.b16 %v1614, %v1614
  %v1679 = vpack.c.b16 %v1615, %v1615
  %v1680 = vpack.c.b16 %v1616, %v1616
  %v1681 = vpack.c.b16 %v1617, %v1617
  %v1682 = vpack.c.b16 %v1618, %v1618
  %v1683 = vpack.c.b16 %v1619, %v1619
  %v1684 = vpack.c.b16 %v1620, %v1620
  %v1685 = vpack.c.b16 %v1621, %v1621
  %v1686 = vpack.c.b16 %v1622, %v1622
  %v1687 = vpack.c.b16 %v1623, %v1623
  %v1688 = vpack.c.b16 %v1624, %v1624
  %v1689 = vpack.c.b16 %v1625, %v1625
  %v1690 = vpack.c.b16 %v1626, %v1626
  %v1691 = vpack.c.b16 %v1627, %v1627
  %v1692 = vpack.c.b16 %v1628, %v1628
  %v1693 = vpack.c.b16 %v1629, %v1629
  %v1694 = vpack.c.b16 %v1630, %v1630
  %v1695 = vpack.c.b16 %v1631, %v1631
  %v1696 = vpack.c.b16 %v1632, %v1632
  %v1697 = vpack.c.b16 %v1633, %v1633
  %v1698 = vpack.c.b16 %v1634, %v1634
  %v1699 = vpack.c.b16 %v1635, %v1635
  %v1700 = vpack.c.b16 %v1636, %v1636
  %v1701 = vpack.c.b16 %v1637, %v1637
  %v1702 = vpack.c.b16 %v1638, %v1638
  %v1703 = vpack.c.b16 %v1639, %v1639
  %v1704 = vpack.c.b16 %v1640, %v1640
  %vm1769 = vcmask 257024
  %1770 = vst.msk [vmem:[%s4] sm:$0xf] %vm1769, %v1641
  %1771 = vst.msk [vmem:[%s4 + $0x4] sm:$0xf] %vm1769, %v1642
  %1772 = vst.msk [vmem:[%s4 + $0x8] sm:$0xf] %vm1769, %v1643
  %1773 = vst.msk [vmem:[%s4 + $0xc] sm:$0xf] %vm1769, %v1644
  %1774 = vst.msk [vmem:[%s4 + $0x10] sm:$0xf] %vm1769, %v1645
  %1775 = vst.msk [vmem:[%s4 + $0x14] sm:$0xf] %vm1769, %v1646
  %1776 = vst.msk [vmem:[%s4 + $0x18] sm:$0xf] %vm1769, %v1647
  %1777 = vst.msk [vmem:[%s4 + $0x1c] sm:$0xf] %vm1769, %v1648
  %1778 = vst.msk [vmem:[%s4 + $0x20] sm:$0xf] %vm1769, %v1649
  %1779 = vst.msk [vmem:[%s4 + $0x24] sm:$0xf] %vm1769, %v1650
  %1780 = vst.msk [vmem:[%s4 + $0x28] sm:$0xf] %vm1769, %v1651
  %1781 = vst.msk [vmem:[%s4 + $0x2c] sm:$0xf] %vm1769, %v1652
  %1782 = vst.msk [vmem:[%s4 + $0x30] sm:$0xf] %vm1769, %v1653
  %1783 = vst.msk [vmem:[%s4 + $0x34] sm:$0xf] %vm1769, %v1654
  %1784 = vst.msk [vmem:[%s4 + $0x38] sm:$0xf] %vm1769, %v1655
  %1785 = vst.msk [vmem:[%s4 + $0x3c] sm:$0xf] %vm1769, %v1656
  %1786 = vst.msk [vmem:[%s4 + $0x40] sm:$0xf] %vm1769, %v1657
  %1787 = vst.msk [vmem:[%s4 + $0x44] sm:$0xf] %vm1769, %v1658
  %1788 = vst.msk [vmem:[%s4 + $0x48] sm:$0xf] %vm1769, %v1659
  %1789 = vst.msk [vmem:[%s4 + $0x4c] sm:$0xf] %vm1769, %v1660
  %1790 = vst.msk [vmem:[%s4 + $0x50] sm:$0xf] %vm1769, %v1661
  %1791 = vst.msk [vmem:[%s4 + $0x54] sm:$0xf] %vm1769, %v1662
  %1792 = vst.msk [vmem:[%s4 + $0x58] sm:$0xf] %vm1769, %v1663
  %1793 = vst.msk [vmem:[%s4 + $0x5c] sm:$0xf] %vm1769, %v1664
  %1794 = vst.msk [vmem:[%s4 + $0x60] sm:$0xf] %vm1769, %v1665
  %1795 = vst.msk [vmem:[%s4 + $0x64] sm:$0xf] %vm1769, %v1666
  %1796 = vst.msk [vmem:[%s4 + $0x68] sm:$0xf] %vm1769, %v1667
  %1797 = vst.msk [vmem:[%s4 + $0x6c] sm:$0xf] %vm1769, %v1668
  %1798 = vst.msk [vmem:[%s4 + $0x70] sm:$0xf] %vm1769, %v1669
  %1799 = vst.msk [vmem:[%s4 + $0x74] sm:$0xf] %vm1769, %v1670
  %1800 = vst.msk [vmem:[%s4 + $0x78] sm:$0xf] %vm1769, %v1671
  %1801 = vst.msk [vmem:[%s4 + $0x7c] sm:$0xf] %vm1769, %v1672
  %1802 = vst.msk [vmem:[%s4 + $0x80] sm:$0xf] %vm1769, %v1673
  %1803 = vst.msk [vmem:[%s4 + $0x84] sm:$0xf] %vm1769, %v1674
  %1804 = vst.msk [vmem:[%s4 + $0x88] sm:$0xf] %vm1769, %v1675
  %1805 = vst.msk [vmem:[%s4 + $0x8c] sm:$0xf] %vm1769, %v1676
  %1806 = vst.msk [vmem:[%s4 + $0x90] sm:$0xf] %vm1769, %v1677
  %1807 = vst.msk [vmem:[%s4 + $0x94] sm:$0xf] %vm1769, %v1678
  %1808 = vst.msk [vmem:[%s4 + $0x98] sm:$0xf] %vm1769, %v1679
  %1809 = vst.msk [vmem:[%s4 + $0x9c] sm:$0xf] %vm1769, %v1680
  %1810 = vst.msk [vmem:[%s4 + $0xa0] sm:$0xf] %vm1769, %v1681
  %1811 = vst.msk [vmem:[%s4 + $0xa4] sm:$0xf] %vm1769, %v1682
  %1812 = vst.msk [vmem:[%s4 + $0xa8] sm:$0xf] %vm1769, %v1683
  %1813 = vst.msk [vmem:[%s4 + $0xac] sm:$0xf] %vm1769, %v1684
  %1814 = vst.msk [vmem:[%s4 + $0xb0] sm:$0xf] %vm1769, %v1685
  %1815 = vst.msk [vmem:[%s4 + $0xb4] sm:$0xf] %vm1769, %v1686
  %1816 = vst.msk [vmem:[%s4 + $0xb8] sm:$0xf] %vm1769, %v1687
  %1817 = vst.msk [vmem:[%s4 + $0xbc] sm:$0xf] %vm1769, %v1688
  %1818 = vst.msk [vmem:[%s4 + $0xc0] sm:$0xf] %vm1769, %v1689
  %1819 = vst.msk [vmem:[%s4 + $0xc4] sm:$0xf] %vm1769, %v1690
  %1820 = vst.msk [vmem:[%s4 + $0xc8] sm:$0xf] %vm1769, %v1691
  %1821 = vst.msk [vmem:[%s4 + $0xcc] sm:$0xf] %vm1769, %v1692
  %1822 = vst.msk [vmem:[%s4 + $0xd0] sm:$0xf] %vm1769, %v1693
  %1823 = vst.msk [vmem:[%s4 + $0xd4] sm:$0xf] %vm1769, %v1694
  %1824 = vst.msk [vmem:[%s4 + $0xd8] sm:$0xf] %vm1769, %v1695
  %1825 = vst.msk [vmem:[%s4 + $0xdc] sm:$0xf] %vm1769, %v1696
  %1826 = vst.msk [vmem:[%s4 + $0xe0] sm:$0xf] %vm1769, %v1697
  %1827 = vst.msk [vmem:[%s4 + $0xe4] sm:$0xf] %vm1769, %v1698
  %1828 = vst.msk [vmem:[%s4 + $0xe8] sm:$0xf] %vm1769, %v1699
  %1829 = vst.msk [vmem:[%s4 + $0xec] sm:$0xf] %vm1769, %v1700
  %1830 = vst.msk [vmem:[%s4 + $0xf0] sm:$0xf] %vm1769, %v1701
  %1831 = vst.msk [vmem:[%s4 + $0xf4] sm:$0xf] %vm1769, %v1702
  %1832 = vst.msk [vmem:[%s4 + $0xf8] sm:$0xf] %vm1769, %v1703
  %1833 = vst.msk [vmem:[%s4 + $0xfc] sm:$0xf] %vm1769, %v1704
  // Predicated region
  $region18: #{generator_forward.8} parent=0 // pred_check
    _
  $region19: #{generator_forward.8} parent=0 // pred_check_branch
    %1835 = sbr.rel (0) target = $region21
  $region20: #{generator_forward.8} parent=0 // pred_region
    _
  $region21: #{generator_forward.8} parent=0 // pred_fallthru
    _
  // Predicated region
  $region22: #{generator_forward.8} parent=0 // pred_check
    _
  $region23: #{generator_forward.8} parent=0 // pred_check_branch
    %1837 = sbr.rel (0) target = $region25
  $region24: #{generator_forward.8} parent=0 // pred_region
    _
  $region25: #{generator_forward.8} parent=0 // pred_fallthru
    _

// kernel: generator_forward.9
$region0: #{generator_forward.9}
  #allocation0 [shape = 'u32[]', space=smem, size = 0x4, offset = 0x4, fixed_abs, tag = 'smem constant byte address 0x4 - core index']
  #allocation1 [shape = 'u32[144,128]{1,0:T(1,128)}', space=vmem, size = 0x12000, scoped, tag = 'internal scratch']
  %s0 = inlined_call_operand.vmem [shape: bf16[12,72], index: 0, kind: input, shape index: {}]
  %s1 = inlined_call_operand.vmem [shape: bf16[72,2048], index: 1, kind: input, shape index: {}]
  %s2 = inlined_call_operand.vmem [shape: f32[12,1], index: 2, kind: input, shape index: {}]
  %s3 = inlined_call_operand.vmem [shape: f32[12,2048], index: 3, kind: output, shape index: {}]
  %s4 = sld [smem:[#allocation0]]
  $region87: #{generator_forward.9} parent=0
    _
  %s6 = ssub.s32 1, %s4
  %s7 = scalar_select 0, %s6, %s4
  $region1: #{generator_forward.9} parent=0
    #allocation2 [shape = 'u8[294912]{0}', space=vmem, size = 0x48000, scoped, tag = 'input window, operand 1']
    #allocation3 [shape = 'u8[131072]{0}', space=vmem, size = 0x20000, scoped, tag = 'output window, operand 0']
    loop: start=0, step=1, limit=4
    $region2: #{generator_forward.9} parent=1 // loop_pre_header
      _
    $region3: #{generator_forward.9} parent=1 // loop_header
      %s9 = sphi 0, %s13
      %p10 = scmp.ge.s32.totalorder %s9, 4
      %s17 = sphi 0, %s17
      %s19 = sphi 0, %s17
      %s20 = sphi 0, %s19
      %s34 = sphi 0, %s20
      %s40 = sphi 0, %s42
      %s43 = sphi 0, %s40
      %s44 = sphi 0, %s43
      %s60 = sphi 0, %s44
      %s64 = sphi 0, %s64
      %s66 = sphi 0, %s64
      %s67 = sphi 0, %s66
      %s81 = sphi 0, %s67
      %s87 = sphi 0, %s89
      %s90 = sphi 0, %s87
      %s91 = sphi 0, %s90
      %s107 = sphi 0, %s91
    $region4: #{generator_forward.9} parent=1 // loop_header_branch
      %12 = sbr.rel (%p10) target = $region8
    $region5: #{generator_forward.9} parent=1 // loop_body
      %s14 = ssub.s32 %s9, 1
      %s15 = ssub.s32 %s9, 2
      %s16 = sadd.s32 %s9, 1
      %s18 = sadd.s32 %s17, 1
      %p21 = scmp.eq.s32.totalorder %s9, 1
      %p22 = scmp.ne.s32.totalorder %s17, %s19
      %p23 = scmp.eq.s32.totalorder %s9, 0
      %p24 = por %p22, %p23
      %p25 = scmp.ne.s32.totalorder %s17, %s19
      %p26 = scmp.eq.s32.totalorder %s14, 1
      %p27 = por %p25, %p26
      %p28 = scmp.ne.s32.totalorder %s19, %s20
      %p29 = scmp.eq.s32.totalorder %s14, 0
      %p30 = por %p28, %p29
      %p31 = scmp.ne.s32.totalorder %s19, %s20
      %p32 = scmp.eq.s32.totalorder %s15, 1
      %p33 = por %p31, %p32
      %p35 = scmp.ne.s32.totalorder %s20, %s34
      %p36 = scmp.eq.s32.totalorder %s15, 0
      %p37 = por %p35, %p36
      %s38 = ssub.s32 %s9, %s16
      %p39 = scmp.eq.s32.totalorder %s38, 0
      %s41 = sadd.s32 %s40, 1
      %s42 = scalar_select %p39, %s40, %s41
      %p45 = pneg %p39
      %p46 = scmp.eq.s32.totalorder %s9, 1
      %p47 = por %p45, %p46
      %p48 = scmp.ne.s32.totalorder %s40, %s43
      %p49 = scmp.eq.s32.totalorder %s9, 0
      %p50 = por %p48, %p49
      %p51 = scmp.ne.s32.totalorder %s40, %s43
      %p52 = scmp.eq.s32.totalorder %s14, 1
      %p53 = por %p51, %p52
      %p54 = scmp.ne.s32.totalorder %s43, %s44
      %p55 = scmp.eq.s32.totalorder %s14, 0
      %p56 = por %p54, %p55
      %p57 = scmp.ne.s32.totalorder %s43, %s44
      %p58 = scmp.eq.s32.totalorder %s15, 1
      %p59 = por %p57, %p58
      %p61 = scmp.ne.s32.totalorder %s44, %s60
      %p62 = scmp.eq.s32.totalorder %s15, 0
      %p63 = por %p61, %p62
      %s65 = sadd.s32 %s64, 1
      %p68 = scmp.eq.s32.totalorder %s9, 1
      %p69 = scmp.ne.s32.totalorder %s64, %s66
      %p70 = scmp.eq.s32.totalorder %s9, 0
      %p71 = por %p69, %p70
      %p72 = scmp.ne.s32.totalorder %s64, %s66
      %p73 = scmp.eq.s32.totalorder %s14, 1
      %p74 = por %p72, %p73
      %p75 = scmp.ne.s32.totalorder %s66, %s67
      %p76 = scmp.eq.s32.totalorder %s14, 0
      %p77 = por %p75, %p76
      %p78 = scmp.ne.s32.totalorder %s66, %s67
      %p79 = scmp.eq.s32.totalorder %s15, 1
      %p80 = por %p78, %p79
      %p82 = scmp.ne.s32.totalorder %s67, %s81
      %p83 = scmp.eq.s32.totalorder %s15, 0
      %p84 = por %p82, %p83
      %s85 = ssub.s32 %s9, %s16
      %p86 = scmp.eq.s32.totalorder %s85, 0
      %s88 = sadd.s32 %s87, 1
      %s89 = scalar_select %p86, %s87, %s88
      %p92 = pneg %p86
      %p93 = scmp.eq.s32.totalorder %s9, 1
      %p94 = por %p92, %p93
      %p95 = scmp.ne.s32.totalorder %s87, %s90
      %p96 = scmp.eq.s32.totalorder %s9, 0
      %p97 = por %p95, %p96
      %p98 = scmp.ne.s32.totalorder %s87, %s90
      %p99 = scmp.eq.s32.totalorder %s14, 1
      %p100 = por %p98, %p99
      %p101 = scmp.ne.s32.totalorder %s90, %s91
      %p102 = scmp.eq.s32.totalorder %s14, 0
      %p103 = por %p101, %p102
      %p104 = scmp.ne.s32.totalorder %s90, %s91
      %p105 = scmp.eq.s32.totalorder %s15, 1
      %p106 = por %p104, %p105
      %p108 = scmp.ne.s32.totalorder %s91, %s107
      %p109 = scmp.eq.s32.totalorder %s15, 0
      %p110 = por %p108, %p109
      %p111 = scmp.le.s32.totalorder 1, %s9
      %p112 = scmp.lt.s32.totalorder %s9, 3
      %p113 = pnand %p111, %p112
      %p114 = pneg %p113
      // Predicated region
      $region9: #{generator_forward.9} parent=5 // pred_check
        _
      $region10: #{generator_forward.9} parent=5 // pred_check_branch
        %116 = sbr.rel (%p113) target = $region12
      $region11: #{generator_forward.9} parent=5 // pred_region
        %s117 = ssub.s32 %s9, 1
        // Predicated region
        $region13: #{generator_forward.9} parent=11 // pred_check
          %p118 = pneg %p30
        $region14: #{generator_forward.9} parent=11 // pred_check_branch
          %120 = sbr.rel (%p118) target = $region16
        $region15: #{generator_forward.9} parent=11 // pred_region
          _
        $region16: #{generator_forward.9} parent=11 // pred_fallthru
          _
        // Predicated region
        $region17: #{generator_forward.9} parent=11 // pred_check
          %p121 = pneg %p77
        $region18: #{generator_forward.9} parent=11 // pred_check_branch
          %123 = sbr.rel (%p121) target = $region20
        $region19: #{generator_forward.9} parent=11 // pred_region
          _
        $region20: #{generator_forward.9} parent=11 // pred_fallthru
          _
      $region12: #{generator_forward.9} parent=5 // pred_fallthru
        _
      %p124 = scmp.lt.s32.totalorder %s9, 2
      // Predicated region
      $region21: #{generator_forward.9} parent=5 // pred_check
        %p125 = pneg %p124
      $region22: #{generator_forward.9} parent=5 // pred_check_branch
        %127 = sbr.rel (%p125) target = $region24
      $region23: #{generator_forward.9} parent=5 // pred_region
        // Predicated region
        $region25: #{generator_forward.9} parent=23 // pred_check
          %p128 = pneg %p50
        $region26: #{generator_forward.9} parent=23 // pred_check_branch
          %130 = sbr.rel (%p128) target = $region28
        $region27: #{generator_forward.9} parent=23 // pred_region
          %s131 = sand.u32 %s40, 1
          %s132 = sand.u32 %s40, 1
          %s133 = smul.addr %s132, 288
          %s134 = scalar_lea.vmem [#allocation2], %s133
          %s135 = smul.u32 8, %s9
          %s136 = smul.addr %s135, 4
          %s137 = scalar_lea.vmem %s1, %s136
          // Predicated region
          $region29: #{generator_forward.9} parent=27 // pred_check
            _
          $region30: #{generator_forward.9} parent=27 // pred_check_branch
            %139 = sbr.rel (0) target = $region32
          $region31: #{generator_forward.9} parent=27 // pred_region
            // Predicated region
            $region33: #{generator_forward.9} parent=31 // pred_check
              _
            $region34: #{generator_forward.9} parent=31 // pred_check_branch
              %141 = sbr.rel (0) target = $region36
            $region35: #{generator_forward.9} parent=31 // pred_region
              loop: start=0, step=1, limit=1
              $region37: #{generator_forward.9} parent=35 // loop_pre_header
                _
              $region38: #{generator_forward.9} parent=35 // loop_header
                %s143 = sphi 0, %s147
                %p144 = scmp.ge.s32.totalorder %s143, 1
                %s148 = sphi %s137, %s137
                %s149 = sphi %s134, %s134
              $region39: #{generator_forward.9} parent=35 // loop_header_branch
                %146 = sbr.rel (%p144) target = $region43
              $region40: #{generator_forward.9} parent=35 // loop_body
                %v150 = vld [vmem:[%s148] sm:$0xff]
                %151 = vst [vmem:[%s149] sm:$0xff] %v150
                %v152 = vld [vmem:[%s148 + $0x8] sm:$0xff]
                %153 = vst [vmem:[%s149 + $0x8] sm:$0xff] %v152
                %v154 = vld [vmem:[%s148 + $0x10] sm:$0xff]
                %155 = vst [vmem:[%s149 + $0x10] sm:$0xff] %v154
                %v156 = vld [vmem:[%s148 + $0x18] sm:$0xff]
                %157 = vst [vmem:[%s149 + $0x18] sm:$0xff] %v156
                %v158 = vld [vmem:[%s148 + $0x40] sm:$0xff]
                %159 = vst [vmem:[%s149 + $0x20] sm:$0xff] %v158
                %v160 = vld [vmem:[%s148 + $0x48] sm:$0xff]
                %161 = vst [vmem:[%s149 + $0x28] sm:$0xff] %v160
                %v162 = vld [vmem:[%s148 + $0x50] sm:$0xff]
                %163 = vst [vmem:[%s149 + $0x30] sm:$0xff] %v162
                %v164 = vld [vmem:[%s148 + $0x58] sm:$0xff]
                %165 = vst [vmem:[%s149 + $0x38] sm:$0xff] %v164
                %v166 = vld [vmem:[%s148 + $0x80] sm:$0xff]
                %167 = vst [vmem:[%s149 + $0x40] sm:$0xff] %v166
                %v168 = vld [vmem:[%s148 + $0x88] sm:$0xff]
                %169 = vst [vmem:[%s149 + $0x48] sm:$0xff] %v168
                %v170 = vld [vmem:[%s148 + $0x90] sm:$0xff]
                %171 = vst [vmem:[%s149 + $0x50] sm:$0xff] %v170
                %v172 = vld [vmem:[%s148 + $0x98] sm:$0xff]
                %173 = vst [vmem:[%s149 + $0x58] sm:$0xff] %v172
                %v174 = vld [vmem:[%s148 + $0xc0] sm:$0xff]
                %175 = vst [vmem:[%s149 + $0x60] sm:$0xff] %v174
                %v176 = vld [vmem:[%s148 + $0xc8] sm:$0xff]
                %177 = vst [vmem:[%s149 + $0x68] sm:$0xff] %v176
                %v178 = vld [vmem:[%s148 + $0xd0] sm:$0xff]
                %179 = vst [vmem:[%s149 + $0x70] sm:$0xff] %v178
                %v180 = vld [vmem:[%s148 + $0xd8] sm:$0xff]
                %181 = vst [vmem:[%s149 + $0x78] sm:$0xff] %v180
                %v182 = vld [vmem:[%s148 + $0x100] sm:$0xff]
                %183 = vst [vmem:[%s149 + $0x80] sm:$0xff] %v182
                %v184 = vld [vmem:[%s148 + $0x108] sm:$0xff]
                %185 = vst [vmem:[%s149 + $0x88] sm:$0xff] %v184
                %v186 = vld [vmem:[%s148 + $0x110] sm:$0xff]
                %187 = vst [vmem:[%s149 + $0x90] sm:$0xff] %v186
                %v188 = vld [vmem:[%s148 + $0x118] sm:$0xff]
                %189 = vst [vmem:[%s149 + $0x98] sm:$0xff] %v188
                %v190 = vld [vmem:[%s148 + $0x140] sm:$0xff]
                %191 = vst [vmem:[%s149 + $0xa0] sm:$0xff] %v190
                %v192 = vld [vmem:[%s148 + $0x148] sm:$0xff]
                %193 = vst [vmem:[%s149 + $0xa8] sm:$0xff] %v192
                %v194 = vld [vmem:[%s148 + $0x150] sm:$0xff]
                %195 = vst [vmem:[%s149 + $0xb0] sm:$0xff] %v194
                %v196 = vld [vmem:[%s148 + $0x158] sm:$0xff]
                %197 = vst [vmem:[%s149 + $0xb8] sm:$0xff] %v196
                %v198 = vld [vmem:[%s148 + $0x180] sm:$0xff]
                %199 = vst [vmem:[%s149 + $0xc0] sm:$0xff] %v198
                %v200 = vld [vmem:[%s148 + $0x188] sm:$0xff]
                %201 = vst [vmem:[%s149 + $0xc8] sm:$0xff] %v200
                %v202 = vld [vmem:[%s148 + $0x190] sm:$0xff]
                %203 = vst [vmem:[%s149 + $0xd0] sm:$0xff] %v202
                %v204 = vld [vmem:[%s148 + $0x198] sm:$0xff]
                %205 = vst [vmem:[%s149 + $0xd8] sm:$0xff] %v204
                %v206 = vld [vmem:[%s148 + $0x1c0] sm:$0xff]
                %207 = vst [vmem:[%s149 + $0xe0] sm:$0xff] %v206
                %v208 = vld [vmem:[%s148 + $0x1c8] sm:$0xff]
                %209 = vst [vmem:[%s149 + $0xe8] sm:$0xff] %v208
                %v210 = vld [vmem:[%s148 + $0x1d0] sm:$0xff]
                %211 = vst [vmem:[%s149 + $0xf0] sm:$0xff] %v210
                %v212 = vld [vmem:[%s148 + $0x1d8] sm:$0xff]
                %213 = vst [vmem:[%s149 + $0xf8] sm:$0xff] %v212
                %v214 = vld [vmem:[%s148 + $0x200] sm:$0xff]
                %215 = vst [vmem:[%s149 + $0x100] sm:$0xff] %v214
                %v216 = vld [vmem:[%s148 + $0x208] sm:$0xff]
                %217 = vst [vmem:[%s149 + $0x108] sm:$0xff] %v216
                %v218 = vld [vmem:[%s148 + $0x210] sm:$0xff]
                %219 = vst [vmem:[%s149 + $0x110] sm:$0xff] %v218
                %v220 = vld [vmem:[%s148 + $0x218] sm:$0xff]
                %221 = vst [vmem:[%s149 + $0x118] sm:$0xff] %v220
              $region41: #{generator_forward.9} parent=35 // loop_footer
                %s147 = sadd.s32 1, %s143
              $region42: #{generator_forward.9} parent=35 // loop_footer_branch
                %142 = sbr.rel target = $region38
              $region43: #{generator_forward.9} parent=35 // loop_exit
                _
            $region36: #{generator_forward.9} parent=31 // pred_fallthru
              _
            // Predicated region
            $region44: #{generator_forward.9} parent=31 // pred_check
              _
            $region45: #{generator_forward.9} parent=31 // pred_check_branch
              %223 = sbr.rel target = $region47
            $region46: #{generator_forward.9} parent=31 // pred_region
              _
            $region47: #{generator_forward.9} parent=31 // pred_fallthru
              _
          $region32: #{generator_forward.9} parent=27 // pred_fallthru
            _
          %224 = vnop
        $region28: #{generator_forward.9} parent=23 // pred_fallthru
          _
      $region24: #{generator_forward.9} parent=5 // pred_fallthru
        _
      %p225 = scmp.le.s32.totalorder 1, %s9
      %p226 = scmp.lt.s32.totalorder %s9, 3
      %p227 = pnand %p225, %p226
      %p228 = pneg %p227
      // Predicated region
      $region48: #{generator_forward.9} parent=5 // pred_check
        _
      $region49: #{generator_forward.9} parent=5 // pred_check_branch
        %230 = sbr.rel (%p227) target = $region51
      $region50: #{generator_forward.9} parent=5 // pred_region
        %s231 = ssub.s32 %s9, 1
        %s232 = sand.u32 %s43, 1
        %s233 = sand.u32 %s43, 1
        %s234 = smul.addr %s233, 288
        %s235 = scalar_lea.vmem [#allocation2], %s234
        // Predicated region
        $region52: #{generator_forward.9} parent=50 // pred_check
          %p236 = pneg %p56
        $region53: #{generator_forward.9} parent=50 // pred_check_branch
          %238 = sbr.rel (%p236) target = $region55
        $region54: #{generator_forward.9} parent=50 // pred_region
          _
        $region55: #{generator_forward.9} parent=50 // pred_fallthru
          _
        %p239 = pneg %p30
        %p240 = pneg %p27
        %s241 = sand.u32 %s43, 1
        %s242 = sand.u32 %s43, 1
        %s243 = smul.addr %s242, 288
        %s244 = scalar_lea.vmem [#allocation2], %s243
        %p245 = pneg %p56
        %p246 = pneg %p53
        %p247 = pneg %p77
        %p248 = pneg %p74
        %p249 = pneg %p103
        %p250 = pneg %p100
        %s251 = sand.u32 %s90, 1
        %s252 = sand.u32 %s90, 1
        %s253 = smul.addr %s252, 128
        %s254 = scalar_lea.vmem [#allocation3], %s253
        %s255 = smul.u32 8, %s14
        %s256 = smul.u32 8, %s14
        %v258 = vld [vmem:[%s0] sm:$0xf]
        %v259 = vld [vmem:[%s0 + $0x4] sm:$0x3]
        %v260 = vld [vmem:[%s235] sm:$0xff]
        %v261 = vld [vmem:[%s235 + $0x8] sm:$0xff]
        %v262 = vld [vmem:[%s235 + $0x10] sm:$0xff]
        %v263 = vld [vmem:[%s235 + $0x18] sm:$0xff]
        %v264 = vld [vmem:[%s235 + $0x20] sm:$0xff]
        %v265 = vld [vmem:[%s235 + $0x28] sm:$0xff]
        %v266 = vld [vmem:[%s235 + $0x30] sm:$0xff]
        %v267 = vld [vmem:[%s235 + $0x38] sm:$0xff]
        %v268 = vld [vmem:[%s235 + $0x40] sm:$0xff]
        %v269 = vld [vmem:[%s235 + $0x48] sm:$0xff]
        %v270 = vld [vmem:[%s235 + $0x50] sm:$0xff]
        %v271 = vld [vmem:[%s235 + $0x58] sm:$0xff]
        %v272 = vld [vmem:[%s235 + $0x60] sm:$0xff]
        %v273 = vld [vmem:[%s235 + $0x68] sm:$0xff]
        %v274 = vld [vmem:[%s235 + $0x70] sm:$0xff]
        %v275 = vld [vmem:[%s235 + $0x78] sm:$0xff]
        %v276 = vld [vmem:[%s235 + $0x80] sm:$0xff]
        %v277 = vld [vmem:[%s235 + $0x88] sm:$0xff]
        %v278 = vld [vmem:[%s235 + $0x90] sm:$0xff]
        %v279 = vld [vmem:[%s235 + $0x98] sm:$0xff]
        %v280 = vld [vmem:[%s235 + $0xa0] sm:$0xff]
        %v281 = vld [vmem:[%s235 + $0xa8] sm:$0xff]
        %v282 = vld [vmem:[%s235 + $0xb0] sm:$0xff]
        %v283 = vld [vmem:[%s235 + $0xb8] sm:$0xff]
        %v284 = vld [vmem:[%s235 + $0xc0] sm:$0xff]
        %v285 = vld [vmem:[%s235 + $0xc8] sm:$0xff]
        %v286 = vld [vmem:[%s235 + $0xd0] sm:$0xff]
        %v287 = vld [vmem:[%s235 + $0xd8] sm:$0xff]
        %v288 = vld [vmem:[%s235 + $0xe0] sm:$0xff]
        %v289 = vld [vmem:[%s235 + $0xe8] sm:$0xff]
        %v290 = vld [vmem:[%s235 + $0xf0] sm:$0xff]
        %v291 = vld [vmem:[%s235 + $0xf8] sm:$0xff]
        %v292 = vld [vmem:[%s235 + $0x100] sm:$0xff]
        %v293 = vld [vmem:[%s235 + $0x108] sm:$0xff]
        %v294 = vld [vmem:[%s235 + $0x110] sm:$0xff]
        %v295 = vld [vmem:[%s235 + $0x118] sm:$0xff]
        %v296 = vld [vmem:[%s2] sm:$0xff]
        %v297 = vld [vmem:[%s2 + $0x8] sm:$0xf]
        %299 = vset.pattern.permute.xlu0 0
        %300 = vperm.xlu0 %299, %v296
        %v301 = vpop.permute.xlu0 %300
        %304 = vset.pattern.permute.xlu0 0
        %305 = vperm.xlu0 %304, %v297
        %v306 = vpop.permute.xlu0 %305
        %v310 = vunpack.c.l.b16 %v258
        %v311 = vunpack.c.l.b16 %v259
        %v312 = vpack.c.b16 %v311, %v310
        %v349 = vunpack.c.l.b16 %v260
        %v350 = vunpack.c.h.b16 %v260
        %v351 = vunpack.c.l.b16 %v261
        %v352 = vunpack.c.h.b16 %v261
        %v353 = vunpack.c.l.b16 %v262
        %v354 = vunpack.c.h.b16 %v262
        %v355 = vunpack.c.l.b16 %v263
        %v356 = vunpack.c.h.b16 %v263
        %v357 = vunpack.c.l.b16 %v264
        %v358 = vunpack.c.h.b16 %v264
        %v359 = vunpack.c.l.b16 %v265
        %v360 = vunpack.c.h.b16 %v265
        %v361 = vunpack.c.l.b16 %v266
        %v362 = vunpack.c.h.b16 %v266
        %v363 = vunpack.c.l.b16 %v267
        %v364 = vunpack.c.h.b16 %v267
        %v365 = vunpack.c.l.b16 %v268
        %v366 = vunpack.c.h.b16 %v268
        %v367 = vunpack.c.l.b16 %v269
        %v368 = vunpack.c.h.b16 %v269
        %v369 = vunpack.c.l.b16 %v270
        %v370 = vunpack.c.h.b16 %v270
        %v371 = vunpack.c.l.b16 %v271
        %v372 = vunpack.c.h.b16 %v271
        %v373 = vunpack.c.l.b16 %v272
        %v374 = vunpack.c.h.b16 %v272
        %v375 = vunpack.c.l.b16 %v273
        %v376 = vunpack.c.h.b16 %v273
        %v377 = vunpack.c.l.b16 %v274
        %v378 = vunpack.c.h.b16 %v274
        %v379 = vunpack.c.l.b16 %v275
        %v380 = vunpack.c.h.b16 %v275
        %v381 = vunpack.c.l.b16 %v276
        %v382 = vunpack.c.h.b16 %v276
        %v383 = vunpack.c.l.b16 %v277
        %v384 = vunpack.c.h.b16 %v277
        %v385 = vunpack.c.l.b16 %v278
        %v386 = vunpack.c.h.b16 %v278
        %v387 = vunpack.c.l.b16 %v279
        %v388 = vunpack.c.h.b16 %v279
        %v389 = vunpack.c.l.b16 %v280
        %v390 = vunpack.c.h.b16 %v280
        %v391 = vunpack.c.l.b16 %v281
        %v392 = vunpack.c.h.b16 %v281
        %v393 = vunpack.c.l.b16 %v282
        %v394 = vunpack.c.h.b16 %v282
        %v395 = vunpack.c.l.b16 %v283
        %v396 = vunpack.c.h.b16 %v283
        %v397 = vunpack.c.l.b16 %v284
        %v398 = vunpack.c.h.b16 %v284
        %v399 = vunpack.c.l.b16 %v285
        %v400 = vunpack.c.h.b16 %v285
        %v401 = vunpack.c.l.b16 %v286
        %v402 = vunpack.c.h.b16 %v286
        %v403 = vunpack.c.l.b16 %v287
        %v404 = vunpack.c.h.b16 %v287
        %v405 = vunpack.c.l.b16 %v288
        %v406 = vunpack.c.h.b16 %v288
        %v407 = vunpack.c.l.b16 %v289
        %v408 = vunpack.c.h.b16 %v289
        %v409 = vunpack.c.l.b16 %v290
        %v410 = vunpack.c.h.b16 %v290
        %v411 = vunpack.c.l.b16 %v291
        %v412 = vunpack.c.h.b16 %v291
        %v413 = vunpack.c.l.b16 %v292
        %v414 = vunpack.c.h.b16 %v292
        %v415 = vunpack.c.l.b16 %v293
        %v416 = vunpack.c.h.b16 %v293
        %v417 = vunpack.c.l.b16 %v294
        %v418 = vunpack.c.h.b16 %v294
        %v419 = vunpack.c.l.b16 %v295
        %v420 = vunpack.c.h.b16 %v295
        %v421 = vpack.c.b16 %v357, %v349
        %v422 = vpack.c.b16 %v358, %v350
        %v423 = vpack.c.b16 %v359, %v351
        %v424 = vpack.c.b16 %v360, %v352
        %v425 = vpack.c.b16 %v361, %v353
        %v426 = vpack.c.b16 %v362, %v354
        %v427 = vpack.c.b16 %v363, %v355
        %v428 = vpack.c.b16 %v364, %v356
        %v429 = vpack.c.b16 %v373, %v365
        %v430 = vpack.c.b16 %v374, %v366
        %v431 = vpack.c.b16 %v375, %v367
        %v432 = vpack.c.b16 %v376, %v368
        %v433 = vpack.c.b16 %v377, %v369
        %v434 = vpack.c.b16 %v378, %v370
        %v435 = vpack.c.b16 %v379, %v371
        %v436 = vpack.c.b16 %v380, %v372
        %v437 = vpack.c.b16 %v389, %v381
        %v438 = vpack.c.b16 %v390, %v382
        %v439 = vpack.c.b16 %v391, %v383
        %v440 = vpack.c.b16 %v392, %v384
        %v441 = vpack.c.b16 %v393, %v385
        %v442 = vpack.c.b16 %v394, %v386
        %v443 = vpack.c.b16 %v395, %v387
        %v444 = vpack.c.b16 %v396, %v388
        %v445 = vpack.c.b16 %v405, %v397
        %v446 = vpack.c.b16 %v406, %v398
        %v447 = vpack.c.b16 %v407, %v399
        %v448 = vpack.c.b16 %v408, %v400
        %v449 = vpack.c.b16 %v409, %v401
        %v450 = vpack.c.b16 %v410, %v402
        %v451 = vpack.c.b16 %v411, %v403
        %v452 = vpack.c.b16 %v412, %v404
        %v453 = vpack.c.b16 %v413, %v413
        %v454 = vpack.c.b16 %v414, %v414
        %v455 = vpack.c.b16 %v415, %v415
        %v456 = vpack.c.b16 %v416, %v416
        %v457 = vpack.c.b16 %v417, %v417
        %v458 = vpack.c.b16 %v418, %v418
        %v459 = vpack.c.b16 %v419, %v419
        %v460 = vpack.c.b16 %v420, %v420
        %vm493 = vcmask 588800
        %v495 = vsel %vm493, %v312, 0
        %vm497 = vcmask 1043456
        %v499 = vsel %vm497, %v453, 0
        %v502 = vsel %vm497, %v454, 0
        %v505 = vsel %vm497, %v455, 0
        %v508 = vsel %vm497, %v456, 0
        %v511 = vsel %vm497, %v457, 0
        %v514 = vsel %vm497, %v458, 0
        %v517 = vsel %vm497, %v459, 0
        %v520 = vsel %vm497, %v460, 0
        %522 = vmatprep.subr.bf16.mxu0 %v422
        %523 = vmatpush1.bf16.msra.mxu0 %v421
        %524 = vmatprep.subr.bf16.mxu0 %v430
        %525 = vmatpush1.bf16.msra.mxu0 %v429
        %526 = vmatprep.subr.bf16.mxu0 %v438
        %527 = vmatpush1.bf16.msra.mxu0 %v437
        %528 = vmatprep.subr.bf16.mxu0 %v446
        %529 = vmatpush1.bf16.msra.mxu0 %v445
        %530 = vmatprep.subr.bf16.mxu0 %v502
        %531 = vmatpush1.bf16.msra.mxu0 %v499
        %532 = vmatprep.subr.bf16.mxu0 0
        %533 = vmatpush1.bf16.msra.mxu0 0
        %534 = vmatprep.subr.bf16.mxu0 0
        %535 = vmatpush1.bf16.msra.mxu0 0
        %536 = vmatprep.subr.bf16.mxu0 0
        %537 = vmatpush1.bf16.msra.mxu0 0
        %538 = vmatprep.subr.bf16.mxu0 0
        %539 = vmatpush1.bf16.msra.mxu0 0
        %540 = vmatprep.subr.bf16.mxu0 0
        %541 = vmatpush1.bf16.msra.mxu0 0
        %542 = vmatprep.subr.bf16.mxu0 0
        %543 = vmatpush1.bf16.msra.mxu0 0
        %544 = vmatprep.subr.bf16.mxu0 0
        %545 = vmatpush1.bf16.msra.mxu0 0
        %546 = vmatprep.subr.bf16.mxu0 0
        %547 = vmatpush1.bf16.msra.mxu0 0
        %548 = vmatprep.subr.bf16.mxu0 0
        %549 = vmatpush1.bf16.msra.mxu0 0
        %550 = vmatprep.subr.bf16.mxu0 0
        %551 = vmatpush1.bf16.msra.mxu0 0
        %552 = vmatprep.subr.bf16.mxu0 0
        %553 = vmatpush1.bf16.msra.mxu0 0
        %554 = vmatprep.mubr.bf16.mxu0 0
        %555 = vmatmul.mubr.bf16.gmra.mrb[0].mxu0 %v495
        %v556 = vpop.f32.mrb[0].mxu0
        %v557 = vadd.f32 %v301, %v556
        %v558 = vpop.f32.mrb[0].mxu0
        %v559 = vadd.f32 %v301, %v558
        %v560 = vpop.f32.mrb[0].mxu0
        %v561 = vadd.f32 %v306, %v560
        %v562 = vpop.f32.mrb[0].mxu0
        %v563 = vadd.f32 %v306, %v562
        %564 = vdwg.mxu0
        %565 = vmatprep.subr.bf16.mxu0 %v424
        %566 = vmatpush1.bf16.msra.mxu0 %v423
        %567 = vmatprep.subr.bf16.mxu0 %v432
        %568 = vmatpush1.bf16.msra.mxu0 %v431
        %569 = vmatprep.subr.bf16.mxu0 %v440
        %570 = vmatpush1.bf16.msra.mxu0 %v439
        %571 = vmatprep.subr.bf16.mxu0 %v448
        %572 = vmatpush1.bf16.msra.mxu0 %v447
        %573 = vmatprep.subr.bf16.mxu0 %v508
        %574 = vmatpush1.bf16.msra.mxu0 %v505
        %575 = vmatprep.subr.bf16.mxu0 0
        %576 = vmatpush1.bf16.msra.mxu0 0
        %577 = vmatprep.subr.bf16.mxu0 0
        %578 = vmatpush1.bf16.msra.mxu0 0
        %579 = vmatprep.subr.bf16.mxu0 0
        %580 = vmatpush1.bf16.msra.mxu0 0
        %581 = vmatprep.subr.bf16.mxu0 0
        %582 = vmatpush1.bf16.msra.mxu0 0
        %583 = vmatprep.subr.bf16.mxu0 0
        %584 = vmatpush1.bf16.msra.mxu0 0
        %585 = vmatprep.subr.bf16.mxu0 0
        %586 = vmatpush1.bf16.msra.mxu0 0
        %587 = vmatprep.subr.bf16.mxu0 0
        %588 = vmatpush1.bf16.msra.mxu0 0
        %589 = vmatprep.subr.bf16.mxu0 0
        %590 = vmatpush1.bf16.msra.mxu0 0
        %591 = vmatprep.subr.bf16.mxu0 0
        %592 = vmatpush1.bf16.msra.mxu0 0
        %593 = vmatprep.subr.bf16.mxu0 0
        %594 = vmatpush1.bf16.msra.mxu0 0
        %595 = vmatprep.subr.bf16.mxu0 0
        %596 = vmatpush1.bf16.msra.mxu0 0
        %597 = vmatprep.mubr.bf16.mxu0 0
        %598 = vmatmul.mubr.bf16.gmra.mrb[0].mxu0 %v495
        %v599 = vpop.f32.mrb[0].mxu0
        %v600 = vadd.f32 %v301, %v599
        %v601 = vpop.f32.mrb[0].mxu0
        %v602 = vadd.f32 %v301, %v601
        %v603 = vpop.f32.mrb[0].mxu0
        %v604 = vadd.f32 %v306, %v603
        %v605 = vpop.f32.mrb[0].mxu0
        %v606 = vadd.f32 %v306, %v605
        %607 = vdwg.mxu0
        %608 = vmatprep.subr.bf16.mxu0 %v426
        %609 = vmatpush1.bf16.msra.mxu0 %v425
        %610 = vmatprep.subr.bf16.mxu0 %v434
        %611 = vmatpush1.bf16.msra.mxu0 %v433
        %612 = vmatprep.subr.bf16.mxu0 %v442
        %613 = vmatpush1.bf16.msra.mxu0 %v441
        %614 = vmatprep.subr.bf16.mxu0 %v450
        %615 = vmatpush1.bf16.msra.mxu0 %v449
        %616 = vmatprep.subr.bf16.mxu0 %v514
        %617 = vmatpush1.bf16.msra.mxu0 %v511
        %618 = vmatprep.subr.bf16.mxu0 0
        %619 = vmatpush1.bf16.msra.mxu0 0
        %620 = vmatprep.subr.bf16.mxu0 0
        %621 = vmatpush1.bf16.msra.mxu0 0
        %622 = vmatprep.subr.bf16.mxu0 0
        %623 = vmatpush1.bf16.msra.mxu0 0
        %624 = vmatprep.subr.bf16.mxu0 0
        %625 = vmatpush1.bf16.msra.mxu0 0
        %626 = vmatprep.subr.bf16.mxu0 0
        %627 = vmatpush1.bf16.msra.mxu0 0
        %628 = vmatprep.subr.bf16.mxu0 0
        %629 = vmatpush1.bf16.msra.mxu0 0
        %630 = vmatprep.subr.bf16.mxu0 0
        %631 = vmatpush1.bf16.msra.mxu0 0
        %632 = vmatprep.subr.bf16.mxu0 0
        %633 = vmatpush1.bf16.msra.mxu0 0
        %634 = vmatprep.subr.bf16.mxu0 0
        %635 = vmatpush1.bf16.msra.mxu0 0
        %636 = vmatprep.subr.bf16.mxu0 0
        %637 = vmatpush1.bf16.msra.mxu0 0
        %638 = vmatprep.subr.bf16.mxu0 0
        %639 = vmatpush1.bf16.msra.mxu0 0
        %640 = vmatprep.mubr.bf16.mxu0 0
        %641 = vmatmul.mubr.bf16.gmra.mrb[0].mxu0 %v495
        %v642 = vpop.f32.mrb[0].mxu0
        %v643 = vadd.f32 %v301, %v642
        %v644 = vpop.f32.mrb[0].mxu0
        %v645 = vadd.f32 %v301, %v644
        %v646 = vpop.f32.mrb[0].mxu0
        %v647 = vadd.f32 %v306, %v646
        %v648 = vpop.f32.mrb[0].mxu0
        %v649 = vadd.f32 %v306, %v648
        %650 = vdwg.mxu0
        %651 = vmatprep.subr.bf16.mxu0 %v428
        %652 = vmatpush1.bf16.msra.mxu0 %v427
        %653 = vmatprep.subr.bf16.mxu0 %v436
        %654 = vmatpush1.bf16.msra.mxu0 %v435
        %655 = vmatprep.subr.bf16.mxu0 %v444
        %656 = vmatpush1.bf16.msra.mxu0 %v443
        %657 = vmatprep.subr.bf16.mxu0 %v452
        %658 = vmatpush1.bf16.msra.mxu0 %v451
        %659 = vmatprep.subr.bf16.mxu0 %v520
        %660 = vmatpush1.bf16.msra.mxu0 %v517
        %661 = vmatprep.subr.bf16.mxu0 0
        %662 = vmatpush1.bf16.msra.mxu0 0
        %663 = vmatprep.subr.bf16.mxu0 0
        %664 = vmatpush1.bf16.msra.mxu0 0
        %665 = vmatprep.subr.bf16.mxu0 0
        %666 = vmatpush1.bf16.msra.mxu0 0
        %667 = vmatprep.subr.bf16.mxu0 0
        %668 = vmatpush1.bf16.msra.mxu0 0
        %669 = vmatprep.subr.bf16.mxu0 0
        %670 = vmatpush1.bf16.msra.mxu0 0
        %671 = vmatprep.subr.bf16.mxu0 0
        %672 = vmatpush1.bf16.msra.mxu0 0
        %673 = vmatprep.subr.bf16.mxu0 0
        %674 = vmatpush1.bf16.msra.mxu0 0
        %675 = vmatprep.subr.bf16.mxu0 0
        %676 = vmatpush1.bf16.msra.mxu0 0
        %677 = vmatprep.subr.bf16.mxu0 0
        %678 = vmatpush1.bf16.msra.mxu0 0
        %679 = vmatprep.subr.bf16.mxu0 0
        %680 = vmatpush1.bf16.msra.mxu0 0
        %681 = vmatprep.subr.bf16.mxu0 0
        %682 = vmatpush1.bf16.msra.mxu0 0
        %683 = vmatprep.mubr.bf16.mxu0 0
        %684 = vmatmul.mubr.bf16.gmra.mrb[0].mxu0 %v495
        %v685 = vpop.f32.mrb[0].mxu0
        %v686 = vadd.f32 %v301, %v685
        %v687 = vpop.f32.mrb[0].mxu0
        %v688 = vadd.f32 %v301, %v687
        %v689 = vpop.f32.mrb[0].mxu0
        %v690 = vadd.f32 %v306, %v689
        %v691 = vpop.f32.mrb[0].mxu0
        %v692 = vadd.f32 %v306, %v691
        %693 = vdwg.mxu0
        %v694 = vtanh.pop %v557
        %v695 = vtanh.pop %v559
        %v696 = vtanh.pop %v600
        %v697 = vtanh.pop %v602
        %v698 = vtanh.pop %v643
        %v699 = vtanh.pop %v645
        %v700 = vtanh.pop %v686
        %v701 = vtanh.pop %v688
        %v702 = vtanh.pop %v561
        %v703 = vtanh.pop %v563
        %v704 = vtanh.pop %v604
        %v705 = vtanh.pop %v606
        %v706 = vtanh.pop %v647
        %v707 = vtanh.pop %v649
        %v708 = vtanh.pop %v690
        %v709 = vtanh.pop %v692
        %710 = vst [vmem:[%s254] sm:$0xff] %v694
        %711 = vst [vmem:[%s254 + $0x8] sm:$0xff] %v695
        %712 = vst [vmem:[%s254 + $0x10] sm:$0xff] %v696
        %713 = vst [vmem:[%s254 + $0x18] sm:$0xff] %v697
        %714 = vst [vmem:[%s254 + $0x20] sm:$0xff] %v698
        %715 = vst [vmem:[%s254 + $0x28] sm:$0xff] %v699
        %716 = vst [vmem:[%s254 + $0x30] sm:$0xff] %v700
        %717 = vst [vmem:[%s254 + $0x38] sm:$0xff] %v701
        %718 = vst [vmem:[%s254 + $0x40] sm:$0xf] %v702
        %719 = vst [vmem:[%s254 + $0x48] sm:$0xf] %v703
        %720 = vst [vmem:[%s254 + $0x50] sm:$0xf] %v704
        %721 = vst [vmem:[%s254 + $0x58] sm:$0xf] %v705
        %722 = vst [vmem:[%s254 + $0x60] sm:$0xf] %v706
        %723 = vst [vmem:[%s254 + $0x68] sm:$0xf] %v707
        %724 = vst [vmem:[%s254 + $0x70] sm:$0xf] %v708
        %725 = vst [vmem:[%s254 + $0x78] sm:$0xf] %v709
        %s726 = sand.u32 %s90, 1
        %s727 = sand.u32 %s90, 1
        %s728 = smul.addr %s727, 128
        %s729 = scalar_lea.vmem [#allocation3], %s728
        // Predicated region
        $region56: #{generator_forward.9} parent=50 // pred_check
          %p730 = pneg %p100
        $region57: #{generator_forward.9} parent=50 // pred_check_branch
          %732 = sbr.rel (%p730) target = $region59
        $region58: #{generator_forward.9} parent=50 // pred_region
          %s733 = smul.u32 8, %s14
          %s734 = smul.addr %s733, 8
          %s735 = scalar_lea.vmem %s3, %s734
          // Predicated region
          $region60: #{generator_forward.9} parent=58 // pred_check
            _
          $region61: #{generator_forward.9} parent=58 // pred_check_branch
            %737 = sbr.rel (0) target = $region63
          $region62: #{generator_forward.9} parent=58 // pred_region
            // Predicated region
            $region64: #{generator_forward.9} parent=62 // pred_check
              _
            $region65: #{generator_forward.9} parent=62 // pred_check_branch
              %739 = sbr.rel (0) target = $region67
            $region66: #{generator_forward.9} parent=62 // pred_region
              loop: start=0, step=1, limit=1
              $region68: #{generator_forward.9} parent=66 // loop_pre_header
                _
              $region69: #{generator_forward.9} parent=66 // loop_header
                %s741 = sphi 0, %s745
                %p742 = scmp.ge.s32.totalorder %s741, 1
                %s746 = sphi %s729, %s729
                %s747 = sphi %s735, %s735
              $region70: #{generator_forward.9} parent=66 // loop_header_branch
                %744 = sbr.rel (%p742) target = $region74
              $region71: #{generator_forward.9} parent=66 // loop_body
                %v748 = vld [vmem:[%s746] sm:$0xff]
                %749 = vst [vmem:[%s747] sm:$0xff] %v748
                %v750 = vld [vmem:[%s746 + $0x8] sm:$0xff]
                %751 = vst [vmem:[%s747 + $0x8] sm:$0xff] %v750
                %v752 = vld [vmem:[%s746 + $0x10] sm:$0xff]
                %753 = vst [vmem:[%s747 + $0x10] sm:$0xff] %v752
                %v754 = vld [vmem:[%s746 + $0x18] sm:$0xff]
                %755 = vst [vmem:[%s747 + $0x18] sm:$0xff] %v754
                %v756 = vld [vmem:[%s746 + $0x20] sm:$0xff]
                %757 = vst [vmem:[%s747 + $0x20] sm:$0xff] %v756
                %v758 = vld [vmem:[%s746 + $0x28] sm:$0xff]
                %759 = vst [vmem:[%s747 + $0x28] sm:$0xff] %v758
                %v760 = vld [vmem:[%s746 + $0x30] sm:$0xff]
                %761 = vst [vmem:[%s747 + $0x30] sm:$0xff] %v760
                %v762 = vld [vmem:[%s746 + $0x38] sm:$0xff]
                %763 = vst [vmem:[%s747 + $0x38] sm:$0xff] %v762
                %v764 = vld [vmem:[%s746 + $0x40] sm:$0xff]
                %765 = vst [vmem:[%s747 + $0x80] sm:$0xff] %v764
                %v766 = vld [vmem:[%s746 + $0x48] sm:$0xff]
                %767 = vst [vmem:[%s747 + $0x88] sm:$0xff] %v766
                %v768 = vld [vmem:[%s746 + $0x50] sm:$0xff]
                %769 = vst [vmem:[%s747 + $0x90] sm:$0xff] %v768
                %v770 = vld [vmem:[%s746 + $0x58] sm:$0xff]
                %771 = vst [vmem:[%s747 + $0x98] sm:$0xff] %v770
                %v772 = vld [vmem:[%s746 + $0x60] sm:$0xff]
                %773 = vst [vmem:[%s747 + $0xa0] sm:$0xff] %v772
                %v774 = vld [vmem:[%s746 + $0x68] sm:$0xff]
                %775 = vst [vmem:[%s747 + $0xa8] sm:$0xff] %v774
                %v776 = vld [vmem:[%s746 + $0x70] sm:$0xff]
                %777 = vst [vmem:[%s747 + $0xb0] sm:$0xff] %v776
                %v778 = vld [vmem:[%s746 + $0x78] sm:$0xff]
                %779 = vst [vmem:[%s747 + $0xb8] sm:$0xff] %v778
              $region72: #{generator_forward.9} parent=66 // loop_footer
                %s745 = sadd.s32 1, %s741
              $region73: #{generator_forward.9} parent=66 // loop_footer_branch
                %740 = sbr.rel target = $region69
              $region74: #{generator_forward.9} parent=66 // loop_exit
                _
            $region67: #{generator_forward.9} parent=62 // pred_fallthru
              _
            // Predicated region
            $region75: #{generator_forward.9} parent=62 // pred_check
              _
            $region76: #{generator_forward.9} parent=62 // pred_check_branch
              %781 = sbr.rel target = $region78
            $region77: #{generator_forward.9} parent=62 // pred_region
              _
            $region78: #{generator_forward.9} parent=62 // pred_fallthru
              _
          $region63: #{generator_forward.9} parent=58 // pred_fallthru
            _
          %782 = vnop
        $region59: #{generator_forward.9} parent=50 // pred_fallthru
          _
      $region51: #{generator_forward.9} parent=5 // pred_fallthru
        _
      %p783 = scmp.le.s32.totalorder 2, %s9
      // Predicated region
      $region79: #{generator_forward.9} parent=5 // pred_check
        %p784 = pneg %p783
      $region80: #{generator_forward.9} parent=5 // pred_check_branch
        %786 = sbr.rel (%p784) target = $region82
      $region81: #{generator_forward.9} parent=5 // pred_region
        %s787 = ssub.s32 %s9, 2
        // Predicated region
        $region83: #{generator_forward.9} parent=81 // pred_check
          %p788 = pneg %p106
        $region84: #{generator_forward.9} parent=81 // pred_check_branch
          %790 = sbr.rel (%p788) target = $region86
        $region85: #{generator_forward.9} parent=81 // pred_region
          %s791 = sand.u32 %s91, 1
          %s792 = sand.u32 %s91, 1
          %s793 = smul.addr %s792, 128
          %s794 = scalar_lea.vmem [#allocation3], %s793
        $region86: #{generator_forward.9} parent=81 // pred_fallthru
          _
      $region82: #{generator_forward.9} parent=5 // pred_fallthru
        _
    $region6: #{generator_forward.9} parent=1 // loop_footer
      %s13 = sadd.s32 1, %s9
    $region7: #{generator_forward.9} parent=1 // loop_footer_branch
      %8 = sbr.rel target = $region3
    $region8: #{generator_forward.9} parent=1 // loop_exit
      _

</llo_original>
